<compile_context>
chip_gen: v7x
topology: tpu7x:2x2x1
jax: 0.10.0
libtpu: 0.0.40
codegen_flags: <defaults>
</compile_context>

<pallas_src>
import functools

import jax
import jax.numpy as jnp
from jax import lax
from jax.experimental import pallas as pl
from jax.experimental.pallas import tpu as pltpu

IGNORE_INDEX = -1
VMEM_LIMIT = 48 * 1024 * 1024  # explicit budget; fits v7x's 64 MiB VMEM


# --------------------------------------------------------------------------
# Kernel 1: one transformer layer per grid step, residual carried in VMEM
# --------------------------------------------------------------------------
def _layer_kernel(x_ref, attn_gamma_ref, wqkv_ref, wo_ref, gates_ref,
                  ff_gamma_ref, wff1_ref, bff1_ref, wff2_ref, bff2_ref,
                  final_gamma_ref, mem_kv_ref, mem_norm_ref,
                  hn_ref, new_kv_ref, new_norm_ref, h_acc,
                  *, heads, dim_head, have_mem):
    f32 = jnp.float32
    bf16 = jnp.bfloat16
    layer = pl.program_id(1)
    n_layers = pl.num_programs(1)

    H, Dh = heads, dim_head
    HDh = H * Dh
    L = x_ref.shape[1]
    scale = 1.0 / (Dh ** 0.5)

    @pl.when(layer == 0)
    def _():
        h_acc[...] = x_ref[0].astype(f32)

    h = h_acc[...]                                        # (L, D) f32 residual

    def rmsnorm(t, gamma):                                # gamma: (1, D)
        ss = jnp.sum(t * t, axis=-1, keepdims=True)
        inv = lax.rsqrt(jnp.maximum(ss, 1e-24))
        return t * inv * jnp.sqrt(f32(t.shape[-1])) * gamma

    def elu_p1(t):
        return jnp.where(t > 0, t, jnp.exp(t) - 1.0) + 1.0

    def split_heads(t):                                   # (L, H*Dh) -> (H, L, Dh)
        return jnp.stack([t[:, hd * Dh:(hd + 1) * Dh] for hd in range(H)], axis=0)

    def merge_heads(t):                                   # (H, L, Dh) -> (L, H*Dh)
        return jnp.concatenate([t[hd] for hd in range(H)], axis=-1)

    row = lax.broadcasted_iota(jnp.int32, (L, L), 0)
    col = lax.broadcasted_iota(jnp.int32, (L, L), 1)
    causal = (col <= row)[None]                           # (1, L, L)

    # ---------------- attention block ----------------
    xn = rmsnorm(h, attn_gamma_ref[0])
    qkv = jnp.dot(xn.astype(bf16), wqkv_ref[0],
                  preferred_element_type=f32)             # (L, 3*H*Dh) f32
    q = qkv[:, :HDh]
    k = qkv[:, HDh:2 * HDh]
    v = qkv[:, 2 * HDh:]

    q3 = split_heads(q)                                   # (H, L, Dh)
    k3 = split_heads(k)
    v3 = split_heads(v)

    # head-batched local causal attention (single dot_general batched over H)
    sim = jnp.einsum('hld,hmd->hlm',
                     (q3 * scale).astype(bf16), k3.astype(bf16),
                     preferred_element_type=f32)          # (H, L, L)
    sim = jnp.where(causal, sim, -1e30)
    m = jnp.max(sim, axis=-1, keepdims=True)
    p = jnp.exp(sim - m)
    denom = jnp.sum(p, axis=-1, keepdims=True)
    p = p * pl.reciprocal(denom, approx=True)             # softmax denom on EUP
    local = jnp.einsum('hlm,hmd->hld',
                       p.astype(bf16), v3.astype(bf16),
                       preferred_element_type=f32)        # (H, L, Dh)

    g = jax.nn.sigmoid(gates_ref[0])                      # (H, 1, 1), hoisted

    if have_mem:
        # compressive-memory retrieval (linear attention), head-batched, f32
        sq3 = elu_p1(q3)                                  # (H, L, Dh)
        m_kv = mem_kv_ref[0, 0].reshape(H, Dh, Dh)        # [(h,d), e] -> [h, d, e]
        m_nrm = mem_norm_ref[0, 0]                        # (H, Dh)
        numer = jnp.einsum('hld,hde->hle', sq3, m_kv,
                           preferred_element_type=f32)    # (H, L, Dh)
        dnm = jnp.sum(sq3 * m_nrm[:, None, :], axis=-1, keepdims=True)
        mem_out = numer * pl.reciprocal(jnp.maximum(dnm, 1e-10), approx=True)
        out3 = local * g + mem_out * (1.0 - g)
    else:
        out3 = local

    attn_out = merge_heads(out3)                          # (L, H*Dh)
    h = h + jnp.dot(attn_out.astype(bf16), wo_ref[0],
                    preferred_element_type=f32)

    # ---------------- compressive memory update (f32 accumulators) ----------
    sk3 = elu_p1(k3)                                      # (H, L, Dh)
    kv_delta = jnp.einsum('hld,hle->hde', sk3, v3,
                          preferred_element_type=f32)     # (H, Dh, Dh)
    new_kv_ref[0, 0] = mem_kv_ref[0, 0] + kv_delta.reshape(HDh, Dh)
    new_norm_ref[0, 0] = mem_norm_ref[0, 0] + jnp.sum(sk3, axis=1)

    # ---------------- feedforward block ----------------
    xn2 = rmsnorm(h, ff_gamma_ref[0])
    ff = jnp.dot(xn2.astype(bf16), wff1_ref[0],
                 preferred_element_type=f32) + bff1_ref[0]
    ff = jax.nn.gelu(ff, approximate=True)
    ff = jnp.dot(ff.astype(bf16), wff2_ref[0],
                 preferred_element_type=f32) + bff2_ref[0]
    h = h + ff
    h_acc[...] = h

    @pl.when(layer == n_layers - 1)
    def _():
        hn_ref[0] = rmsnorm(h, final_gamma_ref[0]).astype(hn_ref.dtype)


def segment_layers(x, params, wbf16, mem_kv, mem_norm, *, have_mem, cfg):
    depth, H, Dh = cfg["depth"], cfg["heads"], cfg["dim_head"]
    B, L, D = x.shape
    HDh = H * Dh
    FF = params["wff1"].shape[-1]

    in_specs = [
        pl.BlockSpec((1, L, D), lambda b, l: (b, 0, 0)),              # x (loaded once per b)
        pl.BlockSpec((1, 1, D), lambda b, l: (l, 0, 0)),              # attn_gamma[layer]
        pl.BlockSpec((1, D, 3 * HDh), lambda b, l: (l, 0, 0)),        # wqkv[layer] bf16
        pl.BlockSpec((1, HDh, D), lambda b, l: (l, 0, 0)),            # wo[layer]   bf16
        pl.BlockSpec((1, H, 1, 1), lambda b, l: (l, 0, 0, 0)),        # gates[layer]
        pl.BlockSpec((1, 1, D), lambda b, l: (l, 0, 0)),              # ff_gamma[layer]
        pl.BlockSpec((1, D, FF), lambda b, l: (l, 0, 0)),             # wff1[layer] bf16
        pl.BlockSpec((1, 1, FF), lambda b, l: (l, 0, 0)),             # bff1[layer]
        pl.BlockSpec((1, FF, D), lambda b, l: (l, 0, 0)),             # wff2[layer] bf16
        pl.BlockSpec((1, 1, D), lambda b, l: (l, 0, 0)),              # bff2[layer]
        pl.BlockSpec((1, 1, D), lambda b, l: (0, 0, 0)),              # final_gamma
        pl.BlockSpec((1, 1, HDh, Dh), lambda b, l: (l, b, 0, 0)),     # mem_kv[layer, b]
        pl.BlockSpec((1, 1, H, Dh), lambda b, l: (l, b, 0, 0)),       # mem_norm[layer, b]
    ]
    out_specs = [
        pl.BlockSpec((1, L, D), lambda b, l: (b, 0, 0)),              # hn (bf16)
        pl.BlockSpec((1, 1, HDh, Dh), lambda b, l: (l, b, 0, 0)),     # new mem_kv
        pl.BlockSpec((1, 1, H, Dh), lambda b, l: (l, b, 0, 0)),       # new mem_norm
    ]
    out_shape = [
        jax.ShapeDtypeStruct((B, L, D), jnp.bfloat16),
        jax.ShapeDtypeStruct((depth, B, HDh, Dh), jnp.float32),
        jax.ShapeDtypeStruct((depth, B, H, Dh), jnp.float32),
    ]
    kernel = functools.partial(_layer_kernel, heads=H, dim_head=Dh,
                               have_mem=have_mem)
    return pl.pallas_call(
        kernel,
        grid=(B, depth),
        in_specs=in_specs,
        out_specs=out_specs,
        out_shape=out_shape,
        scratch_shapes=[pltpu.VMEM((L, D), jnp.float32)],             # residual carry
        compiler_params=pltpu.CompilerParams(
            dimension_semantics=("parallel", "arbitrary"),
            vmem_limit_bytes=VMEM_LIMIT),
    )(x, params["attn_gamma"], wbf16["wqkv"], wbf16["wo"], params["gates"],
      params["ff_gamma"], wbf16["wff1"], params["bff1"], wbf16["wff2"],
      params["bff2"], params["final_gamma"], mem_kv, mem_norm)


# --------------------------------------------------------------------------
# Kernel 2: fused logits projection + masked cross-entropy, vocab-tiled
# (logits never touch HBM; online log-sum-exp over vocab tiles)
# --------------------------------------------------------------------------
def _ce_kernel(hn_ref, wlogit_ref, labels_ref, out_ref,
               m_acc, s_acc, pick_acc, *, ignore_index, v_tile):
    f32 = jnp.float32
    vt = pl.program_id(1)
    nvt = pl.num_programs(1)

    @pl.when(vt == 0)
    def _():
        m_acc[...] = jnp.full_like(m_acc, -jnp.inf)
        s_acc[...] = jnp.zeros_like(s_acc)
        pick_acc[...] = jnp.zeros_like(pick_acc)

    logits = jnp.dot(hn_ref[0], wlogit_ref[...],
                     preferred_element_type=f32)          # (L, v_tile) f32
    labels = labels_ref[0]                                # (L, 1) int32

    vid = lax.broadcasted_iota(jnp.int32, logits.shape, 1) + vt * v_tile
    picked = jnp.sum(jnp.where(vid == labels, logits, 0.0),
                     axis=-1, keepdims=True)              # (L, 1)
    pick_acc[...] += picked

    m_new = jnp.maximum(m_acc[...], jnp.max(logits, axis=-1, keepdims=True))
    s_acc[...] = (s_acc[...] * jnp.exp(m_acc[...] - m_new)
                  + jnp.sum(jnp.exp(logits - m_new), axis=-1, keepdims=True))
    m_acc[...] = m_new

    @pl.when(vt == nvt - 1)
    def _():
        lse = m_acc[...] + jnp.log(s_acc[...])
        tok_loss = lse - pick_acc[...]                    # (L, 1)
        mask = labels != ignore_index
        out_ref[...] = jnp.sum(jnp.where(mask, tok_loss, 0.0)).reshape(1, 1, 1)


def segment_loss_partials(hn, wlogit_bf16, labels3, *, ignore_index):
    B, L, D = hn.shape
    V = wlogit_bf16.shape[-1]
    v_tile = 128 if V % 128 == 0 else V
    nvt = V // v_tile
    kernel = functools.partial(_ce_kernel, ignore_index=ignore_index,
                               v_tile=v_tile)
    return pl.pallas_call(
        kernel,
        grid=(B, nvt),
        in_specs=[
            pl.BlockSpec((1, L, D), lambda b, v: (b, 0, 0)),          # hn (bf16)
            pl.BlockSpec((D, v_tile), lambda b, v: (0, v)),           # wlogit tile (bf16)
            pl.BlockSpec((1, L, 1), lambda b, v: (b, 0, 0)),          # labels
        ],
        out_specs=pl.BlockSpec((1, 1, 1), lambda b, v: (b, 0, 0)),
        out_shape=jax.ShapeDtypeStruct((B, 1, 1), jnp.float32),
        scratch_shapes=[pltpu.VMEM((L, 1), jnp.float32)] * 3,
        compiler_params=pltpu.CompilerParams(
            dimension_semantics=("parallel", "arbitrary"),
            vmem_limit_bytes=VMEM_LIMIT),
    )(hn, wlogit_bf16, labels3)


# --------------------------------------------------------------------------
# Wrapper forward (mirrors InfiniTransformerWrapper.forward)
# --------------------------------------------------------------------------
def infini_wrapper_forward(seq, params, *, segment_length, ignore_index, cfg):
    inputs, labels = seq[:, :-1], seq[:, 1:]
    B, N = inputs.shape
    assert N % segment_length == 0  # TODO(synk): ragged final segment unsupported
    num_segments = N // segment_length
    total_tokens = jnp.sum(labels != ignore_index).astype(jnp.float32)

    depth, H, Dh = cfg["depth"], cfg["heads"], cfg["dim_head"]
    HDh = H * Dh

    # Cast the big matmul weights to bf16 ONCE (f32 accumulation in-kernel);
    # halves weight HBM/DMA/VMEM footprint.
    wbf16 = {k: params[k].astype(jnp.bfloat16)
             for k in ("wqkv", "wo", "wff1", "wff2", "wlogit")}

    # compressive memories: one (H*Dh, Dh) slab per (layer, batch)
    mem_kv = jnp.zeros((depth, B, HDh, Dh), jnp.float32)
    mem_norm = jnp.zeros((depth, B, H, Dh), jnp.float32)

    total_loss = jnp.float32(0.0)
    for ind in range(num_segments):
        sl = slice(ind * segment_length, (ind + 1) * segment_length)
        x = params["emb"][inputs[:, sl]]                  # embedding gather (glue)
        hn, mem_kv, mem_norm = segment_layers(
            x, params, wbf16, mem_kv, mem_norm, have_mem=(ind > 0), cfg=cfg)
        partials = segment_loss_partials(
            hn, wbf16["wlogit"],
            labels[:, sl][:, :, None].astype(jnp.int32),
            ignore_index=ignore_index)
        # segment_loss.mean() * frac_tokens == masked_sum / total_tokens (cnt > 0)
        total_loss = total_loss + jnp.sum(partials) / total_tokens
        # detach_memories_: no-op in a forward-only (no autograd) setting
    return total_loss


# --------------------------------------------------------------------------
# Deterministic parameter init (synthetic InfiniTransformer)
# --------------------------------------------------------------------------
def init_params(key, *, vocab, dim, depth, heads, dim_head, ff_mult):
    dim_inner = heads * dim_head
    ff_dim = dim * ff_mult
    ks = jax.random.split(key, 6)
    n = lambda k, s: 0.02 * jax.random.normal(k, s, jnp.float32)
    return {
        "emb": n(ks[0], (vocab, dim)),
        "attn_gamma": jnp.ones((depth, 1, dim), jnp.float32),
        "wqkv": n(ks[1], (depth, dim, 3 * dim_inner)),
        "wo": n(ks[2], (depth, dim_inner, dim)),
        "gates": jnp.zeros((depth, heads, 1, 1), jnp.float32),
        "ff_gamma": jnp.ones((depth, 1, dim), jnp.float32),
        "wff1": n(ks[3], (depth, dim, ff_dim)),
        "bff1": jnp.zeros((depth, 1, ff_dim), jnp.float32),
        "wff2": n(ks[4], (depth, ff_dim, dim)),
        "bff2": jnp.zeros((depth, 1, dim), jnp.float32),
        "final_gamma": jnp.ones((1, 1, dim), jnp.float32),
        "wlogit": n(ks[5], (dim, vocab)),
    }


# --------------------------------------------------------------------------
# Pure-JAX reference (same math, no Pallas) for a sanity check
# --------------------------------------------------------------------------
def _ref_rmsnorm(t, gamma):
    ss = jnp.sum(t * t, axis=-1, keepdims=True)
    return (t * lax.rsqrt(jnp.maximum(ss, 1e-24))
            * jnp.sqrt(jnp.float32(t.shape[-1])) * gamma)


def _ref_segment(x, p, mem_kv, mem_norm, have_mem, cfg):
    depth, H, Dh = cfg["depth"], cfg["heads"], cfg["dim_head"]
    B, L, D = x.shape
    scale = 1.0 / (Dh ** 0.5)
    row = lax.broadcasted_iota(jnp.int32, (L, L), 0)
    col = lax.broadcasted_iota(jnp.int32, (L, L), 1)
    causal = col <= row
    elu_p1 = lambda t: jnp.where(t > 0, t, jnp.exp(t) - 1.0) + 1.0

    h = x
    new_kv, new_norm = jnp.zeros_like(mem_kv), jnp.zeros_like(mem_norm)
    for layer in range(depth):
        xn = _ref_rmsnorm(h, p["attn_gamma"][layer, 0])
        qkv = xn @ p["wqkv"][layer]
        outs = []
        for hd in range(H):
            q = qkv[..., hd * Dh:(hd + 1) * Dh]
            k = qkv[..., H * Dh + hd * Dh:H * Dh + (hd + 1) * Dh]
            v = qkv[..., 2 * H * Dh + hd * Dh:2 * H * Dh + (hd + 1) * Dh]
            sim = jnp.einsum("bld,bmd->blm", q, k) * scale
            sim = jnp.where(causal, sim, -1e30)
            sim = sim - sim.max(-1, keepdims=True)
            pr = jnp.exp(sim)
            pr = pr / pr.sum(-1, keepdims=True)
            local = jnp.einsum("blm,bmd->bld", pr, v)
            g = jax.nn.sigmoid(p["gates"][layer, hd, 0, 0])
            if have_mem:
                sq = elu_p1(q)
                numer = jnp.einsum("bld,bdv->blv", sq, mem_kv[layer, :, hd])
                denom = jnp.einsum("bld,bd->bl", sq, mem_norm[layer, :, hd])[..., None]
                mem_out = numer / jnp.maximum(denom, 1e-10)
                out_h = local * g + mem_out * (1.0 - g)
            else:
                out_h = local
            outs.append(out_h)
            sk = elu_p1(k)
            kv_new = jnp.einsum("bld,blv->bdv", sk, v) + mem_kv[layer, :, hd]
            nrm_new = sk.sum(1) + mem_norm[layer, :, hd]
            new_kv = new_kv.at[layer, :, hd].set(kv_new)
            new_norm = new_norm.at[layer, :, hd].set(nrm_new)
        h = h + jnp.concatenate(outs, -1) @ p["wo"][layer]
        xn2 = _ref_rmsnorm(h, p["ff_gamma"][layer, 0])
        ff = jax.nn.gelu(xn2 @ p["wff1"][layer] + p["bff1"][layer, 0],
                         approximate=True)
        h = h + (ff @ p["wff2"][layer] + p["bff2"][layer, 0])
    logits = _ref_rmsnorm(h, p["final_gamma"][0, 0]) @ p["wlogit"]
    return logits, new_kv, new_norm


def reference_forward(seq, params, *, segment_length, ignore_index, cfg):
    inputs, labels = seq[:, :-1], seq[:, 1:]
    B, N = inputs.shape
    num_segments = N // segment_length
    total_tokens = jnp.sum(labels != ignore_index).astype(jnp.float32)
    depth, H, Dh = cfg["depth"], cfg["heads"], cfg["dim_head"]
    mem_kv = jnp.zeros((depth, B, H, Dh, Dh), jnp.float32)
    mem_norm = jnp.zeros((depth, B, H, Dh), jnp.float32)
    total_loss = jnp.float32(0.0)
    for ind in range(num_segments):
        sl = slice(ind * segment_length, (ind + 1) * segment_length)
        seg_label = labels[:, sl]
        x = params["emb"][inputs[:, sl]]
        logits, mem_kv, mem_norm = _ref_segment(x, params, mem_kv, mem_norm,
                                                ind > 0, cfg)
        m = jnp.max(logits, -1, keepdims=True)
        lse = m + jnp.log(jnp.sum(jnp.exp(logits - m), -1, keepdims=True))
        vid = lax.broadcasted_iota(jnp.int32, logits.shape, 2)
        picked = jnp.sum(jnp.where(vid == seg_label[..., None], logits, 0.0),
                         -1, keepdims=True)
        tok_loss = (lse - picked)[..., 0]
        mask = (seg_label != ignore_index).astype(jnp.float32)
        cnt = jnp.sum(mask)
        total_loss = total_loss + (jnp.sum(tok_loss * mask) / cnt) * (cnt / total_tokens)
    return total_loss


# --------------------------------------------------------------------------
if __name__ == "__main__":
    B, SEG, NSEG = 2, 8, 2
    VOCAB, DIM, DEPTH, HEADS, DHEAD, FF_MULT = 256, 32, 2, 2, 16, 4
    cfg = dict(vocab=VOCAB, dim=DIM, depth=DEPTH, heads=HEADS, dim_head=DHEAD)

    key = jax.random.PRNGKey(0)
    kp, ks = jax.random.split(key)
    params = init_params(kp, vocab=VOCAB, dim=DIM, depth=DEPTH, heads=HEADS,
                         dim_head=DHEAD, ff_mult=FF_MULT)

    total_len = SEG * NSEG + 1
    seq = jax.random.randint(ks, (B, total_len), 0, VOCAB, dtype=jnp.int32)
    seq = seq.at[0, -1].set(IGNORE_INDEX)  # exercise ignore_index mask in labels

    fwd = jax.jit(functools.partial(infini_wrapper_forward,
                                    segment_length=SEG,
                                    ignore_index=IGNORE_INDEX,
                                    cfg=cfg))
    loss = jax.block_until_ready(fwd(seq, params))

    ref = reference_forward(seq, params, segment_length=SEG,
                            ignore_index=IGNORE_INDEX, cfg=cfg)
    assert bool(jnp.isfinite(loss))
    rel = abs(float(loss) - float(ref)) / max(1e-6, abs(float(ref)))
    assert rel < 2e-2, (float(loss), float(ref))
    print("KERNEL_OK")
</pallas_src>

<mosaic_0001>
module attributes {stable_mosaic.version = 11 : i64} {
  func.func @_ce_kernel(%arg0: i32, %arg1: i32, %arg2: memref<1x8x32xbf16, #tpu.memory_space<vmem>>, %arg3: memref<32x128xbf16, #tpu.memory_space<vmem>>, %arg4: memref<1x8x1xi32, #tpu.memory_space<vmem>>, %arg5: memref<1x1x1xf32, #tpu.memory_space<vmem>>, %arg6: memref<8x1xf32, #tpu.memory_space<vmem>>, %arg7: memref<8x1xf32, #tpu.memory_space<vmem>>, %arg8: memref<8x1xf32, #tpu.memory_space<vmem>>) attributes {dimension_semantics = [#tpu.dimension_semantics<parallel>, #tpu.dimension_semantics<arbitrary>], iteration_bounds = array<i64: 2, 2>, scalar_prefetch = 0 : i64, scratch_operands = 3 : i64, tpu.core_type = #tpu.core_type<tc>, window_params = [{transform_indices = @transform_0, window_bounds = array<i64: 1, 8, 32>}, {transform_indices = @transform_1, window_bounds = array<i64: 32, 128>}, {transform_indices = @transform_2, window_bounds = array<i64: 1, 8, 1>}, {transform_indices = @transform_3, window_bounds = array<i64: 1, 1, 1>}]} {
    %c0_i32 = arith.constant 0 : i32
    %0 = arith.cmpi eq, %arg1, %c0_i32 : i32
    %1 = arith.extui %0 : i1 to i32
    %c0_i32_0 = arith.constant 0 : i32
    %2 = arith.cmpi ne, %1, %c0_i32_0 : i32
    scf.if %2 {
      %cst_27 = arith.constant 0xFF800000 : f32
      %42 = vector.broadcast %cst_27 : f32 to vector<8x1xf32>
      %c0_28 = arith.constant 0 : index
      %c0_29 = arith.constant 0 : index
      %43 = vector.load %arg6[%c0_28, %c0_29] : memref<8x1xf32, #tpu.memory_space<vmem>>, vector<8x1xf32>
      tpu.vector_store %arg6[%c0_28, %c0_29], %42 {strides = array<i32>} : memref<8x1xf32, #tpu.memory_space<vmem>>, vector<8x1xf32>,
      %cst_30 = arith.constant 0.000000e+00 : f32
      %44 = vector.broadcast %cst_30 : f32 to vector<8x1xf32>
      %c0_31 = arith.constant 0 : index
      %c0_32 = arith.constant 0 : index
      %45 = vector.load %arg7[%c0_31, %c0_32] : memref<8x1xf32, #tpu.memory_space<vmem>>, vector<8x1xf32>
      tpu.vector_store %arg7[%c0_31, %c0_32], %44 {strides = array<i32>} : memref<8x1xf32, #tpu.memory_space<vmem>>, vector<8x1xf32>,
      %cst_33 = arith.constant 0.000000e+00 : f32
      %46 = vector.broadcast %cst_33 : f32 to vector<8x1xf32>
      %c0_34 = arith.constant 0 : index
      %c0_35 = arith.constant 0 : index
      %47 = vector.load %arg8[%c0_34, %c0_35] : memref<8x1xf32, #tpu.memory_space<vmem>>, vector<8x1xf32>
      tpu.vector_store %arg8[%c0_34, %c0_35], %46 {strides = array<i32>} : memref<8x1xf32, #tpu.memory_space<vmem>>, vector<8x1xf32>,
    } else {
    }
    %c0 = arith.constant 0 : index
    %c0_1 = arith.constant 0 : index
    %c0_2 = arith.constant 0 : index
    %3 = vector.load %arg2[%c0, %c0_1, %c0_2] : memref<1x8x32xbf16, #tpu.memory_space<vmem>>, vector<1x8x32xbf16>
    %4 = vector.shape_cast %3 : vector<1x8x32xbf16> to vector<8x32xbf16>
    %c0_3 = arith.constant 0 : index
    %c0_4 = arith.constant 0 : index
    %5 = vector.load %arg3[%c0_3, %c0_4] : memref<32x128xbf16, #tpu.memory_space<vmem>>, vector<32x128xbf16>
    %cst = arith.constant dense<0.000000e+00> : vector<8x128xf32>
    %6 = tpu.matmul %4, %5, %cst {dimension_numbers = #tpu.dot_dimension_numbers<[1], [0], [0], [1], [0, 0, 1, 1], [], []>} : vector<8x32xbf16>, vector<32x128xbf16>, vector<8x128xf32> -> vector<8x128xf32>
    %c0_5 = arith.constant 0 : index
    %c0_6 = arith.constant 0 : index
    %c0_7 = arith.constant 0 : index
    %7 = vector.load %arg4[%c0_5, %c0_6, %c0_7] : memref<1x8x1xi32, #tpu.memory_space<vmem>>, vector<1x8x1xi32>
    %8 = vector.shape_cast %7 : vector<1x8x1xi32> to vector<8x1xi32>
    %9 = tpu.iota {dimensions = array<i32: 1>} : vector<8x128xi32>
    %c128_i32 = arith.constant 128 : i32
    %10 = arith.muli %arg1, %c128_i32 : i32
    %11 = vector.broadcast %10 : i32 to vector<8x128xi32>
    %12 = arith.addi %9, %11 : vector<8x128xi32>
    %13 = vector.broadcast %8 : vector<8x1xi32> to vector<8x128xi32>
    %14 = arith.cmpi eq, %12, %13 : vector<8x128xi32>
    %cst_8 = arith.constant 0.000000e+00 : f32
    %15 = vector.broadcast %cst_8 : f32 to vector<8x128xf32>
    %16 = arith.select %14, %6, %15 : vector<8x128xi1>, vector<8x128xf32>
    %cst_9 = arith.constant dense<0.000000e+00> : vector<8xf32>
    %17 = vector.multi_reduction <add>, %16, %cst_9 [1] : vector<8x128xf32> to vector<8xf32>
    %18 = vector.shape_cast %17 : vector<8xf32> to vector<8x1xf32>
    %c0_10 = arith.constant 0 : index
    %c0_11 = arith.constant 0 : index
    %19 = vector.load %arg8[%c0_10, %c0_11] : memref<8x1xf32, #tpu.memory_space<vmem>>, vector<8x1xf32>
    %20 = arith.addf %19, %18 : vector<8x1xf32>
    %c0_12 = arith.constant 0 : index
    %c0_13 = arith.constant 0 : index
    %21 = vector.load %arg8[%c0_12, %c0_13] : memref<8x1xf32, #tpu.memory_space<vmem>>, vector<8x1xf32>
    tpu.vector_store %arg8[%c0_12, %c0_13], %20 {strides = array<i32>} : memref<8x1xf32, #tpu.memory_space<vmem>>, vector<8x1xf32>,
    %c0_14 = arith.constant 0 : index
    %c0_15 = arith.constant 0 : index
    %22 = vector.load %arg6[%c0_14, %c0_15] : memref<8x1xf32, #tpu.memory_space<vmem>>, vector<8x1xf32>
    %cst_16 = arith.constant dense<0xFF800000> : vector<8xf32>
    %23 = vector.multi_reduction <maximumf>, %6, %cst_16 [1] : vector<8x128xf32> to vector<8xf32>
    %24 = vector.shape_cast %23 : vector<8xf32> to vector<8x1xf32>
    %25 = arith.maximumf %22, %24 : vector<8x1xf32>
    %c0_17 = arith.constant 0 : index
    %c0_18 = arith.constant 0 : index
    %26 = vector.load %arg7[%c0_17, %c0_18] : memref<8x1xf32, #tpu.memory_space<vmem>>, vector<8x1xf32>
    %c0_19 = arith.constant 0 : index
    %c0_20 = arith.constant 0 : index
    %27 = vector.load %arg6[%c0_19, %c0_20] : memref<8x1xf32, #tpu.memory_space<vmem>>, vector<8x1xf32>
    %28 = arith.subf %27, %25 : vector<8x1xf32>
    %29 = math.exp %28 : vector<8x1xf32>
    %30 = arith.mulf %26, %29 : vector<8x1xf32>
    %31 = vector.broadcast %25 : vector<8x1xf32> to vector<8x128xf32>
    %32 = arith.subf %6, %31 : vector<8x128xf32>
    %33 = math.exp %32 : vector<8x128xf32>
    %cst_21 = arith.constant dense<0.000000e+00> : vector<8xf32>
    %34 = vector.multi_reduction <add>, %33, %cst_21 [1] : vector<8x128xf32> to vector<8xf32>
    %35 = vector.shape_cast %34 : vector<8xf32> to vector<8x1xf32>
    %36 = arith.addf %30, %35 : vector<8x1xf32>
    %c0_22 = arith.constant 0 : index
    %c0_23 = arith.constant 0 : index
    %37 = vector.load %arg7[%c0_22, %c0_23] : memref<8x1xf32, #tpu.memory_space<vmem>>, vector<8x1xf32>
    tpu.vector_store %arg7[%c0_22, %c0_23], %36 {strides = array<i32>} : memref<8x1xf32, #tpu.memory_space<vmem>>, vector<8x1xf32>,
    %c0_24 = arith.constant 0 : index
    %c0_25 = arith.constant 0 : index
    %38 = vector.load %arg6[%c0_24, %c0_25] : memref<8x1xf32, #tpu.memory_space<vmem>>, vector<8x1xf32>
    tpu.vector_store %arg6[%c0_24, %c0_25], %25 {strides = array<i32>} : memref<8x1xf32, #tpu.memory_space<vmem>>, vector<8x1xf32>,
    %c1_i32 = arith.constant 1 : i32
    %39 = arith.cmpi eq, %arg1, %c1_i32 : i32
    %40 = arith.extui %39 : i1 to i32
    %c0_i32_26 = arith.constant 0 : i32
    %41 = arith.cmpi ne, %40, %c0_i32_26 : i32
    scf.if %41 {
      %c0_27 = arith.constant 0 : index
      %c0_28 = arith.constant 0 : index
      %42 = vector.load %arg6[%c0_27, %c0_28] : memref<8x1xf32, #tpu.memory_space<vmem>>, vector<8x1xf32>
      %c0_29 = arith.constant 0 : index
      %c0_30 = arith.constant 0 : index
      %43 = vector.load %arg7[%c0_29, %c0_30] : memref<8x1xf32, #tpu.memory_space<vmem>>, vector<8x1xf32>
      %44 = math.log %43 : vector<8x1xf32>
      %45 = arith.addf %42, %44 : vector<8x1xf32>
      %c0_31 = arith.constant 0 : index
      %c0_32 = arith.constant 0 : index
      %46 = vector.load %arg8[%c0_31, %c0_32] : memref<8x1xf32, #tpu.memory_space<vmem>>, vector<8x1xf32>
      %47 = arith.subf %45, %46 : vector<8x1xf32>
      %c-1_i32 = arith.constant -1 : i32
      %48 = vector.broadcast %c-1_i32 : i32 to vector<8x1xi32>
      %49 = arith.cmpi ne, %8, %48 : vector<8x1xi32>
      %cst_33 = arith.constant 0.000000e+00 : f32
      %50 = vector.broadcast %cst_33 : f32 to vector<8x1xf32>
      %51 = arith.select %49, %47, %50 : vector<8x1xi1>, vector<8x1xf32>
      %52 = vector.shape_cast %51 : vector<8x1xf32> to vector<1x8x1xf32>
      %cst_34 = arith.constant dense<0.000000e+00> : vector<1xf32>
      %53 = vector.multi_reduction <add>, %52, %cst_34 [1, 2] : vector<1x8x1xf32> to vector<1xf32>
      %54 = vector.shape_cast %53 : vector<1xf32> to vector<1x1x1xf32>
      %55 = vector.extract %54[0, 0, 0] : f32 from vector<1x1x1xf32>
      %56 = vector.broadcast %55 : f32 to vector<1x1x1xf32>
      %c0_35 = arith.constant 0 : index
      %c0_36 = arith.constant 0 : index
      %c0_37 = arith.constant 0 : index
      %57 = vector.load %arg5[%c0_35, %c0_36, %c0_37] : memref<1x1x1xf32, #tpu.memory_space<vmem>>, vector<1x1x1xf32>
      tpu.vector_store %arg5[%c0_35, %c0_36, %c0_37], %56 {strides = array<i32>} : memref<1x1x1xf32, #tpu.memory_space<vmem>>, vector<1x1x1xf32>,
    } else {
    }
    return
  }
  func.func @transform_0(%arg0: i32, %arg1: i32) -> (i32, i32, i32) {
    %c0_i32 = arith.constant 0 : i32
    %c0_i32_0 = arith.constant 0 : i32
    %c0_i32_1 = arith.constant 0 : i32
    return %arg0, %c0_i32, %c0_i32_0 : i32, i32, i32
  }
  func.func @transform_1(%arg0: i32, %arg1: i32) -> (i32, i32) {
    %c0_i32 = arith.constant 0 : i32
    %c0_i32_0 = arith.constant 0 : i32
    return %c0_i32, %arg1 : i32, i32
  }
  func.func @transform_2(%arg0: i32, %arg1: i32) -> (i32, i32, i32) {
    %c0_i32 = arith.constant 0 : i32
    %c0_i32_0 = arith.constant 0 : i32
    %c0_i32_1 = arith.constant 0 : i32
    return %arg0, %c0_i32, %c0_i32_0 : i32, i32, i32
  }
  func.func @transform_3(%arg0: i32, %arg1: i32) -> (i32, i32, i32) {
    %c0_i32 = arith.constant 0 : i32
    %c0_i32_0 = arith.constant 0 : i32
    %c0_i32_1 = arith.constant 0 : i32
    return %arg0, %c0_i32, %c0_i32_0 : i32, i32, i32
  }
}

module attributes {stable_mosaic.version = 11 : i64} {
  func.func @_layer_kernel(%arg0: i32, %arg1: i32, %arg2: memref<1x8x32xf32, #tpu.memory_space<vmem>>, %arg3: memref<1x1x32xf32, #tpu.memory_space<vmem>>, %arg4: memref<1x32x96xbf16, #tpu.memory_space<vmem>>, %arg5: memref<1x32x32xbf16, #tpu.memory_space<vmem>>, %arg6: memref<1x2x1x1xf32, #tpu.memory_space<vmem>>, %arg7: memref<1x1x32xf32, #tpu.memory_space<vmem>>, %arg8: memref<1x32x128xbf16, #tpu.memory_space<vmem>>, %arg9: memref<1x1x128xf32, #tpu.memory_space<vmem>>, %arg10: memref<1x128x32xbf16, #tpu.memory_space<vmem>>, %arg11: memref<1x1x32xf32, #tpu.memory_space<vmem>>, %arg12: memref<1x1x32xf32, #tpu.memory_space<vmem>>, %arg13: memref<1x1x32x16xf32, #tpu.memory_space<vmem>>, %arg14: memref<1x1x2x16xf32, #tpu.memory_space<vmem>>, %arg15: memref<1x8x32xbf16, #tpu.memory_space<vmem>>, %arg16: memref<1x1x32x16xf32, #tpu.memory_space<vmem>>, %arg17: memref<1x1x2x16xf32, #tpu.memory_space<vmem>>, %arg18: memref<8x32xf32, #tpu.memory_space<vmem>>) attributes {dimension_semantics = [#tpu.dimension_semantics<parallel>, #tpu.dimension_semantics<arbitrary>], iteration_bounds = array<i64: 2, 2>, scalar_prefetch = 0 : i64, scratch_operands = 1 : i64, tpu.core_type = #tpu.core_type<tc>, window_params = [{transform_indices = @transform_0, window_bounds = array<i64: 1, 8, 32>}, {transform_indices = @transform_1, window_bounds = array<i64: 1, 1, 32>}, {transform_indices = @transform_2, window_bounds = array<i64: 1, 32, 96>}, {transform_indices = @transform_3, window_bounds = array<i64: 1, 32, 32>}, {transform_indices = @transform_4, window_bounds = array<i64: 1, 2, 1, 1>}, {transform_indices = @transform_5, window_bounds = array<i64: 1, 1, 32>}, {transform_indices = @transform_6, window_bounds = array<i64: 1, 32, 128>}, {transform_indices = @transform_7, window_bounds = array<i64: 1, 1, 128>}, {transform_indices = @transform_8, window_bounds = array<i64: 1, 128, 32>}, {transform_indices = @transform_9, window_bounds = array<i64: 1, 1, 32>}, {pipeline_mode = #tpu.pipeline_mode<synchronous>, transform_indices = @transform_10, window_bounds = array<i64: 1, 1, 32>}, {transform_indices = @transform_11, window_bounds = array<i64: 1, 1, 32, 16>}, {transform_indices = @transform_12, window_bounds = array<i64: 1, 1, 2, 16>}, {transform_indices = @transform_13, window_bounds = array<i64: 1, 8, 32>}, {transform_indices = @transform_14, window_bounds = array<i64: 1, 1, 32, 16>}, {transform_indices = @transform_15, window_bounds = array<i64: 1, 1, 2, 16>}]} {
    %c0_i32 = arith.constant 0 : i32
    %0 = arith.cmpi eq, %arg1, %c0_i32 : i32
    %1 = arith.extui %0 : i1 to i32
    %c0_i32_0 = arith.constant 0 : i32
    %2 = arith.cmpi ne, %1, %c0_i32_0 : i32
    scf.if %2 {
      %c0_89 = arith.constant 0 : index
      %c0_90 = arith.constant 0 : index
      %c0_91 = arith.constant 0 : index
      %187 = vector.load %arg2[%c0_89, %c0_90, %c0_91] : memref<1x8x32xf32, #tpu.memory_space<vmem>>, vector<1x8x32xf32>
      %188 = vector.shape_cast %187 : vector<1x8x32xf32> to vector<8x32xf32>
      %c0_92 = arith.constant 0 : index
      %c0_93 = arith.constant 0 : index
      %189 = vector.load %arg18[%c0_92, %c0_93] : memref<8x32xf32, #tpu.memory_space<vmem>>, vector<8x32xf32>
      tpu.vector_store %arg18[%c0_92, %c0_93], %188 {strides = array<i32>} : memref<8x32xf32, #tpu.memory_space<vmem>>, vector<8x32xf32>,
    } else {
    }
    %c0 = arith.constant 0 : index
    %c0_1 = arith.constant 0 : index
    %3 = vector.load %arg18[%c0, %c0_1] : memref<8x32xf32, #tpu.memory_space<vmem>>, vector<8x32xf32>
    %4 = tpu.iota {dimensions = array<i32: 0>} : vector<8x8xi32>
    %5 = tpu.iota {dimensions = array<i32: 1>} : vector<8x8xi32>
    %6 = arith.cmpi sle, %5, %4 : vector<8x8xi32>
    %7 = vector.shape_cast %6 : vector<8x8xi1> to vector<1x8x8xi1>
    %c0_2 = arith.constant 0 : index
    %c0_3 = arith.constant 0 : index
    %c0_4 = arith.constant 0 : index
    %8 = vector.load %arg3[%c0_2, %c0_3, %c0_4] : memref<1x1x32xf32, #tpu.memory_space<vmem>>, vector<1x1x32xf32>
    %9 = vector.shape_cast %8 : vector<1x1x32xf32> to vector<1x32xf32>
    %10 = arith.mulf %3, %3 : vector<8x32xf32>
    %cst = arith.constant dense<0.000000e+00> : vector<8xf32>
    %11 = vector.multi_reduction <add>, %10, %cst [1] : vector<8x32xf32> to vector<8xf32>
    %12 = vector.shape_cast %11 : vector<8xf32> to vector<8x1xf32>
    %cst_5 = arith.constant 1.000000e-24 : f32
    %13 = vector.broadcast %cst_5 : f32 to vector<8x1xf32>
    %14 = arith.maximumf %12, %13 : vector<8x1xf32>
    %15 = math.rsqrt %14 : vector<8x1xf32>
    %16 = vector.broadcast %15 : vector<8x1xf32> to vector<8x32xf32>
    %17 = arith.mulf %3, %16 : vector<8x32xf32>
    %cst_6 = arith.constant 3.200000e+01 : f32
    %18 = math.sqrt %cst_6 : f32
    %19 = vector.broadcast %18 : f32 to vector<8x32xf32>
    %20 = arith.mulf %17, %19 : vector<8x32xf32>
    %21 = vector.broadcast %9 : vector<1x32xf32> to vector<8x32xf32>
    %22 = arith.mulf %20, %21 : vector<8x32xf32>
    %23 = arith.truncf %22 : vector<8x32xf32> to vector<8x32xbf16>
    %c0_7 = arith.constant 0 : index
    %c0_8 = arith.constant 0 : index
    %c0_9 = arith.constant 0 : index
    %24 = vector.load %arg4[%c0_7, %c0_8, %c0_9] : memref<1x32x96xbf16, #tpu.memory_space<vmem>>, vector<1x32x96xbf16>
    %25 = vector.shape_cast %24 : vector<1x32x96xbf16> to vector<32x96xbf16>
    %cst_10 = arith.constant dense<0.000000e+00> : vector<8x96xf32>
    %26 = tpu.matmul %23, %25, %cst_10 {dimension_numbers = #tpu.dot_dimension_numbers<[1], [0], [0], [1], [0, 0, 1, 1], [], []>} : vector<8x32xbf16>, vector<32x96xbf16>, vector<8x96xf32> -> vector<8x96xf32>
    %27 = vector.extract_strided_slice %26 {offsets = [0, 0], sizes = [8, 32], strides = [1, 1]} : vector<8x96xf32> to vector<8x32xf32>
    %28 = vector.extract_strided_slice %26 {offsets = [0, 32], sizes = [8, 32], strides = [1, 1]} : vector<8x96xf32> to vector<8x32xf32>
    %29 = vector.extract_strided_slice %26 {offsets = [0, 64], sizes = [8, 32], strides = [1, 1]} : vector<8x96xf32> to vector<8x32xf32>
    %30 = vector.extract_strided_slice %27 {offsets = [0, 0], sizes = [8, 16], strides = [1, 1]} : vector<8x32xf32> to vector<8x16xf32>
    %31 = vector.extract_strided_slice %27 {offsets = [0, 16], sizes = [8, 16], strides = [1, 1]} : vector<8x32xf32> to vector<8x16xf32>
    %32 = vector.shape_cast %30 : vector<8x16xf32> to vector<1x8x16xf32>
    %33 = vector.shape_cast %31 : vector<8x16xf32> to vector<1x8x16xf32>
    %34 = tpu.concatenate %32, %33 in 0 : vector<1x8x16xf32>, vector<1x8x16xf32> -> vector<2x8x16xf32>
    %35 = vector.extract_strided_slice %28 {offsets = [0, 0], sizes = [8, 16], strides = [1, 1]} : vector<8x32xf32> to vector<8x16xf32>
    %36 = vector.extract_strided_slice %28 {offsets = [0, 16], sizes = [8, 16], strides = [1, 1]} : vector<8x32xf32> to vector<8x16xf32>
    %37 = vector.shape_cast %35 : vector<8x16xf32> to vector<1x8x16xf32>
    %38 = vector.shape_cast %36 : vector<8x16xf32> to vector<1x8x16xf32>
    %39 = tpu.concatenate %37, %38 in 0 : vector<1x8x16xf32>, vector<1x8x16xf32> -> vector<2x8x16xf32>
    %40 = vector.extract_strided_slice %29 {offsets = [0, 0], sizes = [8, 16], strides = [1, 1]} : vector<8x32xf32> to vector<8x16xf32>
    %41 = vector.extract_strided_slice %29 {offsets = [0, 16], sizes = [8, 16], strides = [1, 1]} : vector<8x32xf32> to vector<8x16xf32>
    %42 = vector.shape_cast %40 : vector<8x16xf32> to vector<1x8x16xf32>
    %43 = vector.shape_cast %41 : vector<8x16xf32> to vector<1x8x16xf32>
    %44 = tpu.concatenate %42, %43 in 0 : vector<1x8x16xf32>, vector<1x8x16xf32> -> vector<2x8x16xf32>
    %cst_11 = arith.constant 2.500000e-01 : f32
    %45 = vector.broadcast %cst_11 : f32 to vector<2x8x16xf32>
    %46 = arith.mulf %34, %45 : vector<2x8x16xf32>
    %47 = arith.truncf %46 : vector<2x8x16xf32> to vector<2x8x16xbf16>
    %48 = arith.truncf %39 : vector<2x8x16xf32> to vector<2x8x16xbf16>
    "tpu.trace_start"() <{level = 10 : i32, message = "hld,hmd->hlm"}> : () -> ()
    %cst_12 = arith.constant dense<0.000000e+00> : vector<2x8x8xf32>
    %49 = tpu.matmul %47, %48, %cst_12 {dimension_numbers = #tpu.dot_dimension_numbers<[2], [2], [1], [1], [0, 0, 0, 1, 1, 1], [0], [0]>} : vector<2x8x16xbf16>, vector<2x8x16xbf16>, vector<2x8x8xf32> -> vector<2x8x8xf32>
    %cst_13 = arith.constant -1.000000e+30 : f32
    "tpu.trace_stop"() : () -> ()
    %50 = vector.shape_cast %7 : vector<1x8x8xi1> to vector<1x8x8xi1>
    %51 = vector.broadcast %50 : vector<1x8x8xi1> to vector<2x8x8xi1>
    %52 = vector.broadcast %cst_13 : f32 to vector<2x8x8xf32>
    %53 = arith.select %51, %49, %52 : vector<2x8x8xi1>, vector<2x8x8xf32>
    %cst_14 = arith.constant dense<0xFF800000> : vector<2x8xf32>
    %54 = vector.multi_reduction <maximumf>, %53, %cst_14 [2] : vector<2x8x8xf32> to vector<2x8xf32>
    %55 = vector.shape_cast %54 : vector<2x8xf32> to vector<2x8x1xf32>
    %56 = vector.broadcast %55 : vector<2x8x1xf32> to vector<2x8x8xf32>
    %57 = arith.subf %53, %56 : vector<2x8x8xf32>
    %58 = math.exp %57 : vector<2x8x8xf32>
    %cst_15 = arith.constant dense<0.000000e+00> : vector<2x8xf32>
    %59 = vector.multi_reduction <add>, %58, %cst_15 [2] : vector<2x8x8xf32> to vector<2x8xf32>
    %60 = vector.shape_cast %59 : vector<2x8xf32> to vector<2x8x1xf32>
    %61 = tpu.reciprocal %60 {approx = true} : vector<2x8x1xf32> -> vector<2x8x1xf32>
    %62 = vector.broadcast %61 : vector<2x8x1xf32> to vector<2x8x8xf32>
    %63 = arith.mulf %58, %62 : vector<2x8x8xf32>
    %64 = arith.truncf %63 : vector<2x8x8xf32> to vector<2x8x8xbf16>
    %65 = arith.truncf %44 : vector<2x8x16xf32> to vector<2x8x16xbf16>
    "tpu.trace_start"() <{level = 10 : i32, message = "hlm,hmd->hld"}> : () -> ()
    %cst_16 = arith.constant dense<0.000000e+00> : vector<2x8x16xf32>
    %66 = tpu.matmul %64, %65, %cst_16 {dimension_numbers = #tpu.dot_dimension_numbers<[2], [1], [1], [2], [0, 0, 0, 1, 1, 2], [0], [0]>} : vector<2x8x8xbf16>, vector<2x8x16xbf16>, vector<2x8x16xf32> -> vector<2x8x16xf32>
    "tpu.trace_stop"() : () -> ()
    %c0_17 = arith.constant 0 : index
    %c0_18 = arith.constant 0 : index
    %c0_19 = arith.constant 0 : index
    %c0_20 = arith.constant 0 : index
    %67 = vector.load %arg6[%c0_17, %c0_18, %c0_19, %c0_20] : memref<1x2x1x1xf32, #tpu.memory_space<vmem>>, vector<1x2x1x1xf32>
    %68 = vector.shape_cast %67 : vector<1x2x1x1xf32> to vector<2x1x1xf32>
    %69 = arith.negf %68 : vector<2x1x1xf32>
    %70 = math.exp %69 : vector<2x1x1xf32>
    %cst_21 = arith.constant 1.000000e+00 : f32
    %71 = vector.broadcast %cst_21 : f32 to vector<2x1x1xf32>
    %72 = arith.addf %71, %70 : vector<2x1x1xf32>
    %73 = arith.divf %71, %72 : vector<2x1x1xf32>
    %cst_22 = arith.constant 0.000000e+00 : f32
    %74 = vector.broadcast %cst_22 : f32 to vector<2x8x16xf32>
    %75 = arith.cmpf ogt, %34, %74 : vector<2x8x16xf32>
    %76 = math.exp %34 : vector<2x8x16xf32>
    %cst_23 = arith.constant 1.000000e+00 : f32
    %77 = vector.broadcast %cst_23 : f32 to vector<2x8x16xf32>
    %78 = arith.subf %76, %77 : vector<2x8x16xf32>
    %79 = arith.select %75, %34, %78 : vector<2x8x16xi1>, vector<2x8x16xf32>
    %cst_24 = arith.constant 1.000000e+00 : f32
    %80 = vector.broadcast %cst_24 : f32 to vector<2x8x16xf32>
    %81 = arith.addf %79, %80 : vector<2x8x16xf32>
    %c0_25 = arith.constant 0 : index
    %c0_26 = arith.constant 0 : index
    %c0_27 = arith.constant 0 : index
    %c0_28 = arith.constant 0 : index
    %82 = vector.load %arg13[%c0_25, %c0_26, %c0_27, %c0_28] : memref<1x1x32x16xf32, #tpu.memory_space<vmem>>, vector<1x1x32x16xf32>
    %83 = vector.shape_cast %82 : vector<1x1x32x16xf32> to vector<32x16xf32>
    %84 = vector.shape_cast %83 : vector<32x16xf32> to vector<2x16x16xf32>
    %c0_29 = arith.constant 0 : index
    %c0_30 = arith.constant 0 : index
    %c0_31 = arith.constant 0 : index
    %c0_32 = arith.constant 0 : index
    %85 = vector.load %arg14[%c0_29, %c0_30, %c0_31, %c0_32] : memref<1x1x2x16xf32, #tpu.memory_space<vmem>>, vector<1x1x2x16xf32>
    %86 = vector.shape_cast %85 : vector<1x1x2x16xf32> to vector<2x16xf32>
    "tpu.trace_start"() <{level = 10 : i32, message = "hld,hde->hle"}> : () -> ()
    %cst_33 = arith.constant dense<0.000000e+00> : vector<2x8x16xf32>
    %87 = tpu.matmul %81, %84, %cst_33 {dimension_numbers = #tpu.dot_dimension_numbers<[2], [1], [1], [2], [0, 0, 0, 1, 1, 2], [0], [0]>} : vector<2x8x16xf32>, vector<2x16x16xf32>, vector<2x8x16xf32> -> vector<2x8x16xf32>
    "tpu.trace_stop"() : () -> ()
    %88 = vector.shape_cast %86 : vector<2x16xf32> to vector<2x1x16xf32>
    %89 = vector.broadcast %88 : vector<2x1x16xf32> to vector<2x8x16xf32>
    %90 = arith.mulf %81, %89 : vector<2x8x16xf32>
    %cst_34 = arith.constant dense<0.000000e+00> : vector<2x8xf32>
    %91 = vector.multi_reduction <add>, %90, %cst_34 [2] : vector<2x8x16xf32> to vector<2x8xf32>
    %92 = vector.shape_cast %91 : vector<2x8xf32> to vector<2x8x1xf32>
    %cst_35 = arith.constant 1.000000e-10 : f32
    %93 = vector.broadcast %cst_35 : f32 to vector<2x8x1xf32>
    %94 = arith.maximumf %92, %93 : vector<2x8x1xf32>
    %95 = tpu.reciprocal %94 {approx = true} : vector<2x8x1xf32> -> vector<2x8x1xf32>
    %96 = vector.broadcast %95 : vector<2x8x1xf32> to vector<2x8x16xf32>
    %97 = arith.mulf %87, %96 : vector<2x8x16xf32>
    %98 = vector.broadcast %73 : vector<2x1x1xf32> to vector<2x8x16xf32>
    %99 = arith.mulf %66, %98 : vector<2x8x16xf32>
    %cst_36 = arith.constant 1.000000e+00 : f32
    %100 = vector.broadcast %cst_36 : f32 to vector<2x1x1xf32>
    %101 = arith.subf %100, %73 : vector<2x1x1xf32>
    %102 = vector.broadcast %101 : vector<2x1x1xf32> to vector<2x8x16xf32>
    %103 = arith.mulf %97, %102 : vector<2x8x16xf32>
    %104 = arith.addf %99, %103 : vector<2x8x16xf32>
    %105 = vector.extract_strided_slice %104 {offsets = [0, 0, 0], sizes = [1, 8, 16], strides = [1, 1, 1]} : vector<2x8x16xf32> to vector<1x8x16xf32>
    %106 = vector.shape_cast %105 : vector<1x8x16xf32> to vector<8x16xf32>
    %107 = vector.extract_strided_slice %104 {offsets = [1, 0, 0], sizes = [1, 8, 16], strides = [1, 1, 1]} : vector<2x8x16xf32> to vector<1x8x16xf32>
    %108 = vector.shape_cast %107 : vector<1x8x16xf32> to vector<8x16xf32>
    %109 = tpu.concatenate %106, %108 in 1 : vector<8x16xf32>, vector<8x16xf32> -> vector<8x32xf32>
    %110 = arith.truncf %109 : vector<8x32xf32> to vector<8x32xbf16>
    %c0_37 = arith.constant 0 : index
    %c0_38 = arith.constant 0 : index
    %c0_39 = arith.constant 0 : index
    %111 = vector.load %arg5[%c0_37, %c0_38, %c0_39] : memref<1x32x32xbf16, #tpu.memory_space<vmem>>, vector<1x32x32xbf16>
    %112 = vector.shape_cast %111 : vector<1x32x32xbf16> to vector<32x32xbf16>
    %cst_40 = arith.constant dense<0.000000e+00> : vector<8x32xf32>
    %113 = tpu.matmul %110, %112, %cst_40 {dimension_numbers = #tpu.dot_dimension_numbers<[1], [0], [0], [1], [0, 0, 1, 1], [], []>} : vector<8x32xbf16>, vector<32x32xbf16>, vector<8x32xf32> -> vector<8x32xf32>
    %114 = arith.addf %3, %113 : vector<8x32xf32>
    %cst_41 = arith.constant 0.000000e+00 : f32
    %115 = vector.broadcast %cst_41 : f32 to vector<2x8x16xf32>
    %116 = arith.cmpf ogt, %39, %115 : vector<2x8x16xf32>
    %117 = math.exp %39 : vector<2x8x16xf32>
    %cst_42 = arith.constant 1.000000e+00 : f32
    %118 = vector.broadcast %cst_42 : f32 to vector<2x8x16xf32>
    %119 = arith.subf %117, %118 : vector<2x8x16xf32>
    %120 = arith.select %116, %39, %119 : vector<2x8x16xi1>, vector<2x8x16xf32>
    %cst_43 = arith.constant 1.000000e+00 : f32
    %121 = vector.broadcast %cst_43 : f32 to vector<2x8x16xf32>
    %122 = arith.addf %120, %121 : vector<2x8x16xf32>
    "tpu.trace_start"() <{level = 10 : i32, message = "hld,hle->hde"}> : () -> ()
    %cst_44 = arith.constant dense<0.000000e+00> : vector<2x16x16xf32>
    %123 = tpu.matmul %122, %44, %cst_44 {dimension_numbers = #tpu.dot_dimension_numbers<[1], [1], [2], [2], [0, 0, 0, 2, 1, 2], [0], [0]>} : vector<2x8x16xf32>, vector<2x8x16xf32>, vector<2x16x16xf32> -> vector<2x16x16xf32>
    "tpu.trace_stop"() : () -> ()
    %c0_45 = arith.constant 0 : index
    %c0_46 = arith.constant 0 : index
    %c0_47 = arith.constant 0 : index
    %c0_48 = arith.constant 0 : index
    %124 = vector.load %arg13[%c0_45, %c0_46, %c0_47, %c0_48] : memref<1x1x32x16xf32, #tpu.memory_space<vmem>>, vector<1x1x32x16xf32>
    %125 = vector.shape_cast %124 : vector<1x1x32x16xf32> to vector<32x16xf32>
    %126 = vector.shape_cast %123 : vector<2x16x16xf32> to vector<32x16xf32>
    %127 = arith.addf %125, %126 : vector<32x16xf32>
    %c0_49 = arith.constant 0 : index
    %c0_50 = arith.constant 0 : index
    %c0_51 = arith.constant 0 : index
    %c0_52 = arith.constant 0 : index
    %128 = vector.load %arg16[%c0_49, %c0_50, %c0_51, %c0_52] : memref<1x1x32x16xf32, #tpu.memory_space<vmem>>, vector<1x1x32x16xf32>
    %129 = vector.shape_cast %128 : vector<1x1x32x16xf32> to vector<32x16xf32>
    %130 = vector.shape_cast %127 : vector<32x16xf32> to vector<1x1x32x16xf32>
    tpu.vector_store %arg16[%c0_49, %c0_50, %c0_51, %c0_52], %130 {strides = array<i32>} : memref<1x1x32x16xf32, #tpu.memory_space<vmem>>, vector<1x1x32x16xf32>,
    %c0_53 = arith.constant 0 : index
    %c0_54 = arith.constant 0 : index
    %c0_55 = arith.constant 0 : index
    %c0_56 = arith.constant 0 : index
    %131 = vector.load %arg14[%c0_53, %c0_54, %c0_55, %c0_56] : memref<1x1x2x16xf32, #tpu.memory_space<vmem>>, vector<1x1x2x16xf32>
    %132 = vector.shape_cast %131 : vector<1x1x2x16xf32> to vector<2x16xf32>
    %cst_57 = arith.constant dense<0.000000e+00> : vector<2x16xf32>
    %133 = vector.multi_reduction <add>, %122, %cst_57 [1] : vector<2x8x16xf32> to vector<2x16xf32>
    %134 = arith.addf %132, %133 : vector<2x16xf32>
    %c0_58 = arith.constant 0 : index
    %c0_59 = arith.constant 0 : index
    %c0_60 = arith.constant 0 : index
    %c0_61 = arith.constant 0 : index
    %135 = vector.load %arg17[%c0_58, %c0_59, %c0_60, %c0_61] : memref<1x1x2x16xf32, #tpu.memory_space<vmem>>, vector<1x1x2x16xf32>
    %136 = vector.shape_cast %135 : vector<1x1x2x16xf32> to vector<2x16xf32>
    %137 = vector.shape_cast %134 : vector<2x16xf32> to vector<1x1x2x16xf32>
    tpu.vector_store %arg17[%c0_58, %c0_59, %c0_60, %c0_61], %137 {strides = array<i32>} : memref<1x1x2x16xf32, #tpu.memory_space<vmem>>, vector<1x1x2x16xf32>,
    %c0_62 = arith.constant 0 : index
    %c0_63 = arith.constant 0 : index
    %c0_64 = arith.constant 0 : index
    %138 = vector.load %arg7[%c0_62, %c0_63, %c0_64] : memref<1x1x32xf32, #tpu.memory_space<vmem>>, vector<1x1x32xf32>
    %139 = vector.shape_cast %138 : vector<1x1x32xf32> to vector<1x32xf32>
    %140 = arith.mulf %114, %114 : vector<8x32xf32>
    %cst_65 = arith.constant dense<0.000000e+00> : vector<8xf32>
    %141 = vector.multi_reduction <add>, %140, %cst_65 [1] : vector<8x32xf32> to vector<8xf32>
    %142 = vector.shape_cast %141 : vector<8xf32> to vector<8x1xf32>
    %cst_66 = arith.constant 1.000000e-24 : f32
    %143 = vector.broadcast %cst_66 : f32 to vector<8x1xf32>
    %144 = arith.maximumf %142, %143 : vector<8x1xf32>
    %145 = math.rsqrt %144 : vector<8x1xf32>
    %146 = vector.broadcast %145 : vector<8x1xf32> to vector<8x32xf32>
    %147 = arith.mulf %114, %146 : vector<8x32xf32>
    %cst_67 = arith.constant 3.200000e+01 : f32
    %148 = math.sqrt %cst_67 : f32
    %149 = vector.broadcast %148 : f32 to vector<8x32xf32>
    %150 = arith.mulf %147, %149 : vector<8x32xf32>
    %151 = vector.broadcast %139 : vector<1x32xf32> to vector<8x32xf32>
    %152 = arith.mulf %150, %151 : vector<8x32xf32>
    %153 = arith.truncf %152 : vector<8x32xf32> to vector<8x32xbf16>
    %c0_68 = arith.constant 0 : index
    %c0_69 = arith.constant 0 : index
    %c0_70 = arith.constant 0 : index
    %154 = vector.load %arg8[%c0_68, %c0_69, %c0_70] : memref<1x32x128xbf16, #tpu.memory_space<vmem>>, vector<1x32x128xbf16>
    %155 = vector.shape_cast %154 : vector<1x32x128xbf16> to vector<32x128xbf16>
    %cst_71 = arith.constant dense<0.000000e+00> : vector<8x128xf32>
    %156 = tpu.matmul %153, %155, %cst_71 {dimension_numbers = #tpu.dot_dimension_numbers<[1], [0], [0], [1], [0, 0, 1, 1], [], []>} : vector<8x32xbf16>, vector<32x128xbf16>, vector<8x128xf32> -> vector<8x128xf32>
    %c0_72 = arith.constant 0 : index
    %c0_73 = arith.constant 0 : index
    %c0_74 = arith.constant 0 : index
    %157 = vector.load %arg9[%c0_72, %c0_73, %c0_74] : memref<1x1x128xf32, #tpu.memory_space<vmem>>, vector<1x1x128xf32>
    %158 = vector.shape_cast %157 : vector<1x1x128xf32> to vector<1x128xf32>
    %159 = vector.broadcast %158 : vector<1x128xf32> to vector<8x128xf32>
    %160 = arith.addf %156, %159 : vector<8x128xf32>
    %161 = arith.mulf %160, %160 : vector<8x128xf32>
    %162 = arith.mulf %160, %161 : vector<8x128xf32>
    %cst_75 = arith.constant 4.471500e-02 : f32
    %163 = vector.broadcast %cst_75 : f32 to vector<8x128xf32>
    %164 = arith.mulf %163, %162 : vector<8x128xf32>
    %165 = arith.addf %160, %164 : vector<8x128xf32>
    %cst_76 = arith.constant 0.797884583 : f32
    %166 = vector.broadcast %cst_76 : f32 to vector<8x128xf32>
    %167 = arith.mulf %166, %165 : vector<8x128xf32>
    %168 = math.tanh %167 : vector<8x128xf32>
    %cst_77 = arith.constant 1.000000e+00 : f32
    %169 = vector.broadcast %cst_77 : f32 to vector<8x128xf32>
    %170 = arith.addf %169, %168 : vector<8x128xf32>
    %cst_78 = arith.constant 5.000000e-01 : f32
    %171 = vector.broadcast %cst_78 : f32 to vector<8x128xf32>
    %172 = arith.mulf %171, %170 : vector<8x128xf32>
    %173 = arith.mulf %160, %172 : vector<8x128xf32>
    %174 = arith.truncf %173 : vector<8x128xf32> to vector<8x128xbf16>
    %c0_79 = arith.constant 0 : index
    %c0_80 = arith.constant 0 : index
    %c0_81 = arith.constant 0 : index
    %175 = vector.load %arg10[%c0_79, %c0_80, %c0_81] : memref<1x128x32xbf16, #tpu.memory_space<vmem>>, vector<1x128x32xbf16>
    %176 = vector.shape_cast %175 : vector<1x128x32xbf16> to vector<128x32xbf16>
    %cst_82 = arith.constant dense<0.000000e+00> : vector<8x32xf32>
    %177 = tpu.matmul %174, %176, %cst_82 {dimension_numbers = #tpu.dot_dimension_numbers<[1], [0], [0], [1], [0, 0, 1, 1], [], []>} : vector<8x128xbf16>, vector<128x32xbf16>, vector<8x32xf32> -> vector<8x32xf32>
    %c0_83 = arith.constant 0 : index
    %c0_84 = arith.constant 0 : index
    %c0_85 = arith.constant 0 : index
    %178 = vector.load %arg11[%c0_83, %c0_84, %c0_85] : memref<1x1x32xf32, #tpu.memory_space<vmem>>, vector<1x1x32xf32>
    %179 = vector.shape_cast %178 : vector<1x1x32xf32> to vector<1x32xf32>
    %180 = vector.broadcast %179 : vector<1x32xf32> to vector<8x32xf32>
    %181 = arith.addf %177, %180 : vector<8x32xf32>
    %182 = arith.addf %114, %181 : vector<8x32xf32>
    %c0_86 = arith.constant 0 : index
    %c0_87 = arith.constant 0 : index
    %183 = vector.load %arg18[%c0_86, %c0_87] : memref<8x32xf32, #tpu.memory_space<vmem>>, vector<8x32xf32>
    tpu.vector_store %arg18[%c0_86, %c0_87], %182 {strides = array<i32>} : memref<8x32xf32, #tpu.memory_space<vmem>>, vector<8x32xf32>,
    %c1_i32 = arith.constant 1 : i32
    %184 = arith.cmpi eq, %arg1, %c1_i32 : i32
    %185 = arith.extui %184 : i1 to i32
    %c0_i32_88 = arith.constant 0 : i32
    %186 = arith.cmpi ne, %185, %c0_i32_88 : i32
    scf.if %186 {
      %c0_89 = arith.constant 0 : index
      %c0_90 = arith.constant 0 : index
      %c0_91 = arith.constant 0 : index
      %187 = vector.load %arg12[%c0_89, %c0_90, %c0_91] : memref<1x1x32xf32, #tpu.memory_space<vmem>>, vector<1x1x32xf32>
      %188 = vector.shape_cast %187 : vector<1x1x32xf32> to vector<1x32xf32>
      %189 = arith.mulf %182, %182 : vector<8x32xf32>
      %cst_92 = arith.constant dense<0.000000e+00> : vector<8xf32>
      %190 = vector.multi_reduction <add>, %189, %cst_92 [1] : vector<8x32xf32> to vector<8xf32>
      %191 = vector.shape_cast %190 : vector<8xf32> to vector<8x1xf32>
      %cst_93 = arith.constant 1.000000e-24 : f32
      %192 = vector.broadcast %cst_93 : f32 to vector<8x1xf32>
      %193 = arith.maximumf %191, %192 : vector<8x1xf32>
      %194 = math.rsqrt %193 : vector<8x1xf32>
      %195 = vector.broadcast %194 : vector<8x1xf32> to vector<8x32xf32>
      %196 = arith.mulf %182, %195 : vector<8x32xf32>
      %cst_94 = arith.constant 3.200000e+01 : f32
      %197 = math.sqrt %cst_94 : f32
      %198 = vector.broadcast %197 : f32 to vector<8x32xf32>
      %199 = arith.mulf %196, %198 : vector<8x32xf32>
      %200 = vector.broadcast %188 : vector<1x32xf32> to vector<8x32xf32>
      %201 = arith.mulf %199, %200 : vector<8x32xf32>
      %202 = arith.truncf %201 : vector<8x32xf32> to vector<8x32xbf16>
      %c0_95 = arith.constant 0 : index
      %c0_96 = arith.constant 0 : index
      %c0_97 = arith.constant 0 : index
      %203 = vector.load %arg15[%c0_95, %c0_96, %c0_97] : memref<1x8x32xbf16, #tpu.memory_space<vmem>>, vector<1x8x32xbf16>
      %204 = vector.shape_cast %203 : vector<1x8x32xbf16> to vector<8x32xbf16>
      %205 = vector.shape_cast %202 : vector<8x32xbf16> to vector<1x8x32xbf16>
      tpu.vector_store %arg15[%c0_95, %c0_96, %c0_97], %205 {strides = array<i32>} : memref<1x8x32xbf16, #tpu.memory_space<vmem>>, vector<1x8x32xbf16>,
    } else {
    }
    return
  }
  func.func @transform_0(%arg0: i32, %arg1: i32) -> (i32, i32, i32) {
    %c0_i32 = arith.constant 0 : i32
    %c0_i32_0 = arith.constant 0 : i32
    %c0_i32_1 = arith.constant 0 : i32
    return %arg0, %c0_i32, %c0_i32_0 : i32, i32, i32
  }
  func.func @transform_1(%arg0: i32, %arg1: i32) -> (i32, i32, i32) {
    %c0_i32 = arith.constant 0 : i32
    %c0_i32_0 = arith.constant 0 : i32
    %c0_i32_1 = arith.constant 0 : i32
    return %arg1, %c0_i32, %c0_i32_0 : i32, i32, i32
  }
  func.func @transform_2(%arg0: i32, %arg1: i32) -> (i32, i32, i32) {
    %c0_i32 = arith.constant 0 : i32
    %c0_i32_0 = arith.constant 0 : i32
    %c0_i32_1 = arith.constant 0 : i32
    return %arg1, %c0_i32, %c0_i32_0 : i32, i32, i32
  }
  func.func @transform_3(%arg0: i32, %arg1: i32) -> (i32, i32, i32) {
    %c0_i32 = arith.constant 0 : i32
    %c0_i32_0 = arith.constant 0 : i32
    %c0_i32_1 = arith.constant 0 : i32
    return %arg1, %c0_i32, %c0_i32_0 : i32, i32, i32
  }
  func.func @transform_4(%arg0: i32, %arg1: i32) -> (i32, i32, i32, i32) {
    %c0_i32 = arith.constant 0 : i32
    %c0_i32_0 = arith.constant 0 : i32
    %c0_i32_1 = arith.constant 0 : i32
    %c0_i32_2 = arith.constant 0 : i32
    return %arg1, %c0_i32, %c0_i32_0, %c0_i32_1 : i32, i32, i32, i32
  }
  func.func @transform_5(%arg0: i32, %arg1: i32) -> (i32, i32, i32) {
    %c0_i32 = arith.constant 0 : i32
    %c0_i32_0 = arith.constant 0 : i32
    %c0_i32_1 = arith.constant 0 : i32
    return %arg1, %c0_i32, %c0_i32_0 : i32, i32, i32
  }
  func.func @transform_6(%arg0: i32, %arg1: i32) -> (i32, i32, i32) {
    %c0_i32 = arith.constant 0 : i32
    %c0_i32_0 = arith.constant 0 : i32
    %c0_i32_1 = arith.constant 0 : i32
    return %arg1, %c0_i32, %c0_i32_0 : i32, i32, i32
  }
  func.func @transform_7(%arg0: i32, %arg1: i32) -> (i32, i32, i32) {
    %c0_i32 = arith.constant 0 : i32
    %c0_i32_0 = arith.constant 0 : i32
    %c0_i32_1 = arith.constant 0 : i32
    return %arg1, %c0_i32, %c0_i32_0 : i32, i32, i32
  }
  func.func @transform_8(%arg0: i32, %arg1: i32) -> (i32, i32, i32) {
    %c0_i32 = arith.constant 0 : i32
    %c0_i32_0 = arith.constant 0 : i32
    %c0_i32_1 = arith.constant 0 : i32
    return %arg1, %c0_i32, %c0_i32_0 : i32, i32, i32
  }
  func.func @transform_9(%arg0: i32, %arg1: i32) -> (i32, i32, i32) {
    %c0_i32 = arith.constant 0 : i32
    %c0_i32_0 = arith.constant 0 : i32
    %c0_i32_1 = arith.constant 0 : i32
    return %arg1, %c0_i32, %c0_i32_0 : i32, i32, i32
  }
  func.func @transform_10(%arg0: i32, %arg1: i32) -> (i32, i32, i32) {
    %c0_i32 = arith.constant 0 : i32
    %c0_i32_0 = arith.constant 0 : i32
    %c0_i32_1 = arith.constant 0 : i32
    %c0_i32_2 = arith.constant 0 : i32
    return %c0_i32, %c0_i32_0, %c0_i32_1 : i32, i32, i32
  }
  func.func @transform_11(%arg0: i32, %arg1: i32) -> (i32, i32, i32, i32) {
    %c0_i32 = arith.constant 0 : i32
    %c0_i32_0 = arith.constant 0 : i32
    %c0_i32_1 = arith.constant 0 : i32
    return %arg1, %arg0, %c0_i32, %c0_i32_0 : i32, i32, i32, i32
  }
  func.func @transform_12(%arg0: i32, %arg1: i32) -> (i32, i32, i32, i32) {
    %c0_i32 = arith.constant 0 : i32
    %c0_i32_0 = arith.constant 0 : i32
    %c0_i32_1 = arith.constant 0 : i32
    return %arg1, %arg0, %c0_i32, %c0_i32_0 : i32, i32, i32, i32
  }
  func.func @transform_13(%arg0: i32, %arg1: i32) -> (i32, i32, i32) {
    %c0_i32 = arith.constant 0 : i32
    %c0_i32_0 = arith.constant 0 : i32
    %c0_i32_1 = arith.constant 0 : i32
    return %arg0, %c0_i32, %c0_i32_0 : i32, i32, i32
  }
  func.func @transform_14(%arg0: i32, %arg1: i32) -> (i32, i32, i32, i32) {
    %c0_i32 = arith.constant 0 : i32
    %c0_i32_0 = arith.constant 0 : i32
    %c0_i32_1 = arith.constant 0 : i32
    return %arg1, %arg0, %c0_i32, %c0_i32_0 : i32, i32, i32, i32
  }
  func.func @transform_15(%arg0: i32, %arg1: i32) -> (i32, i32, i32, i32) {
    %c0_i32 = arith.constant 0 : i32
    %c0_i32_0 = arith.constant 0 : i32
    %c0_i32_1 = arith.constant 0 : i32
    return %arg1, %arg0, %c0_i32, %c0_i32_0 : i32, i32, i32, i32
  }
}

module attributes {stable_mosaic.version = 11 : i64} {
  func.func @_layer_kernel(%arg0: i32, %arg1: i32, %arg2: memref<1x8x32xf32, #tpu.memory_space<vmem>>, %arg3: memref<1x1x32xf32, #tpu.memory_space<vmem>>, %arg4: memref<1x32x96xbf16, #tpu.memory_space<vmem>>, %arg5: memref<1x32x32xbf16, #tpu.memory_space<vmem>>, %arg6: memref<1x2x1x1xf32, #tpu.memory_space<vmem>>, %arg7: memref<1x1x32xf32, #tpu.memory_space<vmem>>, %arg8: memref<1x32x128xbf16, #tpu.memory_space<vmem>>, %arg9: memref<1x1x128xf32, #tpu.memory_space<vmem>>, %arg10: memref<1x128x32xbf16, #tpu.memory_space<vmem>>, %arg11: memref<1x1x32xf32, #tpu.memory_space<vmem>>, %arg12: memref<1x1x32xf32, #tpu.memory_space<vmem>>, %arg13: memref<1x1x32x16xf32, #tpu.memory_space<vmem>>, %arg14: memref<1x1x2x16xf32, #tpu.memory_space<vmem>>, %arg15: memref<1x8x32xbf16, #tpu.memory_space<vmem>>, %arg16: memref<1x1x32x16xf32, #tpu.memory_space<vmem>>, %arg17: memref<1x1x2x16xf32, #tpu.memory_space<vmem>>, %arg18: memref<8x32xf32, #tpu.memory_space<vmem>>) attributes {dimension_semantics = [#tpu.dimension_semantics<parallel>, #tpu.dimension_semantics<arbitrary>], iteration_bounds = array<i64: 2, 2>, scalar_prefetch = 0 : i64, scratch_operands = 1 : i64, tpu.core_type = #tpu.core_type<tc>, window_params = [{transform_indices = @transform_0, window_bounds = array<i64: 1, 8, 32>}, {transform_indices = @transform_1, window_bounds = array<i64: 1, 1, 32>}, {transform_indices = @transform_2, window_bounds = array<i64: 1, 32, 96>}, {transform_indices = @transform_3, window_bounds = array<i64: 1, 32, 32>}, {transform_indices = @transform_4, window_bounds = array<i64: 1, 2, 1, 1>}, {transform_indices = @transform_5, window_bounds = array<i64: 1, 1, 32>}, {transform_indices = @transform_6, window_bounds = array<i64: 1, 32, 128>}, {transform_indices = @transform_7, window_bounds = array<i64: 1, 1, 128>}, {transform_indices = @transform_8, window_bounds = array<i64: 1, 128, 32>}, {transform_indices = @transform_9, window_bounds = array<i64: 1, 1, 32>}, {pipeline_mode = #tpu.pipeline_mode<synchronous>, transform_indices = @transform_10, window_bounds = array<i64: 1, 1, 32>}, {transform_indices = @transform_11, window_bounds = array<i64: 1, 1, 32, 16>}, {transform_indices = @transform_12, window_bounds = array<i64: 1, 1, 2, 16>}, {transform_indices = @transform_13, window_bounds = array<i64: 1, 8, 32>}, {transform_indices = @transform_14, window_bounds = array<i64: 1, 1, 32, 16>}, {transform_indices = @transform_15, window_bounds = array<i64: 1, 1, 2, 16>}]} {
    %c0_i32 = arith.constant 0 : i32
    %0 = arith.cmpi eq, %arg1, %c0_i32 : i32
    %1 = arith.extui %0 : i1 to i32
    %c0_i32_0 = arith.constant 0 : i32
    %2 = arith.cmpi ne, %1, %c0_i32_0 : i32
    scf.if %2 {
      %c0_69 = arith.constant 0 : index
      %c0_70 = arith.constant 0 : index
      %c0_71 = arith.constant 0 : index
      %149 = vector.load %arg2[%c0_69, %c0_70, %c0_71] : memref<1x8x32xf32, #tpu.memory_space<vmem>>, vector<1x8x32xf32>
      %150 = vector.shape_cast %149 : vector<1x8x32xf32> to vector<8x32xf32>
      %c0_72 = arith.constant 0 : index
      %c0_73 = arith.constant 0 : index
      %151 = vector.load %arg18[%c0_72, %c0_73] : memref<8x32xf32, #tpu.memory_space<vmem>>, vector<8x32xf32>
      tpu.vector_store %arg18[%c0_72, %c0_73], %150 {strides = array<i32>} : memref<8x32xf32, #tpu.memory_space<vmem>>, vector<8x32xf32>,
    } else {
    }
    %c0 = arith.constant 0 : index
    %c0_1 = arith.constant 0 : index
    %3 = vector.load %arg18[%c0, %c0_1] : memref<8x32xf32, #tpu.memory_space<vmem>>, vector<8x32xf32>
    %4 = tpu.iota {dimensions = array<i32: 0>} : vector<8x8xi32>
    %5 = tpu.iota {dimensions = array<i32: 1>} : vector<8x8xi32>
    %6 = arith.cmpi sle, %5, %4 : vector<8x8xi32>
    %7 = vector.shape_cast %6 : vector<8x8xi1> to vector<1x8x8xi1>
    %c0_2 = arith.constant 0 : index
    %c0_3 = arith.constant 0 : index
    %c0_4 = arith.constant 0 : index
    %8 = vector.load %arg3[%c0_2, %c0_3, %c0_4] : memref<1x1x32xf32, #tpu.memory_space<vmem>>, vector<1x1x32xf32>
    %9 = vector.shape_cast %8 : vector<1x1x32xf32> to vector<1x32xf32>
    %10 = arith.mulf %3, %3 : vector<8x32xf32>
    %cst = arith.constant dense<0.000000e+00> : vector<8xf32>
    %11 = vector.multi_reduction <add>, %10, %cst [1] : vector<8x32xf32> to vector<8xf32>
    %12 = vector.shape_cast %11 : vector<8xf32> to vector<8x1xf32>
    %cst_5 = arith.constant 1.000000e-24 : f32
    %13 = vector.broadcast %cst_5 : f32 to vector<8x1xf32>
    %14 = arith.maximumf %12, %13 : vector<8x1xf32>
    %15 = math.rsqrt %14 : vector<8x1xf32>
    %16 = vector.broadcast %15 : vector<8x1xf32> to vector<8x32xf32>
    %17 = arith.mulf %3, %16 : vector<8x32xf32>
    %cst_6 = arith.constant 3.200000e+01 : f32
    %18 = math.sqrt %cst_6 : f32
    %19 = vector.broadcast %18 : f32 to vector<8x32xf32>
    %20 = arith.mulf %17, %19 : vector<8x32xf32>
    %21 = vector.broadcast %9 : vector<1x32xf32> to vector<8x32xf32>
    %22 = arith.mulf %20, %21 : vector<8x32xf32>
    %23 = arith.truncf %22 : vector<8x32xf32> to vector<8x32xbf16>
    %c0_7 = arith.constant 0 : index
    %c0_8 = arith.constant 0 : index
    %c0_9 = arith.constant 0 : index
    %24 = vector.load %arg4[%c0_7, %c0_8, %c0_9] : memref<1x32x96xbf16, #tpu.memory_space<vmem>>, vector<1x32x96xbf16>
    %25 = vector.shape_cast %24 : vector<1x32x96xbf16> to vector<32x96xbf16>
    %cst_10 = arith.constant dense<0.000000e+00> : vector<8x96xf32>
    %26 = tpu.matmul %23, %25, %cst_10 {dimension_numbers = #tpu.dot_dimension_numbers<[1], [0], [0], [1], [0, 0, 1, 1], [], []>} : vector<8x32xbf16>, vector<32x96xbf16>, vector<8x96xf32> -> vector<8x96xf32>
    %27 = vector.extract_strided_slice %26 {offsets = [0, 0], sizes = [8, 32], strides = [1, 1]} : vector<8x96xf32> to vector<8x32xf32>
    %28 = vector.extract_strided_slice %26 {offsets = [0, 32], sizes = [8, 32], strides = [1, 1]} : vector<8x96xf32> to vector<8x32xf32>
    %29 = vector.extract_strided_slice %26 {offsets = [0, 64], sizes = [8, 32], strides = [1, 1]} : vector<8x96xf32> to vector<8x32xf32>
    %30 = vector.extract_strided_slice %27 {offsets = [0, 0], sizes = [8, 16], strides = [1, 1]} : vector<8x32xf32> to vector<8x16xf32>
    %31 = vector.extract_strided_slice %27 {offsets = [0, 16], sizes = [8, 16], strides = [1, 1]} : vector<8x32xf32> to vector<8x16xf32>
    %32 = vector.shape_cast %30 : vector<8x16xf32> to vector<1x8x16xf32>
    %33 = vector.shape_cast %31 : vector<8x16xf32> to vector<1x8x16xf32>
    %34 = tpu.concatenate %32, %33 in 0 : vector<1x8x16xf32>, vector<1x8x16xf32> -> vector<2x8x16xf32>
    %35 = vector.extract_strided_slice %28 {offsets = [0, 0], sizes = [8, 16], strides = [1, 1]} : vector<8x32xf32> to vector<8x16xf32>
    %36 = vector.extract_strided_slice %28 {offsets = [0, 16], sizes = [8, 16], strides = [1, 1]} : vector<8x32xf32> to vector<8x16xf32>
    %37 = vector.shape_cast %35 : vector<8x16xf32> to vector<1x8x16xf32>
    %38 = vector.shape_cast %36 : vector<8x16xf32> to vector<1x8x16xf32>
    %39 = tpu.concatenate %37, %38 in 0 : vector<1x8x16xf32>, vector<1x8x16xf32> -> vector<2x8x16xf32>
    %40 = vector.extract_strided_slice %29 {offsets = [0, 0], sizes = [8, 16], strides = [1, 1]} : vector<8x32xf32> to vector<8x16xf32>
    %41 = vector.extract_strided_slice %29 {offsets = [0, 16], sizes = [8, 16], strides = [1, 1]} : vector<8x32xf32> to vector<8x16xf32>
    %42 = vector.shape_cast %40 : vector<8x16xf32> to vector<1x8x16xf32>
    %43 = vector.shape_cast %41 : vector<8x16xf32> to vector<1x8x16xf32>
    %44 = tpu.concatenate %42, %43 in 0 : vector<1x8x16xf32>, vector<1x8x16xf32> -> vector<2x8x16xf32>
    %cst_11 = arith.constant 2.500000e-01 : f32
    %45 = vector.broadcast %cst_11 : f32 to vector<2x8x16xf32>
    %46 = arith.mulf %34, %45 : vector<2x8x16xf32>
    %47 = arith.truncf %46 : vector<2x8x16xf32> to vector<2x8x16xbf16>
    %48 = arith.truncf %39 : vector<2x8x16xf32> to vector<2x8x16xbf16>
    "tpu.trace_start"() <{level = 10 : i32, message = "hld,hmd->hlm"}> : () -> ()
    %cst_12 = arith.constant dense<0.000000e+00> : vector<2x8x8xf32>
    %49 = tpu.matmul %47, %48, %cst_12 {dimension_numbers = #tpu.dot_dimension_numbers<[2], [2], [1], [1], [0, 0, 0, 1, 1, 1], [0], [0]>} : vector<2x8x16xbf16>, vector<2x8x16xbf16>, vector<2x8x8xf32> -> vector<2x8x8xf32>
    %cst_13 = arith.constant -1.000000e+30 : f32
    "tpu.trace_stop"() : () -> ()
    %50 = vector.shape_cast %7 : vector<1x8x8xi1> to vector<1x8x8xi1>
    %51 = vector.broadcast %50 : vector<1x8x8xi1> to vector<2x8x8xi1>
    %52 = vector.broadcast %cst_13 : f32 to vector<2x8x8xf32>
    %53 = arith.select %51, %49, %52 : vector<2x8x8xi1>, vector<2x8x8xf32>
    %cst_14 = arith.constant dense<0xFF800000> : vector<2x8xf32>
    %54 = vector.multi_reduction <maximumf>, %53, %cst_14 [2] : vector<2x8x8xf32> to vector<2x8xf32>
    %55 = vector.shape_cast %54 : vector<2x8xf32> to vector<2x8x1xf32>
    %56 = vector.broadcast %55 : vector<2x8x1xf32> to vector<2x8x8xf32>
    %57 = arith.subf %53, %56 : vector<2x8x8xf32>
    %58 = math.exp %57 : vector<2x8x8xf32>
    %cst_15 = arith.constant dense<0.000000e+00> : vector<2x8xf32>
    %59 = vector.multi_reduction <add>, %58, %cst_15 [2] : vector<2x8x8xf32> to vector<2x8xf32>
    %60 = vector.shape_cast %59 : vector<2x8xf32> to vector<2x8x1xf32>
    %61 = tpu.reciprocal %60 {approx = true} : vector<2x8x1xf32> -> vector<2x8x1xf32>
    %62 = vector.broadcast %61 : vector<2x8x1xf32> to vector<2x8x8xf32>
    %63 = arith.mulf %58, %62 : vector<2x8x8xf32>
    %64 = arith.truncf %63 : vector<2x8x8xf32> to vector<2x8x8xbf16>
    %65 = arith.truncf %44 : vector<2x8x16xf32> to vector<2x8x16xbf16>
    "tpu.trace_start"() <{level = 10 : i32, message = "hlm,hmd->hld"}> : () -> ()
    %cst_16 = arith.constant dense<0.000000e+00> : vector<2x8x16xf32>
    %66 = tpu.matmul %64, %65, %cst_16 {dimension_numbers = #tpu.dot_dimension_numbers<[2], [1], [1], [2], [0, 0, 0, 1, 1, 2], [0], [0]>} : vector<2x8x8xbf16>, vector<2x8x16xbf16>, vector<2x8x16xf32> -> vector<2x8x16xf32>
    "tpu.trace_stop"() : () -> ()
    %67 = vector.extract_strided_slice %66 {offsets = [0, 0, 0], sizes = [1, 8, 16], strides = [1, 1, 1]} : vector<2x8x16xf32> to vector<1x8x16xf32>
    %68 = vector.shape_cast %67 : vector<1x8x16xf32> to vector<8x16xf32>
    %69 = vector.extract_strided_slice %66 {offsets = [1, 0, 0], sizes = [1, 8, 16], strides = [1, 1, 1]} : vector<2x8x16xf32> to vector<1x8x16xf32>
    %70 = vector.shape_cast %69 : vector<1x8x16xf32> to vector<8x16xf32>
    %71 = tpu.concatenate %68, %70 in 1 : vector<8x16xf32>, vector<8x16xf32> -> vector<8x32xf32>
    %72 = arith.truncf %71 : vector<8x32xf32> to vector<8x32xbf16>
    %c0_17 = arith.constant 0 : index
    %c0_18 = arith.constant 0 : index
    %c0_19 = arith.constant 0 : index
    %73 = vector.load %arg5[%c0_17, %c0_18, %c0_19] : memref<1x32x32xbf16, #tpu.memory_space<vmem>>, vector<1x32x32xbf16>
    %74 = vector.shape_cast %73 : vector<1x32x32xbf16> to vector<32x32xbf16>
    %cst_20 = arith.constant dense<0.000000e+00> : vector<8x32xf32>
    %75 = tpu.matmul %72, %74, %cst_20 {dimension_numbers = #tpu.dot_dimension_numbers<[1], [0], [0], [1], [0, 0, 1, 1], [], []>} : vector<8x32xbf16>, vector<32x32xbf16>, vector<8x32xf32> -> vector<8x32xf32>
    %76 = arith.addf %3, %75 : vector<8x32xf32>
    %cst_21 = arith.constant 0.000000e+00 : f32
    %77 = vector.broadcast %cst_21 : f32 to vector<2x8x16xf32>
    %78 = arith.cmpf ogt, %39, %77 : vector<2x8x16xf32>
    %79 = math.exp %39 : vector<2x8x16xf32>
    %cst_22 = arith.constant 1.000000e+00 : f32
    %80 = vector.broadcast %cst_22 : f32 to vector<2x8x16xf32>
    %81 = arith.subf %79, %80 : vector<2x8x16xf32>
    %82 = arith.select %78, %39, %81 : vector<2x8x16xi1>, vector<2x8x16xf32>
    %cst_23 = arith.constant 1.000000e+00 : f32
    %83 = vector.broadcast %cst_23 : f32 to vector<2x8x16xf32>
    %84 = arith.addf %82, %83 : vector<2x8x16xf32>
    "tpu.trace_start"() <{level = 10 : i32, message = "hld,hle->hde"}> : () -> ()
    %cst_24 = arith.constant dense<0.000000e+00> : vector<2x16x16xf32>
    %85 = tpu.matmul %84, %44, %cst_24 {dimension_numbers = #tpu.dot_dimension_numbers<[1], [1], [2], [2], [0, 0, 0, 2, 1, 2], [0], [0]>} : vector<2x8x16xf32>, vector<2x8x16xf32>, vector<2x16x16xf32> -> vector<2x16x16xf32>
    "tpu.trace_stop"() : () -> ()
    %c0_25 = arith.constant 0 : index
    %c0_26 = arith.constant 0 : index
    %c0_27 = arith.constant 0 : index
    %c0_28 = arith.constant 0 : index
    %86 = vector.load %arg13[%c0_25, %c0_26, %c0_27, %c0_28] : memref<1x1x32x16xf32, #tpu.memory_space<vmem>>, vector<1x1x32x16xf32>
    %87 = vector.shape_cast %86 : vector<1x1x32x16xf32> to vector<32x16xf32>
    %88 = vector.shape_cast %85 : vector<2x16x16xf32> to vector<32x16xf32>
    %89 = arith.addf %87, %88 : vector<32x16xf32>
    %c0_29 = arith.constant 0 : index
    %c0_30 = arith.constant 0 : index
    %c0_31 = arith.constant 0 : index
    %c0_32 = arith.constant 0 : index
    %90 = vector.load %arg16[%c0_29, %c0_30, %c0_31, %c0_32] : memref<1x1x32x16xf32, #tpu.memory_space<vmem>>, vector<1x1x32x16xf32>
    %91 = vector.shape_cast %90 : vector<1x1x32x16xf32> to vector<32x16xf32>
    %92 = vector.shape_cast %89 : vector<32x16xf32> to vector<1x1x32x16xf32>
    tpu.vector_store %arg16[%c0_29, %c0_30, %c0_31, %c0_32], %92 {strides = array<i32>} : memref<1x1x32x16xf32, #tpu.memory_space<vmem>>, vector<1x1x32x16xf32>,
    %c0_33 = arith.constant 0 : index
    %c0_34 = arith.constant 0 : index
    %c0_35 = arith.constant 0 : index
    %c0_36 = arith.constant 0 : index
    %93 = vector.load %arg14[%c0_33, %c0_34, %c0_35, %c0_36] : memref<1x1x2x16xf32, #tpu.memory_space<vmem>>, vector<1x1x2x16xf32>
    %94 = vector.shape_cast %93 : vector<1x1x2x16xf32> to vector<2x16xf32>
    %cst_37 = arith.constant dense<0.000000e+00> : vector<2x16xf32>
    %95 = vector.multi_reduction <add>, %84, %cst_37 [1] : vector<2x8x16xf32> to vector<2x16xf32>
    %96 = arith.addf %94, %95 : vector<2x16xf32>
    %c0_38 = arith.constant 0 : index
    %c0_39 = arith.constant 0 : index
    %c0_40 = arith.constant 0 : index
    %c0_41 = arith.constant 0 : index
    %97 = vector.load %arg17[%c0_38, %c0_39, %c0_40, %c0_41] : memref<1x1x2x16xf32, #tpu.memory_space<vmem>>, vector<1x1x2x16xf32>
    %98 = vector.shape_cast %97 : vector<1x1x2x16xf32> to vector<2x16xf32>
    %99 = vector.shape_cast %96 : vector<2x16xf32> to vector<1x1x2x16xf32>
    tpu.vector_store %arg17[%c0_38, %c0_39, %c0_40, %c0_41], %99 {strides = array<i32>} : memref<1x1x2x16xf32, #tpu.memory_space<vmem>>, vector<1x1x2x16xf32>,
    %c0_42 = arith.constant 0 : index
    %c0_43 = arith.constant 0 : index
    %c0_44 = arith.constant 0 : index
    %100 = vector.load %arg7[%c0_42, %c0_43, %c0_44] : memref<1x1x32xf32, #tpu.memory_space<vmem>>, vector<1x1x32xf32>
    %101 = vector.shape_cast %100 : vector<1x1x32xf32> to vector<1x32xf32>
    %102 = arith.mulf %76, %76 : vector<8x32xf32>
    %cst_45 = arith.constant dense<0.000000e+00> : vector<8xf32>
    %103 = vector.multi_reduction <add>, %102, %cst_45 [1] : vector<8x32xf32> to vector<8xf32>
    %104 = vector.shape_cast %103 : vector<8xf32> to vector<8x1xf32>
    %cst_46 = arith.constant 1.000000e-24 : f32
    %105 = vector.broadcast %cst_46 : f32 to vector<8x1xf32>
    %106 = arith.maximumf %104, %105 : vector<8x1xf32>
    %107 = math.rsqrt %106 : vector<8x1xf32>
    %108 = vector.broadcast %107 : vector<8x1xf32> to vector<8x32xf32>
    %109 = arith.mulf %76, %108 : vector<8x32xf32>
    %cst_47 = arith.constant 3.200000e+01 : f32
    %110 = math.sqrt %cst_47 : f32
    %111 = vector.broadcast %110 : f32 to vector<8x32xf32>
    %112 = arith.mulf %109, %111 : vector<8x32xf32>
    %113 = vector.broadcast %101 : vector<1x32xf32> to vector<8x32xf32>
    %114 = arith.mulf %112, %113 : vector<8x32xf32>
    %115 = arith.truncf %114 : vector<8x32xf32> to vector<8x32xbf16>
    %c0_48 = arith.constant 0 : index
    %c0_49 = arith.constant 0 : index
    %c0_50 = arith.constant 0 : index
    %116 = vector.load %arg8[%c0_48, %c0_49, %c0_50] : memref<1x32x128xbf16, #tpu.memory_space<vmem>>, vector<1x32x128xbf16>
    %117 = vector.shape_cast %116 : vector<1x32x128xbf16> to vector<32x128xbf16>
    %cst_51 = arith.constant dense<0.000000e+00> : vector<8x128xf32>
    %118 = tpu.matmul %115, %117, %cst_51 {dimension_numbers = #tpu.dot_dimension_numbers<[1], [0], [0], [1], [0, 0, 1, 1], [], []>} : vector<8x32xbf16>, vector<32x128xbf16>, vector<8x128xf32> -> vector<8x128xf32>
    %c0_52 = arith.constant 0 : index
    %c0_53 = arith.constant 0 : index
    %c0_54 = arith.constant 0 : index
    %119 = vector.load %arg9[%c0_52, %c0_53, %c0_54] : memref<1x1x128xf32, #tpu.memory_space<vmem>>, vector<1x1x128xf32>
    %120 = vector.shape_cast %119 : vector<1x1x128xf32> to vector<1x128xf32>
    %121 = vector.broadcast %120 : vector<1x128xf32> to vector<8x128xf32>
    %122 = arith.addf %118, %121 : vector<8x128xf32>
    %123 = arith.mulf %122, %122 : vector<8x128xf32>
    %124 = arith.mulf %122, %123 : vector<8x128xf32>
    %cst_55 = arith.constant 4.471500e-02 : f32
    %125 = vector.broadcast %cst_55 : f32 to vector<8x128xf32>
    %126 = arith.mulf %125, %124 : vector<8x128xf32>
    %127 = arith.addf %122, %126 : vector<8x128xf32>
    %cst_56 = arith.constant 0.797884583 : f32
    %128 = vector.broadcast %cst_56 : f32 to vector<8x128xf32>
    %129 = arith.mulf %128, %127 : vector<8x128xf32>
    %130 = math.tanh %129 : vector<8x128xf32>
    %cst_57 = arith.constant 1.000000e+00 : f32
    %131 = vector.broadcast %cst_57 : f32 to vector<8x128xf32>
    %132 = arith.addf %131, %130 : vector<8x128xf32>
    %cst_58 = arith.constant 5.000000e-01 : f32
    %133 = vector.broadcast %cst_58 : f32 to vector<8x128xf32>
    %134 = arith.mulf %133, %132 : vector<8x128xf32>
    %135 = arith.mulf %122, %134 : vector<8x128xf32>
    %136 = arith.truncf %135 : vector<8x128xf32> to vector<8x128xbf16>
    %c0_59 = arith.constant 0 : index
    %c0_60 = arith.constant 0 : index
    %c0_61 = arith.constant 0 : index
    %137 = vector.load %arg10[%c0_59, %c0_60, %c0_61] : memref<1x128x32xbf16, #tpu.memory_space<vmem>>, vector<1x128x32xbf16>
    %138 = vector.shape_cast %137 : vector<1x128x32xbf16> to vector<128x32xbf16>
    %cst_62 = arith.constant dense<0.000000e+00> : vector<8x32xf32>
    %139 = tpu.matmul %136, %138, %cst_62 {dimension_numbers = #tpu.dot_dimension_numbers<[1], [0], [0], [1], [0, 0, 1, 1], [], []>} : vector<8x128xbf16>, vector<128x32xbf16>, vector<8x32xf32> -> vector<8x32xf32>
    %c0_63 = arith.constant 0 : index
    %c0_64 = arith.constant 0 : index
    %c0_65 = arith.constant 0 : index
    %140 = vector.load %arg11[%c0_63, %c0_64, %c0_65] : memref<1x1x32xf32, #tpu.memory_space<vmem>>, vector<1x1x32xf32>
    %141 = vector.shape_cast %140 : vector<1x1x32xf32> to vector<1x32xf32>
    %142 = vector.broadcast %141 : vector<1x32xf32> to vector<8x32xf32>
    %143 = arith.addf %139, %142 : vector<8x32xf32>
    %144 = arith.addf %76, %143 : vector<8x32xf32>
    %c0_66 = arith.constant 0 : index
    %c0_67 = arith.constant 0 : index
    %145 = vector.load %arg18[%c0_66, %c0_67] : memref<8x32xf32, #tpu.memory_space<vmem>>, vector<8x32xf32>
    tpu.vector_store %arg18[%c0_66, %c0_67], %144 {strides = array<i32>} : memref<8x32xf32, #tpu.memory_space<vmem>>, vector<8x32xf32>,
    %c1_i32 = arith.constant 1 : i32
    %146 = arith.cmpi eq, %arg1, %c1_i32 : i32
    %147 = arith.extui %146 : i1 to i32
    %c0_i32_68 = arith.constant 0 : i32
    %148 = arith.cmpi ne, %147, %c0_i32_68 : i32
    scf.if %148 {
      %c0_69 = arith.constant 0 : index
      %c0_70 = arith.constant 0 : index
      %c0_71 = arith.constant 0 : index
      %149 = vector.load %arg12[%c0_69, %c0_70, %c0_71] : memref<1x1x32xf32, #tpu.memory_space<vmem>>, vector<1x1x32xf32>
      %150 = vector.shape_cast %149 : vector<1x1x32xf32> to vector<1x32xf32>
      %151 = arith.mulf %144, %144 : vector<8x32xf32>
      %cst_72 = arith.constant dense<0.000000e+00> : vector<8xf32>
      %152 = vector.multi_reduction <add>, %151, %cst_72 [1] : vector<8x32xf32> to vector<8xf32>
      %153 = vector.shape_cast %152 : vector<8xf32> to vector<8x1xf32>
      %cst_73 = arith.constant 1.000000e-24 : f32
      %154 = vector.broadcast %cst_73 : f32 to vector<8x1xf32>
      %155 = arith.maximumf %153, %154 : vector<8x1xf32>
      %156 = math.rsqrt %155 : vector<8x1xf32>
      %157 = vector.broadcast %156 : vector<8x1xf32> to vector<8x32xf32>
      %158 = arith.mulf %144, %157 : vector<8x32xf32>
      %cst_74 = arith.constant 3.200000e+01 : f32
      %159 = math.sqrt %cst_74 : f32
      %160 = vector.broadcast %159 : f32 to vector<8x32xf32>
      %161 = arith.mulf %158, %160 : vector<8x32xf32>
      %162 = vector.broadcast %150 : vector<1x32xf32> to vector<8x32xf32>
      %163 = arith.mulf %161, %162 : vector<8x32xf32>
      %164 = arith.truncf %163 : vector<8x32xf32> to vector<8x32xbf16>
      %c0_75 = arith.constant 0 : index
      %c0_76 = arith.constant 0 : index
      %c0_77 = arith.constant 0 : index
      %165 = vector.load %arg15[%c0_75, %c0_76, %c0_77] : memref<1x8x32xbf16, #tpu.memory_space<vmem>>, vector<1x8x32xbf16>
      %166 = vector.shape_cast %165 : vector<1x8x32xbf16> to vector<8x32xbf16>
      %167 = vector.shape_cast %164 : vector<8x32xbf16> to vector<1x8x32xbf16>
      tpu.vector_store %arg15[%c0_75, %c0_76, %c0_77], %167 {strides = array<i32>} : memref<1x8x32xbf16, #tpu.memory_space<vmem>>, vector<1x8x32xbf16>,
    } else {
    }
    return
  }
  func.func @transform_0(%arg0: i32, %arg1: i32) -> (i32, i32, i32) {
    %c0_i32 = arith.constant 0 : i32
    %c0_i32_0 = arith.constant 0 : i32
    %c0_i32_1 = arith.constant 0 : i32
    return %arg0, %c0_i32, %c0_i32_0 : i32, i32, i32
  }
  func.func @transform_1(%arg0: i32, %arg1: i32) -> (i32, i32, i32) {
    %c0_i32 = arith.constant 0 : i32
    %c0_i32_0 = arith.constant 0 : i32
    %c0_i32_1 = arith.constant 0 : i32
    return %arg1, %c0_i32, %c0_i32_0 : i32, i32, i32
  }
  func.func @transform_2(%arg0: i32, %arg1: i32) -> (i32, i32, i32) {
    %c0_i32 = arith.constant 0 : i32
    %c0_i32_0 = arith.constant 0 : i32
    %c0_i32_1 = arith.constant 0 : i32
    return %arg1, %c0_i32, %c0_i32_0 : i32, i32, i32
  }
  func.func @transform_3(%arg0: i32, %arg1: i32) -> (i32, i32, i32) {
    %c0_i32 = arith.constant 0 : i32
    %c0_i32_0 = arith.constant 0 : i32
    %c0_i32_1 = arith.constant 0 : i32
    return %arg1, %c0_i32, %c0_i32_0 : i32, i32, i32
  }
  func.func @transform_4(%arg0: i32, %arg1: i32) -> (i32, i32, i32, i32) {
    %c0_i32 = arith.constant 0 : i32
    %c0_i32_0 = arith.constant 0 : i32
    %c0_i32_1 = arith.constant 0 : i32
    %c0_i32_2 = arith.constant 0 : i32
    return %arg1, %c0_i32, %c0_i32_0, %c0_i32_1 : i32, i32, i32, i32
  }
  func.func @transform_5(%arg0: i32, %arg1: i32) -> (i32, i32, i32) {
    %c0_i32 = arith.constant 0 : i32
    %c0_i32_0 = arith.constant 0 : i32
    %c0_i32_1 = arith.constant 0 : i32
    return %arg1, %c0_i32, %c0_i32_0 : i32, i32, i32
  }
  func.func @transform_6(%arg0: i32, %arg1: i32) -> (i32, i32, i32) {
    %c0_i32 = arith.constant 0 : i32
    %c0_i32_0 = arith.constant 0 : i32
    %c0_i32_1 = arith.constant 0 : i32
    return %arg1, %c0_i32, %c0_i32_0 : i32, i32, i32
  }
  func.func @transform_7(%arg0: i32, %arg1: i32) -> (i32, i32, i32) {
    %c0_i32 = arith.constant 0 : i32
    %c0_i32_0 = arith.constant 0 : i32
    %c0_i32_1 = arith.constant 0 : i32
    return %arg1, %c0_i32, %c0_i32_0 : i32, i32, i32
  }
  func.func @transform_8(%arg0: i32, %arg1: i32) -> (i32, i32, i32) {
    %c0_i32 = arith.constant 0 : i32
    %c0_i32_0 = arith.constant 0 : i32
    %c0_i32_1 = arith.constant 0 : i32
    return %arg1, %c0_i32, %c0_i32_0 : i32, i32, i32
  }
  func.func @transform_9(%arg0: i32, %arg1: i32) -> (i32, i32, i32) {
    %c0_i32 = arith.constant 0 : i32
    %c0_i32_0 = arith.constant 0 : i32
    %c0_i32_1 = arith.constant 0 : i32
    return %arg1, %c0_i32, %c0_i32_0 : i32, i32, i32
  }
  func.func @transform_10(%arg0: i32, %arg1: i32) -> (i32, i32, i32) {
    %c0_i32 = arith.constant 0 : i32
    %c0_i32_0 = arith.constant 0 : i32
    %c0_i32_1 = arith.constant 0 : i32
    %c0_i32_2 = arith.constant 0 : i32
    return %c0_i32, %c0_i32_0, %c0_i32_1 : i32, i32, i32
  }
  func.func @transform_11(%arg0: i32, %arg1: i32) -> (i32, i32, i32, i32) {
    %c0_i32 = arith.constant 0 : i32
    %c0_i32_0 = arith.constant 0 : i32
    %c0_i32_1 = arith.constant 0 : i32
    return %arg1, %arg0, %c0_i32, %c0_i32_0 : i32, i32, i32, i32
  }
  func.func @transform_12(%arg0: i32, %arg1: i32) -> (i32, i32, i32, i32) {
    %c0_i32 = arith.constant 0 : i32
    %c0_i32_0 = arith.constant 0 : i32
    %c0_i32_1 = arith.constant 0 : i32
    return %arg1, %arg0, %c0_i32, %c0_i32_0 : i32, i32, i32, i32
  }
  func.func @transform_13(%arg0: i32, %arg1: i32) -> (i32, i32, i32) {
    %c0_i32 = arith.constant 0 : i32
    %c0_i32_0 = arith.constant 0 : i32
    %c0_i32_1 = arith.constant 0 : i32
    return %arg0, %c0_i32, %c0_i32_0 : i32, i32, i32
  }
  func.func @transform_14(%arg0: i32, %arg1: i32) -> (i32, i32, i32, i32) {
    %c0_i32 = arith.constant 0 : i32
    %c0_i32_0 = arith.constant 0 : i32
    %c0_i32_1 = arith.constant 0 : i32
    return %arg1, %arg0, %c0_i32, %c0_i32_0 : i32, i32, i32, i32
  }
  func.func @transform_15(%arg0: i32, %arg1: i32) -> (i32, i32, i32, i32) {
    %c0_i32 = arith.constant 0 : i32
    %c0_i32_0 = arith.constant 0 : i32
    %c0_i32_1 = arith.constant 0 : i32
    return %arg1, %arg0, %c0_i32, %c0_i32_0 : i32, i32, i32, i32
  }
}

</mosaic_0001>

<llo_original>
// kernel: infini_wrapper_forward.5
$region0: #{infini_wrapper_forward.5}
  #allocation0 [shape = 'u32[]', space=smem, size = 0x4, offset = 0x4, fixed_abs, tag = 'smem constant byte address 0x4 - core index']
  #allocation1 [shape = 'u32[144,128]{1,0:T(1,128)}', space=vmem, size = 0x12000, scoped, tag = 'internal scratch']
  #allocation2 [shape = 'f32[8,1]{1,0:T(8,128)}', space=vmem, size = 0x1000, scoped, tag = 'scratch operand']
  #allocation3 [shape = 'f32[8,1]{1,0:T(8,128)}', space=vmem, size = 0x1000, scoped, tag = 'scratch operand']
  #allocation4 [shape = 'f32[8,1]{1,0:T(8,128)}', space=vmem, size = 0x1000, scoped, tag = 'scratch operand']
  %s0 = inlined_call_operand.vmem [shape: bf16[2,8,32], index: 0, kind: input, shape index: {}]
  %s1 = inlined_call_operand.vmem [shape: bf16[32,256], index: 1, kind: input, shape index: {}]
  %s2 = inlined_call_operand.vmem [shape: s32[2,8,1], index: 2, kind: input, shape index: {}]
  %s3 = inlined_call_operand.vmem [shape: f32[2,1,1], index: 3, kind: output, shape index: {}]
  %s4 = sld [smem:[#allocation0]]
  $region94: #{infini_wrapper_forward.5} parent=0
    _
  %s6 = ssub.s32 1, %s4
  %s7 = scalar_select 0, %s6, %s4
  $region1: #{infini_wrapper_forward.5} parent=0
    #allocation5 [shape = 'u8[16384]{0}', space=vmem, size = 0x4000, scoped, tag = 'input window, operand 1']
    loop: start=0, step=1, limit=6
    $region2: #{infini_wrapper_forward.5} parent=1 // loop_pre_header
      _
    $region3: #{infini_wrapper_forward.5} parent=1 // loop_header
      %s9 = sphi 0, %s13
      %p10 = scmp.ge.s32.totalorder %s9, 6
      %s16 = sphi 0, %s28
      %s17 = sphi 0, %s24
      %s18 = sphi 0, %s16
      %s19 = sphi 0, %s17
      %s20 = sphi 0, %s18
      %s21 = sphi 0, %s19
      %s31 = sphi 0, %s33
      %s34 = sphi 0, %s31
      %s35 = sphi 0, %s34
      %s51 = sphi 0, %s35
      %s57 = sphi 0, %s59
      %s60 = sphi 0, %s57
      %s61 = sphi 0, %s60
      %s77 = sphi 0, %s61
      %s83 = sphi 0, %s85
      %s86 = sphi 0, %s83
      %s87 = sphi 0, %s86
      %s103 = sphi 0, %s87
      %s109 = sphi 0, %s111
      %s112 = sphi 0, %s109
      %s113 = sphi 0, %s112
      %s129 = sphi 0, %s113
    $region4: #{infini_wrapper_forward.5} parent=1 // loop_header_branch
      %12 = sbr.rel (%p10) target = $region8
    $region5: #{infini_wrapper_forward.5} parent=1 // loop_body
      %s14 = ssub.s32 %s9, 1
      %s15 = ssub.s32 %s9, 2
      %s22 = sadd.s32 1, %s17
      %p23 = scmp.ge.s32.totalorder %s22, 2
      %s24 = scalar_select %p23, 0, %s22
      %s25 = sadd.s32 1, %s16
      %s26 = scalar_select %p23, %s25, %s16
      %p27 = scmp.ge.s32.totalorder %s26, 2
      %s28 = scalar_select %p27, 0, %s26
      %s29 = ssub.s32 %s16, %s28
      %p30 = scmp.eq.s32.totalorder %s29, 0
      %s32 = sadd.s32 %s31, 1
      %s33 = scalar_select %p30, %s31, %s32
      %p36 = pneg %p30
      %p37 = scmp.eq.s32.totalorder %s9, 3
      %p38 = por %p36, %p37
      %p39 = scmp.ne.s32.totalorder %s31, %s34
      %p40 = scmp.eq.s32.totalorder %s9, 0
      %p41 = por %p39, %p40
      %p42 = scmp.ne.s32.totalorder %s31, %s34
      %p43 = scmp.eq.s32.totalorder %s14, 3
      %p44 = por %p42, %p43
      %p45 = scmp.ne.s32.totalorder %s34, %s35
      %p46 = scmp.eq.s32.totalorder %s14, 0
      %p47 = por %p45, %p46
      %p48 = scmp.ne.s32.totalorder %s34, %s35
      %p49 = scmp.eq.s32.totalorder %s15, 3
      %p50 = por %p48, %p49
      %p52 = scmp.ne.s32.totalorder %s35, %s51
      %p53 = scmp.eq.s32.totalorder %s15, 0
      %p54 = por %p52, %p53
      %s55 = ssub.s32 %s17, %s24
      %p56 = scmp.eq.s32.totalorder %s55, 0
      %s58 = sadd.s32 %s57, 1
      %s59 = scalar_select %p56, %s57, %s58
      %p62 = pneg %p56
      %p63 = scmp.eq.s32.totalorder %s9, 3
      %p64 = por %p62, %p63
      %p65 = scmp.ne.s32.totalorder %s57, %s60
      %p66 = scmp.eq.s32.totalorder %s9, 0
      %p67 = por %p65, %p66
      %p68 = scmp.ne.s32.totalorder %s57, %s60
      %p69 = scmp.eq.s32.totalorder %s14, 3
      %p70 = por %p68, %p69
      %p71 = scmp.ne.s32.totalorder %s60, %s61
      %p72 = scmp.eq.s32.totalorder %s14, 0
      %p73 = por %p71, %p72
      %p74 = scmp.ne.s32.totalorder %s60, %s61
      %p75 = scmp.eq.s32.totalorder %s15, 3
      %p76 = por %p74, %p75
      %p78 = scmp.ne.s32.totalorder %s61, %s77
      %p79 = scmp.eq.s32.totalorder %s15, 0
      %p80 = por %p78, %p79
      %s81 = ssub.s32 %s16, %s28
      %p82 = scmp.eq.s32.totalorder %s81, 0
      %s84 = sadd.s32 %s83, 1
      %s85 = scalar_select %p82, %s83, %s84
      %p88 = pneg %p82
      %p89 = scmp.eq.s32.totalorder %s9, 3
      %p90 = por %p88, %p89
      %p91 = scmp.ne.s32.totalorder %s83, %s86
      %p92 = scmp.eq.s32.totalorder %s9, 0
      %p93 = por %p91, %p92
      %p94 = scmp.ne.s32.totalorder %s83, %s86
      %p95 = scmp.eq.s32.totalorder %s14, 3
      %p96 = por %p94, %p95
      %p97 = scmp.ne.s32.totalorder %s86, %s87
      %p98 = scmp.eq.s32.totalorder %s14, 0
      %p99 = por %p97, %p98
      %p100 = scmp.ne.s32.totalorder %s86, %s87
      %p101 = scmp.eq.s32.totalorder %s15, 3
      %p102 = por %p100, %p101
      %p104 = scmp.ne.s32.totalorder %s87, %s103
      %p105 = scmp.eq.s32.totalorder %s15, 0
      %p106 = por %p104, %p105
      %s107 = ssub.s32 %s16, %s28
      %p108 = scmp.eq.s32.totalorder %s107, 0
      %s110 = sadd.s32 %s109, 1
      %s111 = scalar_select %p108, %s109, %s110
      %p114 = pneg %p108
      %p115 = scmp.eq.s32.totalorder %s9, 3
      %p116 = por %p114, %p115
      %p117 = scmp.ne.s32.totalorder %s109, %s112
      %p118 = scmp.eq.s32.totalorder %s9, 0
      %p119 = por %p117, %p118
      %p120 = scmp.ne.s32.totalorder %s109, %s112
      %p121 = scmp.eq.s32.totalorder %s14, 3
      %p122 = por %p120, %p121
      %p123 = scmp.ne.s32.totalorder %s112, %s113
      %p124 = scmp.eq.s32.totalorder %s14, 0
      %p125 = por %p123, %p124
      %p126 = scmp.ne.s32.totalorder %s112, %s113
      %p127 = scmp.eq.s32.totalorder %s15, 3
      %p128 = por %p126, %p127
      %p130 = scmp.ne.s32.totalorder %s113, %s129
      %p131 = scmp.eq.s32.totalorder %s15, 0
      %p132 = por %p130, %p131
      %p133 = scmp.le.s32.totalorder 1, %s9
      %p134 = scmp.lt.s32.totalorder %s9, 5
      %p135 = pnand %p133, %p134
      %p136 = pneg %p135
      // Predicated region
      $region9: #{infini_wrapper_forward.5} parent=5 // pred_check
        _
      $region10: #{infini_wrapper_forward.5} parent=5 // pred_check_branch
        %138 = sbr.rel (%p135) target = $region12
      $region11: #{infini_wrapper_forward.5} parent=5 // pred_region
        %s139 = ssub.s32 %s9, 1
      $region12: #{infini_wrapper_forward.5} parent=5 // pred_fallthru
        _
      %p140 = scmp.lt.s32.totalorder %s9, 4
      // Predicated region
      $region13: #{infini_wrapper_forward.5} parent=5 // pred_check
        %p141 = pneg %p140
      $region14: #{infini_wrapper_forward.5} parent=5 // pred_check_branch
        %143 = sbr.rel (%p141) target = $region16
      $region15: #{infini_wrapper_forward.5} parent=5 // pred_region
        // Predicated region
        $region17: #{infini_wrapper_forward.5} parent=15 // pred_check
          %p144 = pneg %p41
        $region18: #{infini_wrapper_forward.5} parent=15 // pred_check_branch
          %146 = sbr.rel (%p144) target = $region20
        $region19: #{infini_wrapper_forward.5} parent=15 // pred_region
          %p147 = scmp.lt.s32.totalorder %s16, 1
          %s148 = scalar_select %p147, %s16, 1
          %s149 = smul.addr %s148, 4
          %s150 = scalar_lea.vmem %s0, %s149
        $region20: #{infini_wrapper_forward.5} parent=15 // pred_fallthru
          _
        // Predicated region
        $region21: #{infini_wrapper_forward.5} parent=15 // pred_check
          %p151 = pneg %p67
        $region22: #{infini_wrapper_forward.5} parent=15 // pred_check_branch
          %153 = sbr.rel (%p151) target = $region24
        $region23: #{infini_wrapper_forward.5} parent=15 // pred_region
          %s154 = sand.u32 %s57, 1
          %s155 = sand.u32 %s57, 1
          %s156 = smul.addr %s155, 16
          %s157 = scalar_lea.vmem [#allocation5], %s156
          %s158 = smul.addr %s17, 4
          %s159 = scalar_lea.vmem %s1, %s158
          // Predicated region
          $region25: #{infini_wrapper_forward.5} parent=23 // pred_check
            _
          $region26: #{infini_wrapper_forward.5} parent=23 // pred_check_branch
            %161 = sbr.rel (0) target = $region28
          $region27: #{infini_wrapper_forward.5} parent=23 // pred_region
            // Predicated region
            $region29: #{infini_wrapper_forward.5} parent=27 // pred_check
              _
            $region30: #{infini_wrapper_forward.5} parent=27 // pred_check_branch
              %163 = sbr.rel target = $region32
            $region31: #{infini_wrapper_forward.5} parent=27 // pred_region
              // Predicated region
              $region44: #{infini_wrapper_forward.5} parent=31 // pred_check
                _
              $region45: #{infini_wrapper_forward.5} parent=31 // pred_check_branch
                %184 = sbr.rel (0) target = $region47
              $region46: #{infini_wrapper_forward.5} parent=31 // pred_region
                loop: start=0, step=1, limit=1
                $region48: #{infini_wrapper_forward.5} parent=46 // loop_pre_header
                  _
                $region49: #{infini_wrapper_forward.5} parent=46 // loop_header
                  %s186 = sphi 0, %s190
                  %p187 = scmp.ge.s32.totalorder %s186, 1
                  %s191 = sphi %s159, %s159
                  %s192 = sphi %s157, %s157
                $region50: #{infini_wrapper_forward.5} parent=46 // loop_header_branch
                  %189 = sbr.rel (%p187) target = $region54
                $region51: #{infini_wrapper_forward.5} parent=46 // loop_body
                  _
                $region52: #{infini_wrapper_forward.5} parent=46 // loop_footer
                  %s190 = sadd.s32 1, %s186
                $region53: #{infini_wrapper_forward.5} parent=46 // loop_footer_branch
                  %185 = sbr.rel target = $region49
                $region54: #{infini_wrapper_forward.5} parent=46 // loop_exit
                  _
                loop: start=0, step=1, limit=1
                $region55: #{infini_wrapper_forward.5} parent=46 // loop_pre_header
                  _
                $region56: #{infini_wrapper_forward.5} parent=46 // loop_header
                  %s195 = sphi 0, %s199
                  %p196 = scmp.ge.s32.totalorder %s195, 1
                  %s200 = sphi %s159, %s159
                  %s201 = sphi %s157, %s157
                $region57: #{infini_wrapper_forward.5} parent=46 // loop_header_branch
                  %198 = sbr.rel (%p196) target = $region61
                $region58: #{infini_wrapper_forward.5} parent=46 // loop_body
                  %v202 = vld [vmem:[%s200] sm:$0xf]
                  %203 = vst [vmem:[%s201] sm:$0xf] %v202
                  %v204 = vld [vmem:[%s200 + $0x8] sm:$0xf]
                  %205 = vst [vmem:[%s201 + $0x4] sm:$0xf] %v204
                  %v206 = vld [vmem:[%s200 + $0x10] sm:$0xf]
                  %207 = vst [vmem:[%s201 + $0x8] sm:$0xf] %v206
                  %v208 = vld [vmem:[%s200 + $0x18] sm:$0xf]
                  %209 = vst [vmem:[%s201 + $0xc] sm:$0xf] %v208
                $region59: #{infini_wrapper_forward.5} parent=46 // loop_footer
                  %s199 = sadd.s32 1, %s195
                $region60: #{infini_wrapper_forward.5} parent=46 // loop_footer_branch
                  %194 = sbr.rel target = $region56
                $region61: #{infini_wrapper_forward.5} parent=46 // loop_exit
                  _
              $region47: #{infini_wrapper_forward.5} parent=31 // pred_fallthru
                _
            $region32: #{infini_wrapper_forward.5} parent=27 // pred_fallthru
              _
            // Predicated region
            $region33: #{infini_wrapper_forward.5} parent=27 // pred_check
              _
            $region34: #{infini_wrapper_forward.5} parent=27 // pred_check_branch
              %165 = sbr.rel (0) target = $region36
            $region35: #{infini_wrapper_forward.5} parent=27 // pred_region
              loop: start=0, step=1, limit=1
              $region37: #{infini_wrapper_forward.5} parent=35 // loop_pre_header
                _
              $region38: #{infini_wrapper_forward.5} parent=35 // loop_header
                %s168 = sphi 0, %s172
                %p169 = scmp.ge.s32.totalorder %s168, 1
                %s173 = sphi %s159, %s159
                %s174 = sphi %s157, %s157
              $region39: #{infini_wrapper_forward.5} parent=35 // loop_header_branch
                %171 = sbr.rel (%p169) target = $region43
              $region40: #{infini_wrapper_forward.5} parent=35 // loop_body
                %v175 = vld [vmem:[%s173] sm:$0xf]
                %176 = vst [vmem:[%s174] sm:$0xf] %v175
                %v177 = vld [vmem:[%s173 + $0x8] sm:$0xf]
                %178 = vst [vmem:[%s174 + $0x4] sm:$0xf] %v177
                %v179 = vld [vmem:[%s173 + $0x10] sm:$0xf]
                %180 = vst [vmem:[%s174 + $0x8] sm:$0xf] %v179
                %v181 = vld [vmem:[%s173 + $0x18] sm:$0xf]
                %182 = vst [vmem:[%s174 + $0xc] sm:$0xf] %v181
              $region41: #{infini_wrapper_forward.5} parent=35 // loop_footer
                %s172 = sadd.s32 1, %s168
              $region42: #{infini_wrapper_forward.5} parent=35 // loop_footer_branch
                %167 = sbr.rel target = $region38
              $region43: #{infini_wrapper_forward.5} parent=35 // loop_exit
                _
            $region36: #{infini_wrapper_forward.5} parent=27 // pred_fallthru
              _
          $region28: #{infini_wrapper_forward.5} parent=23 // pred_fallthru
            _
          %210 = vnop
        $region24: #{infini_wrapper_forward.5} parent=15 // pred_fallthru
          _
        // Predicated region
        $region62: #{infini_wrapper_forward.5} parent=15 // pred_check
          %p211 = pneg %p93
        $region63: #{infini_wrapper_forward.5} parent=15 // pred_check_branch
          %213 = sbr.rel (%p211) target = $region65
        $region64: #{infini_wrapper_forward.5} parent=15 // pred_region
          %p214 = scmp.lt.s32.totalorder %s16, 1
          %s215 = scalar_select %p214, %s16, 1
          %s216 = smul.addr %s215, 8
          %s217 = scalar_lea.vmem %s2, %s216
        $region65: #{infini_wrapper_forward.5} parent=15 // pred_fallthru
          _
      $region16: #{infini_wrapper_forward.5} parent=5 // pred_fallthru
        _
      %p218 = scmp.le.s32.totalorder 1, %s9
      %p219 = scmp.lt.s32.totalorder %s9, 5
      %p220 = pnand %p218, %p219
      %p221 = pneg %p220
      // Predicated region
      $region66: #{infini_wrapper_forward.5} parent=5 // pred_check
        _
      $region67: #{infini_wrapper_forward.5} parent=5 // pred_check_branch
        %223 = sbr.rel (%p220) target = $region69
      $region68: #{infini_wrapper_forward.5} parent=5 // pred_region
        %s224 = ssub.s32 %s9, 1
        %s225 = sand.u32 %s60, 1
        %s226 = sand.u32 %s60, 1
        %s227 = smul.addr %s226, 16
        %s228 = scalar_lea.vmem [#allocation5], %s227
        // Predicated region
        $region70: #{infini_wrapper_forward.5} parent=68 // pred_check
          %p229 = pneg %p73
        $region71: #{infini_wrapper_forward.5} parent=68 // pred_check_branch
          %231 = sbr.rel (%p229) target = $region73
        $region72: #{infini_wrapper_forward.5} parent=68 // pred_region
          _
        $region73: #{infini_wrapper_forward.5} parent=68 // pred_fallthru
          _
        %p232 = scmp.lt.s32.totalorder %s18, 1
        %s233 = scalar_select %p232, %s18, 1
        %s234 = smul.addr %s233, 4
        %s235 = scalar_lea.vmem %s0, %s234
        %p236 = pneg %p47
        %p237 = pneg %p44
        %s238 = sand.u32 %s60, 1
        %s239 = sand.u32 %s60, 1
        %s240 = smul.addr %s239, 16
        %s241 = scalar_lea.vmem [#allocation5], %s240
        %p242 = pneg %p73
        %p243 = pneg %p70
        %p244 = scmp.lt.s32.totalorder %s18, 1
        %s245 = scalar_select %p244, %s18, 1
        %s246 = smul.addr %s245, 8
        %s247 = scalar_lea.vmem %s2, %s246
        %p248 = pneg %p99
        %p249 = pneg %p96
        %p250 = pneg %p125
        %p251 = pneg %p122
        %p252 = scmp.lt.s32.totalorder %s18, 1
        %s253 = scalar_select %p252, %s18, 1
        %s254 = scalar_lea.vmem %s3, %s253
        %p255 = scmp.lt.s32.totalorder %s18, 1
        %s256 = scalar_select %p255, %s18, 1
        %s257 = smul.addr %s256, 4
        %s258 = scalar_lea.vmem %s0, %s257
        %p259 = scmp.lt.s32.totalorder %s18, 1
        %s260 = scalar_select %p259, %s18, 1
        %s261 = smul.addr %s260, 8
        %s262 = scalar_lea.vmem %s2, %s261
        %p263 = scmp.lt.s32.totalorder %s18, 1
        %s264 = scalar_select %p263, %s18, 1
        %s265 = scalar_lea.vmem %s3, %s264
        %p267 = scmp.eq.s32.totalorder %s19, 0
        // Predicated region
        $region74: #{infini_wrapper_forward.5} parent=68 // pred_check
          %p268 = pneg %p267
        $region75: #{infini_wrapper_forward.5} parent=68 // pred_check_branch
          %270 = sbr.rel (%p268) target = $region77
        $region76: #{infini_wrapper_forward.5} parent=68 // pred_region
          %vm271 = vcmask 7168
          %272 = vst.msk [vmem:[#allocation2] sm:$0xff] %vm271, -inf
          %273 = vst.msk [vmem:[#allocation3] sm:$0xff] %vm271, 0.0
          %274 = vst.msk [vmem:[#allocation4] sm:$0xff] %vm271, 0.0
        $region77: #{infini_wrapper_forward.5} parent=68 // pred_fallthru
          _
        %v275 = vld [vmem:[%s258] sm:$0xf]
        %v276 = vld [vmem:[%s228] sm:$0xf]
        %v277 = vld [vmem:[%s228 + $0x4] sm:$0xf]
        %v278 = vld [vmem:[%s228 + $0x8] sm:$0xf]
        %v279 = vld [vmem:[%s228 + $0xc] sm:$0xf]
        %v284 = vunpack.c.l.b16 %v276
        %v285 = vunpack.c.l.b16 %v277
        %v286 = vunpack.c.l.b16 %v278
        %v287 = vunpack.c.l.b16 %v279
        %v288 = vpack.c.b16 %v285, %v284
        %v289 = vpack.c.b16 %v287, %v286
        %vm292 = vcmask 261120
        %v294 = vsel %vm292, %v275, 0
        %296 = vmatprep.subr.bf16.mxu0 0
        %297 = vmatpush1.bf16.msra.mxu0 %v288
        %298 = vmatprep.subr.bf16.mxu0 0
        %299 = vmatpush1.bf16.msra.mxu0 %v289
        %300 = vmatprep.subr.bf16.mxu0 0
        %301 = vmatpush1.bf16.msra.mxu0 0
        %302 = vmatprep.subr.bf16.mxu0 0
        %303 = vmatpush1.bf16.msra.mxu0 0
        %304 = vmatprep.subr.bf16.mxu0 0
        %305 = vmatpush1.bf16.msra.mxu0 0
        %306 = vmatprep.subr.bf16.mxu0 0
        %307 = vmatpush1.bf16.msra.mxu0 0
        %308 = vmatprep.subr.bf16.mxu0 0
        %309 = vmatpush1.bf16.msra.mxu0 0
        %310 = vmatprep.subr.bf16.mxu0 0
        %311 = vmatpush1.bf16.msra.mxu0 0
        %312 = vmatprep.subr.bf16.mxu0 0
        %313 = vmatpush1.bf16.msra.mxu0 0
        %314 = vmatprep.subr.bf16.mxu0 0
        %315 = vmatpush1.bf16.msra.mxu0 0
        %316 = vmatprep.subr.bf16.mxu0 0
        %317 = vmatpush1.bf16.msra.mxu0 0
        %318 = vmatprep.subr.bf16.mxu0 0
        %319 = vmatpush1.bf16.msra.mxu0 0
        %320 = vmatprep.subr.bf16.mxu0 0
        %321 = vmatpush1.bf16.msra.mxu0 0
        %322 = vmatprep.subr.bf16.mxu0 0
        %323 = vmatpush1.bf16.msra.mxu0 0
        %324 = vmatprep.subr.bf16.mxu0 0
        %325 = vmatpush1.bf16.msra.mxu0 0
        %326 = vmatprep.subr.bf16.mxu0 0
        %327 = vmatpush1.bf16.msra.mxu0 0
        %328 = vmatprep.mubr.bf16.mxu0 0
        %329 = vmatmul.mubr.bf16.gmra.mrb[0].mxu0 %v294
        %v330 = vpop.f32.mrb[0].mxu0
        %v331 = vadd.f32 0.0, %v330
        %v332 = vpop.f32.mrb[0].mxu0
        %v333 = vpop.f32.mrb[0].mxu0
        %v334 = vpop.f32.mrb[0].mxu0
        %335 = vdwg.mxu0
        %v336 = vld [vmem:[%s262] sm:$0xff]
        %v337 = vlaneseq
        %v338 = vand.u32 %v337, 127
        %s339 = smul.u32 %s19, 128
        %v340 = vstv %s339
        %v341 = vadd.s32 %v338, %v340
        %342 = vset.pattern.permute.xlu0 0
        %343 = vperm.xlu0 %342, %v336
        %v344 = vpop.permute.xlu0 %343
        %vm345 = vcmp.eq.s32.totalorder %v341, %v344
        %v346 = vsel %vm345, %v331, 0.0
        %347 = vadd.xlane.f32.xlu0 %v346
        %v348 = vpop.xlane.xlu0 %347
        %v349 = vld [vmem:[#allocation4] sm:$0xff]
        %v350 = vadd.f32 %v349, %v348
        %vm351 = vcmask 7168
        %352 = vst.msk [vmem:[#allocation4] sm:$0xff] %vm351, %v350
        %v353 = vld [vmem:[#allocation2] sm:$0xff]
        %354 = vmax.xlane.f32.xlu0 %v331
        %v355 = vpop.xlane.xlu0 %354
        %v356 = vmax.f32 %v353, %v355
        %v357 = vld [vmem:[#allocation3] sm:$0xff]
        %v358 = vsub.f32 %v353, %v356
        %v359 = vmul.f32 %v358, 1.442695
        %v360 = vpow.pop %v359
        %v361 = vmul.f32 %v357, %v360
        %363 = vset.pattern.permute.xlu0 0
        %364 = vperm.xlu0 %363, %v356
        %v365 = vpop.permute.xlu0 %364
        %v367 = vsub.f32 %v331, %v365
        %v368 = vmul.f32 %v367, 1.442695
        %v369 = vpow.pop %v368
        %370 = vadd.xlane.f32.xlu0 %v369
        %v371 = vpop.xlane.xlu0 %370
        %v372 = vadd.f32 %v361, %v371
        %373 = vst.msk [vmem:[#allocation3] sm:$0xff] %vm351, %v372
        %374 = vst.msk [vmem:[#allocation2] sm:$0xff] %vm351, %v356
        %p375 = scmp.eq.s32.totalorder %s19, 1
        // Predicated region
        $region78: #{infini_wrapper_forward.5} parent=68 // pred_check
          %p376 = pneg %p375
        $region79: #{infini_wrapper_forward.5} parent=68 // pred_check_branch
          %378 = sbr.rel (%p376) target = $region81
        $region80: #{infini_wrapper_forward.5} parent=68 // pred_region
          %v379 = vld [vmem:[#allocation2] sm:$0xff]
          %v380 = vld [vmem:[#allocation3] sm:$0xff]
          %v381 = vlog2.pop %v380
          %v382 = vmul.f32 %v381, 0.6931472
          %v383 = vadd.f32 %v379, %v382
          %v384 = vld [vmem:[#allocation4] sm:$0xff]
          %v385 = vsub.f32 %v383, %v384
          %vm386 = vcmp.ne.s32.totalorder %v336, 4294967295
          %v387 = vsel %vm386, %v385, 0.0
          %v388 = vsel %vm351, %v387, 0.0
          %389 = vadd.xlane.f32.xlu0 %v388
          %v390 = vpop.xlane.xlu0 %389
          %v391 = vrot.slane %v390, 4
          %v392 = vadd.f32 %v390, %v391
          %v393 = vrot.slane %v392, 2
          %v394 = vadd.f32 %v392, %v393
          %v395 = vrot.slane %v394, 1
          %v396 = vadd.f32 %v394, %v395
          %s397 = vtos %v396
          %v398 = vstv %s397
          %vm399 = vcmask 0
          %400 = vst.msk [vmem:[%s265] sm:$0x1] %vm399, %v398
        $region81: #{infini_wrapper_forward.5} parent=68 // pred_fallthru
          _
        %p401 = scmp.lt.s32.totalorder %s18, 1
        %s402 = scalar_select %p401, %s18, 1
        %s403 = scalar_lea.vmem %s3, %s402
        // Predicated region
        $region82: #{infini_wrapper_forward.5} parent=68 // pred_check
          %p404 = pneg %p122
        $region83: #{infini_wrapper_forward.5} parent=68 // pred_check_branch
          %406 = sbr.rel (%p404) target = $region85
        $region84: #{infini_wrapper_forward.5} parent=68 // pred_region
          _
        $region85: #{infini_wrapper_forward.5} parent=68 // pred_fallthru
          _
      $region69: #{infini_wrapper_forward.5} parent=5 // pred_fallthru
        _
      %p407 = scmp.le.s32.totalorder 2, %s9
      // Predicated region
      $region86: #{infini_wrapper_forward.5} parent=5 // pred_check
        %p408 = pneg %p407
      $region87: #{infini_wrapper_forward.5} parent=5 // pred_check_branch
        %410 = sbr.rel (%p408) target = $region89
      $region88: #{infini_wrapper_forward.5} parent=5 // pred_region
        %s411 = ssub.s32 %s9, 2
        // Predicated region
        $region90: #{infini_wrapper_forward.5} parent=88 // pred_check
          %p412 = pneg %p128
        $region91: #{infini_wrapper_forward.5} parent=88 // pred_check_branch
          %414 = sbr.rel (%p412) target = $region93
        $region92: #{infini_wrapper_forward.5} parent=88 // pred_region
          %p415 = scmp.lt.s32.totalorder %s20, 1
          %s416 = scalar_select %p415, %s20, 1
          %s417 = scalar_lea.vmem %s3, %s416
        $region93: #{infini_wrapper_forward.5} parent=88 // pred_fallthru
          _
      $region89: #{infini_wrapper_forward.5} parent=5 // pred_fallthru
        _
    $region6: #{infini_wrapper_forward.5} parent=1 // loop_footer
      %s13 = sadd.s32 1, %s9
    $region7: #{infini_wrapper_forward.5} parent=1 // loop_footer_branch
      %8 = sbr.rel target = $region3
    $region8: #{infini_wrapper_forward.5} parent=1 // loop_exit
      _

// kernel: infini_wrapper_forward.4
$region0: #{infini_wrapper_forward.4}
  #allocation0 [shape = 'u32[]', space=smem, size = 0x4, offset = 0x4, fixed_abs, tag = 'smem constant byte address 0x4 - core index']
  #allocation1 [shape = 'u32[144,128]{1,0:T(1,128)}', space=vmem, size = 0x12000, scoped, tag = 'internal scratch']
  #allocation2 [shape = 'f32[8,32]{1,0:T(8,128)}', space=vmem, size = 0x1000, scoped, tag = 'scratch operand']
  %s0 = inlined_call_operand.vmem [shape: f32[2,8,32], index: 0, kind: input, shape index: {}]
  %s1 = inlined_call_operand.vmem [shape: f32[2,1,32], index: 1, kind: input, shape index: {}]
  %s2 = inlined_call_operand.vmem [shape: bf16[2,32,96], index: 2, kind: input, shape index: {}]
  %s3 = inlined_call_operand.vmem [shape: bf16[2,32,32], index: 3, kind: input, shape index: {}]
  %s4 = inlined_call_operand.vmem [shape: f32[2,2,1,1], index: 4, kind: input, shape index: {}]
  %s5 = inlined_call_operand.vmem [shape: f32[2,1,32], index: 5, kind: input, shape index: {}]
  %s6 = inlined_call_operand.vmem [shape: bf16[2,32,128], index: 6, kind: input, shape index: {}]
  %s7 = inlined_call_operand.vmem [shape: f32[2,1,128], index: 7, kind: input, shape index: {}]
  %s8 = inlined_call_operand.vmem [shape: bf16[2,128,32], index: 8, kind: input, shape index: {}]
  %s9 = inlined_call_operand.vmem [shape: f32[2,1,32], index: 9, kind: input, shape index: {}]
  %s10 = inlined_call_operand.vmem [shape: f32[1,1,32], index: 10, kind: input, shape index: {}]
  %s11 = inlined_call_operand.vmem [shape: f32[2,2,32,16], index: 11, kind: input, shape index: {}]
  %s12 = inlined_call_operand.vmem [shape: f32[2,2,2,16], index: 12, kind: input, shape index: {}]
  %s13 = inlined_call_operand.vmem [shape: bf16[2,8,32], index: 13, kind: output, shape index: {0}]
  %s14 = inlined_call_operand.vmem [shape: f32[2,2,32,16], index: 14, kind: output, shape index: {1}]
  %s15 = inlined_call_operand.vmem [shape: f32[2,2,2,16], index: 15, kind: output, shape index: {2}]
  %16 = xla_tuple %s13, %s14, %s15
  %s17 = sld [smem:[#allocation0]]
  $region109: #{infini_wrapper_forward.4} parent=0
    _
  %s19 = ssub.s32 1, %s17
  %s20 = scalar_select 0, %s19, %s17
  loop: start=0, step=1, limit=6
  $region2: #{infini_wrapper_forward.4} parent=0 // loop_pre_header
    _
  $region3: #{infini_wrapper_forward.4} parent=0 // loop_header
    %s22 = sphi 0, %s26
    %p23 = scmp.ge.s32.totalorder %s22, 6
    %s29 = sphi 0, %s41
    %s30 = sphi 0, %s37
    %s31 = sphi 0, %s29
    %s32 = sphi 0, %s30
    %s33 = sphi 0, %s31
    %s34 = sphi 0, %s32
    %s44 = sphi 0, %s46
    %s47 = sphi 0, %s44
    %s48 = sphi 0, %s47
    %s64 = sphi 0, %s48
    %s70 = sphi 0, %s72
    %s73 = sphi 0, %s70
    %s74 = sphi 0, %s73
    %s90 = sphi 0, %s74
    %s96 = sphi 0, %s98
    %s99 = sphi 0, %s96
    %s100 = sphi 0, %s99
    %s116 = sphi 0, %s100
    %s122 = sphi 0, %s124
    %s125 = sphi 0, %s122
    %s126 = sphi 0, %s125
    %s142 = sphi 0, %s126
    %s148 = sphi 0, %s150
    %s151 = sphi 0, %s148
    %s152 = sphi 0, %s151
    %s168 = sphi 0, %s152
    %s174 = sphi 0, %s176
    %s177 = sphi 0, %s174
    %s178 = sphi 0, %s177
    %s194 = sphi 0, %s178
    %s200 = sphi 0, %s202
    %s203 = sphi 0, %s200
    %s204 = sphi 0, %s203
    %s220 = sphi 0, %s204
    %s226 = sphi 0, %s228
    %s229 = sphi 0, %s226
    %s230 = sphi 0, %s229
    %s246 = sphi 0, %s230
    %s252 = sphi 0, %s254
    %s255 = sphi 0, %s252
    %s256 = sphi 0, %s255
    %s272 = sphi 0, %s256
    %s278 = sphi 0, %s280
    %s281 = sphi 0, %s278
    %s282 = sphi 0, %s281
    %s298 = sphi 0, %s282
    %s302 = sphi 0, %s302
    %s304 = sphi 0, %s302
    %s305 = sphi 0, %s304
    %s319 = sphi 0, %s305
    %s327 = sphi 0, %s329
    %s330 = sphi 0, %s327
    %s331 = sphi 0, %s330
    %s347 = sphi 0, %s331
    %s355 = sphi 0, %s357
    %s358 = sphi 0, %s355
    %s359 = sphi 0, %s358
    %s375 = sphi 0, %s359
    %s381 = sphi 0, %s383
    %s384 = sphi 0, %s381
    %s385 = sphi 0, %s384
    %s401 = sphi 0, %s385
    %s409 = sphi 0, %s411
    %s412 = sphi 0, %s409
    %s413 = sphi 0, %s412
    %s429 = sphi 0, %s413
    %s437 = sphi 0, %s439
    %s440 = sphi 0, %s437
    %s441 = sphi 0, %s440
    %s457 = sphi 0, %s441
  $region4: #{infini_wrapper_forward.4} parent=0 // loop_header_branch
    %25 = sbr.rel (%p23) target = $region8
  $region5: #{infini_wrapper_forward.4} parent=0 // loop_body
    %s27 = ssub.s32 %s22, 1
    %s28 = ssub.s32 %s22, 2
    %s35 = sadd.s32 1, %s30
    %p36 = scmp.ge.s32.totalorder %s35, 2
    %s37 = scalar_select %p36, 0, %s35
    %s38 = sadd.s32 1, %s29
    %s39 = scalar_select %p36, %s38, %s29
    %p40 = scmp.ge.s32.totalorder %s39, 2
    %s41 = scalar_select %p40, 0, %s39
    %s42 = ssub.s32 %s29, %s41
    %p43 = scmp.eq.s32.totalorder %s42, 0
    %s45 = sadd.s32 %s44, 1
    %s46 = scalar_select %p43, %s44, %s45
    %p49 = pneg %p43
    %p50 = scmp.eq.s32.totalorder %s22, 3
    %p51 = por %p49, %p50
    %p52 = scmp.ne.s32.totalorder %s44, %s47
    %p53 = scmp.eq.s32.totalorder %s22, 0
    %p54 = por %p52, %p53
    %p55 = scmp.ne.s32.totalorder %s44, %s47
    %p56 = scmp.eq.s32.totalorder %s27, 3
    %p57 = por %p55, %p56
    %p58 = scmp.ne.s32.totalorder %s47, %s48
    %p59 = scmp.eq.s32.totalorder %s27, 0
    %p60 = por %p58, %p59
    %p61 = scmp.ne.s32.totalorder %s47, %s48
    %p62 = scmp.eq.s32.totalorder %s28, 3
    %p63 = por %p61, %p62
    %p65 = scmp.ne.s32.totalorder %s48, %s64
    %p66 = scmp.eq.s32.totalorder %s28, 0
    %p67 = por %p65, %p66
    %s68 = ssub.s32 %s30, %s37
    %p69 = scmp.eq.s32.totalorder %s68, 0
    %s71 = sadd.s32 %s70, 1
    %s72 = scalar_select %p69, %s70, %s71
    %p75 = pneg %p69
    %p76 = scmp.eq.s32.totalorder %s22, 3
    %p77 = por %p75, %p76
    %p78 = scmp.ne.s32.totalorder %s70, %s73
    %p79 = scmp.eq.s32.totalorder %s22, 0
    %p80 = por %p78, %p79
    %p81 = scmp.ne.s32.totalorder %s70, %s73
    %p82 = scmp.eq.s32.totalorder %s27, 3
    %p83 = por %p81, %p82
    %p84 = scmp.ne.s32.totalorder %s73, %s74
    %p85 = scmp.eq.s32.totalorder %s27, 0
    %p86 = por %p84, %p85
    %p87 = scmp.ne.s32.totalorder %s73, %s74
    %p88 = scmp.eq.s32.totalorder %s28, 3
    %p89 = por %p87, %p88
    %p91 = scmp.ne.s32.totalorder %s74, %s90
    %p92 = scmp.eq.s32.totalorder %s28, 0
    %p93 = por %p91, %p92
    %s94 = ssub.s32 %s30, %s37
    %p95 = scmp.eq.s32.totalorder %s94, 0
    %s97 = sadd.s32 %s96, 1
    %s98 = scalar_select %p95, %s96, %s97
    %p101 = pneg %p95
    %p102 = scmp.eq.s32.totalorder %s22, 3
    %p103 = por %p101, %p102
    %p104 = scmp.ne.s32.totalorder %s96, %s99
    %p105 = scmp.eq.s32.totalorder %s22, 0
    %p106 = por %p104, %p105
    %p107 = scmp.ne.s32.totalorder %s96, %s99
    %p108 = scmp.eq.s32.totalorder %s27, 3
    %p109 = por %p107, %p108
    %p110 = scmp.ne.s32.totalorder %s99, %s100
    %p111 = scmp.eq.s32.totalorder %s27, 0
    %p112 = por %p110, %p111
    %p113 = scmp.ne.s32.totalorder %s99, %s100
    %p114 = scmp.eq.s32.totalorder %s28, 3
    %p115 = por %p113, %p114
    %p117 = scmp.ne.s32.totalorder %s100, %s116
    %p118 = scmp.eq.s32.totalorder %s28, 0
    %p119 = por %p117, %p118
    %s120 = ssub.s32 %s30, %s37
    %p121 = scmp.eq.s32.totalorder %s120, 0
    %s123 = sadd.s32 %s122, 1
    %s124 = scalar_select %p121, %s122, %s123
    %p127 = pneg %p121
    %p128 = scmp.eq.s32.totalorder %s22, 3
    %p129 = por %p127, %p128
    %p130 = scmp.ne.s32.totalorder %s122, %s125
    %p131 = scmp.eq.s32.totalorder %s22, 0
    %p132 = por %p130, %p131
    %p133 = scmp.ne.s32.totalorder %s122, %s125
    %p134 = scmp.eq.s32.totalorder %s27, 3
    %p135 = por %p133, %p134
    %p136 = scmp.ne.s32.totalorder %s125, %s126
    %p137 = scmp.eq.s32.totalorder %s27, 0
    %p138 = por %p136, %p137
    %p139 = scmp.ne.s32.totalorder %s125, %s126
    %p140 = scmp.eq.s32.totalorder %s28, 3
    %p141 = por %p139, %p140
    %p143 = scmp.ne.s32.totalorder %s126, %s142
    %p144 = scmp.eq.s32.totalorder %s28, 0
    %p145 = por %p143, %p144
    %s146 = ssub.s32 %s30, %s37
    %p147 = scmp.eq.s32.totalorder %s146, 0
    %s149 = sadd.s32 %s148, 1
    %s150 = scalar_select %p147, %s148, %s149
    %p153 = pneg %p147
    %p154 = scmp.eq.s32.totalorder %s22, 3
    %p155 = por %p153, %p154
    %p156 = scmp.ne.s32.totalorder %s148, %s151
    %p157 = scmp.eq.s32.totalorder %s22, 0
    %p158 = por %p156, %p157
    %p159 = scmp.ne.s32.totalorder %s148, %s151
    %p160 = scmp.eq.s32.totalorder %s27, 3
    %p161 = por %p159, %p160
    %p162 = scmp.ne.s32.totalorder %s151, %s152
    %p163 = scmp.eq.s32.totalorder %s27, 0
    %p164 = por %p162, %p163
    %p165 = scmp.ne.s32.totalorder %s151, %s152
    %p166 = scmp.eq.s32.totalorder %s28, 3
    %p167 = por %p165, %p166
    %p169 = scmp.ne.s32.totalorder %s152, %s168
    %p170 = scmp.eq.s32.totalorder %s28, 0
    %p171 = por %p169, %p170
    %s172 = ssub.s32 %s30, %s37
    %p173 = scmp.eq.s32.totalorder %s172, 0
    %s175 = sadd.s32 %s174, 1
    %s176 = scalar_select %p173, %s174, %s175
    %p179 = pneg %p173
    %p180 = scmp.eq.s32.totalorder %s22, 3
    %p181 = por %p179, %p180
    %p182 = scmp.ne.s32.totalorder %s174, %s177
    %p183 = scmp.eq.s32.totalorder %s22, 0
    %p184 = por %p182, %p183
    %p185 = scmp.ne.s32.totalorder %s174, %s177
    %p186 = scmp.eq.s32.totalorder %s27, 3
    %p187 = por %p185, %p186
    %p188 = scmp.ne.s32.totalorder %s177, %s178
    %p189 = scmp.eq.s32.totalorder %s27, 0
    %p190 = por %p188, %p189
    %p191 = scmp.ne.s32.totalorder %s177, %s178
    %p192 = scmp.eq.s32.totalorder %s28, 3
    %p193 = por %p191, %p192
    %p195 = scmp.ne.s32.totalorder %s178, %s194
    %p196 = scmp.eq.s32.totalorder %s28, 0
    %p197 = por %p195, %p196
    %s198 = ssub.s32 %s30, %s37
    %p199 = scmp.eq.s32.totalorder %s198, 0
    %s201 = sadd.s32 %s200, 1
    %s202 = scalar_select %p199, %s200, %s201
    %p205 = pneg %p199
    %p206 = scmp.eq.s32.totalorder %s22, 3
    %p207 = por %p205, %p206
    %p208 = scmp.ne.s32.totalorder %s200, %s203
    %p209 = scmp.eq.s32.totalorder %s22, 0
    %p210 = por %p208, %p209
    %p211 = scmp.ne.s32.totalorder %s200, %s203
    %p212 = scmp.eq.s32.totalorder %s27, 3
    %p213 = por %p211, %p212
    %p214 = scmp.ne.s32.totalorder %s203, %s204
    %p215 = scmp.eq.s32.totalorder %s27, 0
    %p216 = por %p214, %p215
    %p217 = scmp.ne.s32.totalorder %s203, %s204
    %p218 = scmp.eq.s32.totalorder %s28, 3
    %p219 = por %p217, %p218
    %p221 = scmp.ne.s32.totalorder %s204, %s220
    %p222 = scmp.eq.s32.totalorder %s28, 0
    %p223 = por %p221, %p222
    %s224 = ssub.s32 %s30, %s37
    %p225 = scmp.eq.s32.totalorder %s224, 0
    %s227 = sadd.s32 %s226, 1
    %s228 = scalar_select %p225, %s226, %s227
    %p231 = pneg %p225
    %p232 = scmp.eq.s32.totalorder %s22, 3
    %p233 = por %p231, %p232
    %p234 = scmp.ne.s32.totalorder %s226, %s229
    %p235 = scmp.eq.s32.totalorder %s22, 0
    %p236 = por %p234, %p235
    %p237 = scmp.ne.s32.totalorder %s226, %s229
    %p238 = scmp.eq.s32.totalorder %s27, 3
    %p239 = por %p237, %p238
    %p240 = scmp.ne.s32.totalorder %s229, %s230
    %p241 = scmp.eq.s32.totalorder %s27, 0
    %p242 = por %p240, %p241
    %p243 = scmp.ne.s32.totalorder %s229, %s230
    %p244 = scmp.eq.s32.totalorder %s28, 3
    %p245 = por %p243, %p244
    %p247 = scmp.ne.s32.totalorder %s230, %s246
    %p248 = scmp.eq.s32.totalorder %s28, 0
    %p249 = por %p247, %p248
    %s250 = ssub.s32 %s30, %s37
    %p251 = scmp.eq.s32.totalorder %s250, 0
    %s253 = sadd.s32 %s252, 1
    %s254 = scalar_select %p251, %s252, %s253
    %p257 = pneg %p251
    %p258 = scmp.eq.s32.totalorder %s22, 3
    %p259 = por %p257, %p258
    %p260 = scmp.ne.s32.totalorder %s252, %s255
    %p261 = scmp.eq.s32.totalorder %s22, 0
    %p262 = por %p260, %p261
    %p263 = scmp.ne.s32.totalorder %s252, %s255
    %p264 = scmp.eq.s32.totalorder %s27, 3
    %p265 = por %p263, %p264
    %p266 = scmp.ne.s32.totalorder %s255, %s256
    %p267 = scmp.eq.s32.totalorder %s27, 0
    %p268 = por %p266, %p267
    %p269 = scmp.ne.s32.totalorder %s255, %s256
    %p270 = scmp.eq.s32.totalorder %s28, 3
    %p271 = por %p269, %p270
    %p273 = scmp.ne.s32.totalorder %s256, %s272
    %p274 = scmp.eq.s32.totalorder %s28, 0
    %p275 = por %p273, %p274
    %s276 = ssub.s32 %s30, %s37
    %p277 = scmp.eq.s32.totalorder %s276, 0
    %s279 = sadd.s32 %s278, 1
    %s280 = scalar_select %p277, %s278, %s279
    %p283 = pneg %p277
    %p284 = scmp.eq.s32.totalorder %s22, 3
    %p285 = por %p283, %p284
    %p286 = scmp.ne.s32.totalorder %s278, %s281
    %p287 = scmp.eq.s32.totalorder %s22, 0
    %p288 = por %p286, %p287
    %p289 = scmp.ne.s32.totalorder %s278, %s281
    %p290 = scmp.eq.s32.totalorder %s27, 3
    %p291 = por %p289, %p290
    %p292 = scmp.ne.s32.totalorder %s281, %s282
    %p293 = scmp.eq.s32.totalorder %s27, 0
    %p294 = por %p292, %p293
    %p295 = scmp.ne.s32.totalorder %s281, %s282
    %p296 = scmp.eq.s32.totalorder %s28, 3
    %p297 = por %p295, %p296
    %p299 = scmp.ne.s32.totalorder %s282, %s298
    %p300 = scmp.eq.s32.totalorder %s28, 0
    %p301 = por %p299, %p300
    %s303 = sadd.s32 %s302, 1
    %p306 = scmp.eq.s32.totalorder %s22, 3
    %p307 = scmp.ne.s32.totalorder %s302, %s304
    %p308 = scmp.eq.s32.totalorder %s22, 0
    %p309 = por %p307, %p308
    %p310 = scmp.ne.s32.totalorder %s302, %s304
    %p311 = scmp.eq.s32.totalorder %s27, 3
    %p312 = por %p310, %p311
    %p313 = scmp.ne.s32.totalorder %s304, %s305
    %p314 = scmp.eq.s32.totalorder %s27, 0
    %p315 = por %p313, %p314
    %p316 = scmp.ne.s32.totalorder %s304, %s305
    %p317 = scmp.eq.s32.totalorder %s28, 3
    %p318 = por %p316, %p317
    %p320 = scmp.ne.s32.totalorder %s305, %s319
    %p321 = scmp.eq.s32.totalorder %s28, 0
    %p322 = por %p320, %p321
    %s323 = ssub.s32 %s30, %s37
    %s324 = ssub.s32 %s29, %s41
    %s325 = sor.u32 %s323, %s324
    %p326 = scmp.eq.s32.totalorder %s325, 0
    %s328 = sadd.s32 %s327, 1
    %s329 = scalar_select %p326, %s327, %s328
    %p332 = pneg %p326
    %p333 = scmp.eq.s32.totalorder %s22, 3
    %p334 = por %p332, %p333
    %p335 = scmp.ne.s32.totalorder %s327, %s330
    %p336 = scmp.eq.s32.totalorder %s22, 0
    %p337 = por %p335, %p336
    %p338 = scmp.ne.s32.totalorder %s327, %s330
    %p339 = scmp.eq.s32.totalorder %s27, 3
    %p340 = por %p338, %p339
    %p341 = scmp.ne.s32.totalorder %s330, %s331
    %p342 = scmp.eq.s32.totalorder %s27, 0
    %p343 = por %p341, %p342
    %p344 = scmp.ne.s32.totalorder %s330, %s331
    %p345 = scmp.eq.s32.totalorder %s28, 3
    %p346 = por %p344, %p345
    %p348 = scmp.ne.s32.totalorder %s331, %s347
    %p349 = scmp.eq.s32.totalorder %s28, 0
    %p350 = por %p348, %p349
    %s351 = ssub.s32 %s30, %s37
    %s352 = ssub.s32 %s29, %s41
    %s353 = sor.u32 %s351, %s352
    %p354 = scmp.eq.s32.totalorder %s353, 0
    %s356 = sadd.s32 %s355, 1
    %s357 = scalar_select %p354, %s355, %s356
    %p360 = pneg %p354
    %p361 = scmp.eq.s32.totalorder %s22, 3
    %p362 = por %p360, %p361
    %p363 = scmp.ne.s32.totalorder %s355, %s358
    %p364 = scmp.eq.s32.totalorder %s22, 0
    %p365 = por %p363, %p364
    %p366 = scmp.ne.s32.totalorder %s355, %s358
    %p367 = scmp.eq.s32.totalorder %s27, 3
    %p368 = por %p366, %p367
    %p369 = scmp.ne.s32.totalorder %s358, %s359
    %p370 = scmp.eq.s32.totalorder %s27, 0
    %p371 = por %p369, %p370
    %p372 = scmp.ne.s32.totalorder %s358, %s359
    %p373 = scmp.eq.s32.totalorder %s28, 3
    %p374 = por %p372, %p373
    %p376 = scmp.ne.s32.totalorder %s359, %s375
    %p377 = scmp.eq.s32.totalorder %s28, 0
    %p378 = por %p376, %p377
    %s379 = ssub.s32 %s29, %s41
    %p380 = scmp.eq.s32.totalorder %s379, 0
    %s382 = sadd.s32 %s381, 1
    %s383 = scalar_select %p380, %s381, %s382
    %p386 = pneg %p380
    %p387 = scmp.eq.s32.totalorder %s22, 3
    %p388 = por %p386, %p387
    %p389 = scmp.ne.s32.totalorder %s381, %s384
    %p390 = scmp.eq.s32.totalorder %s22, 0
    %p391 = por %p389, %p390
    %p392 = scmp.ne.s32.totalorder %s381, %s384
    %p393 = scmp.eq.s32.totalorder %s27, 3
    %p394 = por %p392, %p393
    %p395 = scmp.ne.s32.totalorder %s384, %s385
    %p396 = scmp.eq.s32.totalorder %s27, 0
    %p397 = por %p395, %p396
    %p398 = scmp.ne.s32.totalorder %s384, %s385
    %p399 = scmp.eq.s32.totalorder %s28, 3
    %p400 = por %p398, %p399
    %p402 = scmp.ne.s32.totalorder %s385, %s401
    %p403 = scmp.eq.s32.totalorder %s28, 0
    %p404 = por %p402, %p403
    %s405 = ssub.s32 %s30, %s37
    %s406 = ssub.s32 %s29, %s41
    %s407 = sor.u32 %s405, %s406
    %p408 = scmp.eq.s32.totalorder %s407, 0
    %s410 = sadd.s32 %s409, 1
    %s411 = scalar_select %p408, %s409, %s410
    %p414 = pneg %p408
    %p415 = scmp.eq.s32.totalorder %s22, 3
    %p416 = por %p414, %p415
    %p417 = scmp.ne.s32.totalorder %s409, %s412
    %p418 = scmp.eq.s32.totalorder %s22, 0
    %p419 = por %p417, %p418
    %p420 = scmp.ne.s32.totalorder %s409, %s412
    %p421 = scmp.eq.s32.totalorder %s27, 3
    %p422 = por %p420, %p421
    %p423 = scmp.ne.s32.totalorder %s412, %s413
    %p424 = scmp.eq.s32.totalorder %s27, 0
    %p425 = por %p423, %p424
    %p426 = scmp.ne.s32.totalorder %s412, %s413
    %p427 = scmp.eq.s32.totalorder %s28, 3
    %p428 = por %p426, %p427
    %p430 = scmp.ne.s32.totalorder %s413, %s429
    %p431 = scmp.eq.s32.totalorder %s28, 0
    %p432 = por %p430, %p431
    %s433 = ssub.s32 %s30, %s37
    %s434 = ssub.s32 %s29, %s41
    %s435 = sor.u32 %s433, %s434
    %p436 = scmp.eq.s32.totalorder %s435, 0
    %s438 = sadd.s32 %s437, 1
    %s439 = scalar_select %p436, %s437, %s438
    %p442 = pneg %p436
    %p443 = scmp.eq.s32.totalorder %s22, 3
    %p444 = por %p442, %p443
    %p445 = scmp.ne.s32.totalorder %s437, %s440
    %p446 = scmp.eq.s32.totalorder %s22, 0
    %p447 = por %p445, %p446
    %p448 = scmp.ne.s32.totalorder %s437, %s440
    %p449 = scmp.eq.s32.totalorder %s27, 3
    %p450 = por %p448, %p449
    %p451 = scmp.ne.s32.totalorder %s440, %s441
    %p452 = scmp.eq.s32.totalorder %s27, 0
    %p453 = por %p451, %p452
    %p454 = scmp.ne.s32.totalorder %s440, %s441
    %p455 = scmp.eq.s32.totalorder %s28, 3
    %p456 = por %p454, %p455
    %p458 = scmp.ne.s32.totalorder %s441, %s457
    %p459 = scmp.eq.s32.totalorder %s28, 0
    %p460 = por %p458, %p459
    %p461 = scmp.le.s32.totalorder 1, %s22
    %p462 = scmp.lt.s32.totalorder %s22, 5
    %p463 = pnand %p461, %p462
    %p464 = pneg %p463
    // Predicated region
    $region9: #{infini_wrapper_forward.4} parent=5 // pred_check
      _
    $region10: #{infini_wrapper_forward.4} parent=5 // pred_check_branch
      %466 = sbr.rel (%p463) target = $region12
    $region11: #{infini_wrapper_forward.4} parent=5 // pred_region
      %s467 = ssub.s32 %s22, 1
      // Predicated region
      $region13: #{infini_wrapper_forward.4} parent=11 // pred_check
        %p468 = pneg %p315
      $region14: #{infini_wrapper_forward.4} parent=11 // pred_check_branch
        %470 = sbr.rel (%p468) target = $region16
      $region15: #{infini_wrapper_forward.4} parent=11 // pred_region
        _
      $region16: #{infini_wrapper_forward.4} parent=11 // pred_fallthru
        _
    $region12: #{infini_wrapper_forward.4} parent=5 // pred_fallthru
      _
    %p471 = scmp.lt.s32.totalorder %s22, 4
    // Predicated region
    $region17: #{infini_wrapper_forward.4} parent=5 // pred_check
      %p472 = pneg %p471
    $region18: #{infini_wrapper_forward.4} parent=5 // pred_check_branch
      %474 = sbr.rel (%p472) target = $region20
    $region19: #{infini_wrapper_forward.4} parent=5 // pred_region
      // Predicated region
      $region21: #{infini_wrapper_forward.4} parent=19 // pred_check
        %p475 = pneg %p54
      $region22: #{infini_wrapper_forward.4} parent=19 // pred_check_branch
        %477 = sbr.rel (%p475) target = $region24
      $region23: #{infini_wrapper_forward.4} parent=19 // pred_region
        %p478 = scmp.lt.s32.totalorder %s29, 1
        %s479 = scalar_select %p478, %s29, 1
        %s480 = smul.addr %s479, 8
        %s481 = scalar_lea.vmem %s0, %s480
      $region24: #{infini_wrapper_forward.4} parent=19 // pred_fallthru
        _
      // Predicated region
      $region25: #{infini_wrapper_forward.4} parent=19 // pred_check
        %p482 = pneg %p80
      $region26: #{infini_wrapper_forward.4} parent=19 // pred_check_branch
        %484 = sbr.rel (%p482) target = $region28
      $region27: #{infini_wrapper_forward.4} parent=19 // pred_region
        %p485 = scmp.lt.s32.totalorder %s30, 1
        %s486 = scalar_select %p485, %s30, 1
        %s487 = scalar_lea.vmem %s1, %s486
      $region28: #{infini_wrapper_forward.4} parent=19 // pred_fallthru
        _
      // Predicated region
      $region29: #{infini_wrapper_forward.4} parent=19 // pred_check
        %p488 = pneg %p106
      $region30: #{infini_wrapper_forward.4} parent=19 // pred_check_branch
        %490 = sbr.rel (%p488) target = $region32
      $region31: #{infini_wrapper_forward.4} parent=19 // pred_region
        %p491 = scmp.lt.s32.totalorder %s30, 1
        %s492 = scalar_select %p491, %s30, 1
        %s493 = smul.addr %s492, 4
        %s494 = smul.addr %s493, 4
        %s495 = scalar_lea.vmem %s2, %s494
      $region32: #{infini_wrapper_forward.4} parent=19 // pred_fallthru
        _
      // Predicated region
      $region33: #{infini_wrapper_forward.4} parent=19 // pred_check
        %p496 = pneg %p132
      $region34: #{infini_wrapper_forward.4} parent=19 // pred_check_branch
        %498 = sbr.rel (%p496) target = $region36
      $region35: #{infini_wrapper_forward.4} parent=19 // pred_region
        %p499 = scmp.lt.s32.totalorder %s30, 1
        %s500 = scalar_select %p499, %s30, 1
        %s501 = smul.addr %s500, 4
        %s502 = smul.addr %s501, 4
        %s503 = scalar_lea.vmem %s3, %s502
      $region36: #{infini_wrapper_forward.4} parent=19 // pred_fallthru
        _
      // Predicated region
      $region37: #{infini_wrapper_forward.4} parent=19 // pred_check
        %p504 = pneg %p158
      $region38: #{infini_wrapper_forward.4} parent=19 // pred_check_branch
        %506 = sbr.rel (%p504) target = $region40
      $region39: #{infini_wrapper_forward.4} parent=19 // pred_region
        %p507 = scmp.lt.s32.totalorder %s30, 1
        %s508 = scalar_select %p507, %s30, 1
        %s509 = smul.addr %s508, 2
        %s510 = scalar_lea.vmem %s4, %s509
      $region40: #{infini_wrapper_forward.4} parent=19 // pred_fallthru
        _
      // Predicated region
      $region41: #{infini_wrapper_forward.4} parent=19 // pred_check
        %p511 = pneg %p184
      $region42: #{infini_wrapper_forward.4} parent=19 // pred_check_branch
        %513 = sbr.rel (%p511) target = $region44
      $region43: #{infini_wrapper_forward.4} parent=19 // pred_region
        %p514 = scmp.lt.s32.totalorder %s30, 1
        %s515 = scalar_select %p514, %s30, 1
        %s516 = scalar_lea.vmem %s5, %s515
      $region44: #{infini_wrapper_forward.4} parent=19 // pred_fallthru
        _
      // Predicated region
      $region45: #{infini_wrapper_forward.4} parent=19 // pred_check
        %p517 = pneg %p210
      $region46: #{infini_wrapper_forward.4} parent=19 // pred_check_branch
        %519 = sbr.rel (%p517) target = $region48
      $region47: #{infini_wrapper_forward.4} parent=19 // pred_region
        %p520 = scmp.lt.s32.totalorder %s30, 1
        %s521 = scalar_select %p520, %s30, 1
        %s522 = smul.addr %s521, 4
        %s523 = smul.addr %s522, 4
        %s524 = scalar_lea.vmem %s6, %s523
      $region48: #{infini_wrapper_forward.4} parent=19 // pred_fallthru
        _
      // Predicated region
      $region49: #{infini_wrapper_forward.4} parent=19 // pred_check
        %p525 = pneg %p236
      $region50: #{infini_wrapper_forward.4} parent=19 // pred_check_branch
        %527 = sbr.rel (%p525) target = $region52
      $region51: #{infini_wrapper_forward.4} parent=19 // pred_region
        %p528 = scmp.lt.s32.totalorder %s30, 1
        %s529 = scalar_select %p528, %s30, 1
        %s530 = scalar_lea.vmem %s7, %s529
      $region52: #{infini_wrapper_forward.4} parent=19 // pred_fallthru
        _
      // Predicated region
      $region53: #{infini_wrapper_forward.4} parent=19 // pred_check
        %p531 = pneg %p262
      $region54: #{infini_wrapper_forward.4} parent=19 // pred_check_branch
        %533 = sbr.rel (%p531) target = $region56
      $region55: #{infini_wrapper_forward.4} parent=19 // pred_region
        %p534 = scmp.lt.s32.totalorder %s30, 1
        %s535 = scalar_select %p534, %s30, 1
        %s536 = smul.addr %s535, 16
        %s537 = smul.addr %s536, 4
        %s538 = scalar_lea.vmem %s8, %s537
      $region56: #{infini_wrapper_forward.4} parent=19 // pred_fallthru
        _
      // Predicated region
      $region57: #{infini_wrapper_forward.4} parent=19 // pred_check
        %p539 = pneg %p288
      $region58: #{infini_wrapper_forward.4} parent=19 // pred_check_branch
        %541 = sbr.rel (%p539) target = $region60
      $region59: #{infini_wrapper_forward.4} parent=19 // pred_region
        %p542 = scmp.lt.s32.totalorder %s30, 1
        %s543 = scalar_select %p542, %s30, 1
        %s544 = scalar_lea.vmem %s9, %s543
      $region60: #{infini_wrapper_forward.4} parent=19 // pred_fallthru
        _
      // Predicated region
      $region61: #{infini_wrapper_forward.4} parent=19 // pred_check
        %p545 = pneg %p337
      $region62: #{infini_wrapper_forward.4} parent=19 // pred_check_branch
        %547 = sbr.rel (%p545) target = $region64
      $region63: #{infini_wrapper_forward.4} parent=19 // pred_region
        %p548 = scmp.lt.s32.totalorder %s30, 1
        %s549 = scalar_select %p548, %s30, 1
        %p550 = scmp.lt.s32.totalorder %s29, 1
        %s551 = scalar_select %p550, %s29, 1
        %s552 = smul.addr %s551, 4
        %s553 = smul.addr %s549, 8
        %s554 = sadd.s32 %s552, %s553
        %s555 = smul.addr %s554, 8
        %s556 = scalar_lea.vmem %s11, %s555
      $region64: #{infini_wrapper_forward.4} parent=19 // pred_fallthru
        _
      // Predicated region
      $region65: #{infini_wrapper_forward.4} parent=19 // pred_check
        %p557 = pneg %p365
      $region66: #{infini_wrapper_forward.4} parent=19 // pred_check_branch
        %559 = sbr.rel (%p557) target = $region68
      $region67: #{infini_wrapper_forward.4} parent=19 // pred_region
        %p560 = scmp.lt.s32.totalorder %s30, 1
        %s561 = scalar_select %p560, %s30, 1
        %p562 = scmp.lt.s32.totalorder %s29, 1
        %s563 = scalar_select %p562, %s29, 1
        %s564 = smul.addr %s561, 2
        %s565 = sadd.s32 %s563, %s564
        %s566 = smul.addr %s565, 2
        %s567 = scalar_lea.vmem %s12, %s566
      $region68: #{infini_wrapper_forward.4} parent=19 // pred_fallthru
        _
    $region20: #{infini_wrapper_forward.4} parent=5 // pred_fallthru
      _
    %p568 = scmp.le.s32.totalorder 1, %s22
    %p569 = scmp.lt.s32.totalorder %s22, 5
    %p570 = pnand %p568, %p569
    %p571 = pneg %p570
    // Predicated region
    $region69: #{infini_wrapper_forward.4} parent=5 // pred_check
      _
    $region70: #{infini_wrapper_forward.4} parent=5 // pred_check_branch
      %573 = sbr.rel (%p570) target = $region72
    $region71: #{infini_wrapper_forward.4} parent=5 // pred_region
      %s574 = ssub.s32 %s22, 1
      %p575 = scmp.lt.s32.totalorder %s31, 1
      %s576 = scalar_select %p575, %s31, 1
      %s577 = smul.addr %s576, 8
      %s578 = scalar_lea.vmem %s0, %s577
      %p579 = pneg %p60
      %p580 = pneg %p57
      %p581 = scmp.lt.s32.totalorder %s32, 1
      %s582 = scalar_select %p581, %s32, 1
      %s583 = scalar_lea.vmem %s1, %s582
      %p584 = pneg %p86
      %p585 = pneg %p83
      %p586 = scmp.lt.s32.totalorder %s32, 1
      %s587 = scalar_select %p586, %s32, 1
      %s588 = smul.addr %s587, 4
      %s589 = smul.addr %s588, 4
      %s590 = scalar_lea.vmem %s2, %s589
      %p591 = pneg %p112
      %p592 = pneg %p109
      %p593 = scmp.lt.s32.totalorder %s32, 1
      %s594 = scalar_select %p593, %s32, 1
      %s595 = smul.addr %s594, 4
      %s596 = smul.addr %s595, 4
      %s597 = scalar_lea.vmem %s3, %s596
      %p598 = pneg %p138
      %p599 = pneg %p135
      %p600 = scmp.lt.s32.totalorder %s32, 1
      %s601 = scalar_select %p600, %s32, 1
      %s602 = smul.addr %s601, 2
      %s603 = scalar_lea.vmem %s4, %s602
      %p604 = pneg %p164
      %p605 = pneg %p161
      %p606 = scmp.lt.s32.totalorder %s32, 1
      %s607 = scalar_select %p606, %s32, 1
      %s608 = scalar_lea.vmem %s5, %s607
      %p609 = pneg %p190
      %p610 = pneg %p187
      %p611 = scmp.lt.s32.totalorder %s32, 1
      %s612 = scalar_select %p611, %s32, 1
      %s613 = smul.addr %s612, 4
      %s614 = smul.addr %s613, 4
      %s615 = scalar_lea.vmem %s6, %s614
      %p616 = pneg %p216
      %p617 = pneg %p213
      %p618 = scmp.lt.s32.totalorder %s32, 1
      %s619 = scalar_select %p618, %s32, 1
      %s620 = scalar_lea.vmem %s7, %s619
      %p621 = pneg %p242
      %p622 = pneg %p239
      %p623 = scmp.lt.s32.totalorder %s32, 1
      %s624 = scalar_select %p623, %s32, 1
      %s625 = smul.addr %s624, 16
      %s626 = smul.addr %s625, 4
      %s627 = scalar_lea.vmem %s8, %s626
      %p628 = pneg %p268
      %p629 = pneg %p265
      %p630 = scmp.lt.s32.totalorder %s32, 1
      %s631 = scalar_select %p630, %s32, 1
      %s632 = scalar_lea.vmem %s9, %s631
      %p633 = pneg %p294
      %p634 = pneg %p291
      %p635 = pneg %p315
      %p636 = pneg %p312
      %p637 = scmp.lt.s32.totalorder %s32, 1
      %s638 = scalar_select %p637, %s32, 1
      %p639 = scmp.lt.s32.totalorder %s31, 1
      %s640 = scalar_select %p639, %s31, 1
      %s641 = smul.addr %s640, 4
      %s642 = smul.addr %s638, 8
      %s643 = sadd.s32 %s641, %s642
      %s644 = smul.addr %s643, 8
      %s645 = scalar_lea.vmem %s11, %s644
      %p646 = pneg %p343
      %p647 = pneg %p340
      %p648 = scmp.lt.s32.totalorder %s32, 1
      %s649 = scalar_select %p648, %s32, 1
      %p650 = scmp.lt.s32.totalorder %s31, 1
      %s651 = scalar_select %p650, %s31, 1
      %s652 = smul.addr %s649, 2
      %s653 = sadd.s32 %s651, %s652
      %s654 = smul.addr %s653, 2
      %s655 = scalar_lea.vmem %s12, %s654
      %p656 = pneg %p371
      %p657 = pneg %p368
      %p658 = pneg %p397
      %p659 = pneg %p394
      %p660 = scmp.lt.s32.totalorder %s31, 1
      %s661 = scalar_select %p660, %s31, 1
      %s662 = smul.addr %s661, 4
      %s663 = scalar_lea.vmem %s13, %s662
      %p664 = pneg %p425
      %p665 = pneg %p422
      %p666 = scmp.lt.s32.totalorder %s32, 1
      %s667 = scalar_select %p666, %s32, 1
      %p668 = scmp.lt.s32.totalorder %s31, 1
      %s669 = scalar_select %p668, %s31, 1
      %s670 = smul.addr %s669, 4
      %s671 = smul.addr %s667, 8
      %s672 = sadd.s32 %s670, %s671
      %s673 = smul.addr %s672, 8
      %s674 = scalar_lea.vmem %s14, %s673
      %p675 = pneg %p453
      %p676 = pneg %p450
      %p677 = scmp.lt.s32.totalorder %s32, 1
      %s678 = scalar_select %p677, %s32, 1
      %p679 = scmp.lt.s32.totalorder %s31, 1
      %s680 = scalar_select %p679, %s31, 1
      %s681 = smul.addr %s678, 2
      %s682 = sadd.s32 %s680, %s681
      %s683 = smul.addr %s682, 2
      %s684 = scalar_lea.vmem %s15, %s683
      %p685 = scmp.lt.s32.totalorder %s31, 1
      %s686 = scalar_select %p685, %s31, 1
      %s687 = smul.addr %s686, 8
      %s688 = scalar_lea.vmem %s0, %s687
      %p689 = scmp.lt.s32.totalorder %s32, 1
      %s690 = scalar_select %p689, %s32, 1
      %s691 = scalar_lea.vmem %s1, %s690
      %p692 = scmp.lt.s32.totalorder %s32, 1
      %s693 = scalar_select %p692, %s32, 1
      %s694 = smul.addr %s693, 4
      %s695 = smul.addr %s694, 4
      %s696 = scalar_lea.vmem %s2, %s695
      %p697 = scmp.lt.s32.totalorder %s32, 1
      %s698 = scalar_select %p697, %s32, 1
      %s699 = smul.addr %s698, 4
      %s700 = smul.addr %s699, 4
      %s701 = scalar_lea.vmem %s3, %s700
      %p702 = scmp.lt.s32.totalorder %s32, 1
      %s703 = scalar_select %p702, %s32, 1
      %s704 = smul.addr %s703, 2
      %s705 = scalar_lea.vmem %s4, %s704
      %p706 = scmp.lt.s32.totalorder %s32, 1
      %s707 = scalar_select %p706, %s32, 1
      %s708 = scalar_lea.vmem %s5, %s707
      %p709 = scmp.lt.s32.totalorder %s32, 1
      %s710 = scalar_select %p709, %s32, 1
      %s711 = smul.addr %s710, 4
      %s712 = smul.addr %s711, 4
      %s713 = scalar_lea.vmem %s6, %s712
      %p714 = scmp.lt.s32.totalorder %s32, 1
      %s715 = scalar_select %p714, %s32, 1
      %s716 = scalar_lea.vmem %s7, %s715
      %p717 = scmp.lt.s32.totalorder %s32, 1
      %s718 = scalar_select %p717, %s32, 1
      %s719 = smul.addr %s718, 16
      %s720 = smul.addr %s719, 4
      %s721 = scalar_lea.vmem %s8, %s720
      %p722 = scmp.lt.s32.totalorder %s32, 1
      %s723 = scalar_select %p722, %s32, 1
      %s724 = scalar_lea.vmem %s9, %s723
      %p725 = scmp.lt.s32.totalorder %s32, 1
      %s726 = scalar_select %p725, %s32, 1
      %p727 = scmp.lt.s32.totalorder %s31, 1
      %s728 = scalar_select %p727, %s31, 1
      %s729 = smul.addr %s728, 4
      %s730 = smul.addr %s726, 8
      %s731 = sadd.s32 %s729, %s730
      %s732 = smul.addr %s731, 8
      %s733 = scalar_lea.vmem %s11, %s732
      %p734 = scmp.lt.s32.totalorder %s32, 1
      %s735 = scalar_select %p734, %s32, 1
      %p736 = scmp.lt.s32.totalorder %s31, 1
      %s737 = scalar_select %p736, %s31, 1
      %s738 = smul.addr %s735, 2
      %s739 = sadd.s32 %s737, %s738
      %s740 = smul.addr %s739, 2
      %s741 = scalar_lea.vmem %s12, %s740
      %p742 = scmp.lt.s32.totalorder %s31, 1
      %s743 = scalar_select %p742, %s31, 1
      %s744 = smul.addr %s743, 4
      %s745 = scalar_lea.vmem %s13, %s744
      %p746 = scmp.lt.s32.totalorder %s32, 1
      %s747 = scalar_select %p746, %s32, 1
      %p748 = scmp.lt.s32.totalorder %s31, 1
      %s749 = scalar_select %p748, %s31, 1
      %s750 = smul.addr %s749, 4
      %s751 = smul.addr %s747, 8
      %s752 = sadd.s32 %s750, %s751
      %s753 = smul.addr %s752, 8
      %s754 = scalar_lea.vmem %s14, %s753
      %p755 = scmp.lt.s32.totalorder %s32, 1
      %s756 = scalar_select %p755, %s32, 1
      %p757 = scmp.lt.s32.totalorder %s31, 1
      %s758 = scalar_select %p757, %s31, 1
      %s759 = smul.addr %s756, 2
      %s760 = sadd.s32 %s758, %s759
      %s761 = smul.addr %s760, 2
      %s762 = scalar_lea.vmem %s15, %s761
      %p764 = scmp.eq.s32.totalorder %s32, 0
      // Predicated region
      $region73: #{infini_wrapper_forward.4} parent=71 // pred_check
        %p765 = pneg %p764
      $region74: #{infini_wrapper_forward.4} parent=71 // pred_check_branch
        %767 = sbr.rel (%p765) target = $region76
      $region75: #{infini_wrapper_forward.4} parent=71 // pred_region
        %v768 = vld [vmem:[%s688] sm:$0xff]
        %vm769 = vcmask 261120
        %770 = vst.msk [vmem:[#allocation2] sm:$0xff] %vm769, %v768
      $region76: #{infini_wrapper_forward.4} parent=71 // pred_fallthru
        _
      %v771 = vld [vmem:[#allocation2] sm:$0xff]
      %v772 = vlaneseq
      %v773 = vshrl.u32 %v772, 7
      %v774 = vlaneseq
      %v775 = vand.u32 %v774, 127
      %vm776 = vcmp.le.s32.totalorder %v775, %v773
      %v777 = vld [vmem:[%s691] sm:$0x1]
      %v778 = vmul.f32 %v771, %v771
      %vm779 = vcmask 261120
      %v780 = vsel %vm779, %v778, 0.0
      %781 = vadd.xlane.f32.xlu0 %v780
      %v782 = vpop.xlane.xlu0 %781
      %v783 = vmax.f32 %v782, 1e-24
      %v784 = vrsqrt.pop %v783
      %v785 = vmul.f32 %v771, %v784
      %v786 = vmul.f32 %v785, 5.656854
      %v788 = vlaneseq
      %v789 = vshrl.u32 %v788, 7
      %v790 = vsub.s32 0, %v789
      %v791 = vrot.slane %v777, %v790
      %v793 = vmul.f32 %v786, %v791
      %v794 = vpack.c.bf16 %v793, %v793
      %v795 = vld [vmem:[%s696] sm:$0xf]
      %v796 = vld [vmem:[%s696 + $0x4] sm:$0xf]
      %v797 = vld [vmem:[%s696 + $0x8] sm:$0xf]
      %v798 = vld [vmem:[%s696 + $0xc] sm:$0xf]
      %v803 = vunpack.c.l.b16 %v795
      %v804 = vunpack.c.l.b16 %v796
      %v805 = vunpack.c.l.b16 %v797
      %v806 = vunpack.c.l.b16 %v798
      %v807 = vpack.c.b16 %v804, %v803
      %v808 = vpack.c.b16 %v806, %v805
      %v812 = vsel %vm779, %v794, 0
      %814 = vmatprep.subr.bf16.mxu0 0
      %815 = vmatpush1.bf16.msra.mxu0 %v807
      %816 = vmatprep.subr.bf16.mxu0 0
      %817 = vmatpush1.bf16.msra.mxu0 %v808
      %818 = vmatprep.subr.bf16.mxu0 0
      %819 = vmatpush1.bf16.msra.mxu0 0
      %820 = vmatprep.subr.bf16.mxu0 0
      %821 = vmatpush1.bf16.msra.mxu0 0
      %822 = vmatprep.subr.bf16.mxu0 0
      %823 = vmatpush1.bf16.msra.mxu0 0
      %824 = vmatprep.subr.bf16.mxu0 0
      %825 = vmatpush1.bf16.msra.mxu0 0
      %826 = vmatprep.subr.bf16.mxu0 0
      %827 = vmatpush1.bf16.msra.mxu0 0
      %828 = vmatprep.subr.bf16.mxu0 0
      %829 = vmatpush1.bf16.msra.mxu0 0
      %830 = vmatprep.subr.bf16.mxu0 0
      %831 = vmatpush1.bf16.msra.mxu0 0
      %832 = vmatprep.subr.bf16.mxu0 0
      %833 = vmatpush1.bf16.msra.mxu0 0
      %834 = vmatprep.subr.bf16.mxu0 0
      %835 = vmatpush1.bf16.msra.mxu0 0
      %836 = vmatprep.subr.bf16.mxu0 0
      %837 = vmatpush1.bf16.msra.mxu0 0
      %838 = vmatprep.subr.bf16.mxu0 0
      %839 = vmatpush1.bf16.msra.mxu0 0
      %840 = vmatprep.subr.bf16.mxu0 0
      %841 = vmatpush1.bf16.msra.mxu0 0
      %842 = vmatprep.subr.bf16.mxu0 0
      %843 = vmatpush1.bf16.msra.mxu0 0
      %844 = vmatprep.subr.bf16.mxu0 0
      %845 = vmatpush1.bf16.msra.mxu0 0
      %846 = vmatprep.mubr.bf16.mxu0 0
      %847 = vmatmul.mubr.bf16.gmra.mrb[0].mxu0 %v812
      %v848 = vpop.f32.mrb[0].mxu0
      %v849 = vadd.f32 0.0, %v848
      %v850 = vpop.f32.mrb[0].mxu0
      %v851 = vpop.f32.mrb[0].mxu0
      %v852 = vpop.f32.mrb[0].mxu0
      %853 = vdwg.mxu0
      %855 = vrot.lane.b32.xlu0 %v849, 112
      %v856 = vpop.permute.xlu0 %855
      %v858 = vmul.f32 %v849, 0.25
      %v859 = vmul.f32 %v856, 0.25
      %v860 = vpack.c.bf16 %v858, %v858
      %v861 = vpack.c.bf16 %v859, %v859
      %v862 = vpack.c.bf16 %v849, %v849
      %v863 = vpack.c.bf16 %v856, %v856
      %865 = vrot.lane.b32.xlu0 %v862, 96
      %v866 = vpop.permute.xlu0 %865
      %vm867 = vcmask 130048
      %v869 = vsel %vm867, %v860, 0
      %v872 = vsel %vm867, %v866, 0
      %874 = vmatprep.subr.bf16.mxu0 0
      %875 = vmatpush1.bf16.xpose.msra.mxu0 %v872
      %876 = vmatprep.subr.bf16.mxu0 0
      %877 = vmatpush1.bf16.xpose.msra.mxu0 0
      %878 = vmatprep.subr.bf16.mxu0 0
      %879 = vmatpush1.bf16.xpose.msra.mxu0 0
      %880 = vmatprep.subr.bf16.mxu0 0
      %881 = vmatpush1.bf16.xpose.msra.mxu0 0
      %882 = vmatprep.subr.bf16.mxu0 0
      %883 = vmatpush1.bf16.xpose.msra.mxu0 0
      %884 = vmatprep.subr.bf16.mxu0 0
      %885 = vmatpush1.bf16.xpose.msra.mxu0 0
      %886 = vmatprep.subr.bf16.mxu0 0
      %887 = vmatpush1.bf16.xpose.msra.mxu0 0
      %888 = vmatprep.subr.bf16.mxu0 0
      %889 = vmatpush1.bf16.xpose.msra.mxu0 0
      %890 = vmatprep.subr.bf16.mxu0 0
      %891 = vmatpush1.bf16.xpose.msra.mxu0 0
      %892 = vmatprep.subr.bf16.mxu0 0
      %893 = vmatpush1.bf16.xpose.msra.mxu0 0
      %894 = vmatprep.subr.bf16.mxu0 0
      %895 = vmatpush1.bf16.xpose.msra.mxu0 0
      %896 = vmatprep.subr.bf16.mxu0 0
      %897 = vmatpush1.bf16.xpose.msra.mxu0 0
      %898 = vmatprep.subr.bf16.mxu0 0
      %899 = vmatpush1.bf16.xpose.msra.mxu0 0
      %900 = vmatprep.subr.bf16.mxu0 0
      %901 = vmatpush1.bf16.xpose.msra.mxu0 0
      %902 = vmatprep.subr.bf16.mxu0 0
      %903 = vmatpush1.bf16.xpose.msra.mxu0 0
      %904 = vmatprep.subr.bf16.mxu0 0
      %905 = vmatpush1.bf16.xpose.msra.mxu0 0
      %906 = vmatprep.mubr.bf16.mxu0 0
      %907 = vmatmul.mubr.bf16.gmra.mrb[0].mxu0 %v869
      %v908 = vpop.f32.mrb[0].mxu0
      %v909 = vadd.f32 0.0, %v908
      %v910 = vpop.f32.mrb[0].mxu0
      %v911 = vpop.f32.mrb[0].mxu0
      %v912 = vpop.f32.mrb[0].mxu0
      %913 = vdwg.mxu0
      %915 = vrot.lane.b32.xlu0 %v863, 96
      %v916 = vpop.permute.xlu0 %915
      %v918 = vsel %vm867, %v861, 0
      %v921 = vsel %vm867, %v916, 0
      %923 = vmatprep.subr.bf16.mxu0 0
      %924 = vmatpush1.bf16.xpose.msra.mxu0 %v921
      %925 = vmatprep.subr.bf16.mxu0 0
      %926 = vmatpush1.bf16.xpose.msra.mxu0 0
      %927 = vmatprep.subr.bf16.mxu0 0
      %928 = vmatpush1.bf16.xpose.msra.mxu0 0
      %929 = vmatprep.subr.bf16.mxu0 0
      %930 = vmatpush1.bf16.xpose.msra.mxu0 0
      %931 = vmatprep.subr.bf16.mxu0 0
      %932 = vmatpush1.bf16.xpose.msra.mxu0 0
      %933 = vmatprep.subr.bf16.mxu0 0
      %934 = vmatpush1.bf16.xpose.msra.mxu0 0
      %935 = vmatprep.subr.bf16.mxu0 0
      %936 = vmatpush1.bf16.xpose.msra.mxu0 0
      %937 = vmatprep.subr.bf16.mxu0 0
      %938 = vmatpush1.bf16.xpose.msra.mxu0 0
      %939 = vmatprep.subr.bf16.mxu0 0
      %940 = vmatpush1.bf16.xpose.msra.mxu0 0
      %941 = vmatprep.subr.bf16.mxu0 0
      %942 = vmatpush1.bf16.xpose.msra.mxu0 0
      %943 = vmatprep.subr.bf16.mxu0 0
      %944 = vmatpush1.bf16.xpose.msra.mxu0 0
      %945 = vmatprep.subr.bf16.mxu0 0
      %946 = vmatpush1.bf16.xpose.msra.mxu0 0
      %947 = vmatprep.subr.bf16.mxu0 0
      %948 = vmatpush1.bf16.xpose.msra.mxu0 0
      %949 = vmatprep.subr.bf16.mxu0 0
      %950 = vmatpush1.bf16.xpose.msra.mxu0 0
      %951 = vmatprep.subr.bf16.mxu0 0
      %952 = vmatpush1.bf16.xpose.msra.mxu0 0
      %953 = vmatprep.subr.bf16.mxu0 0
      %954 = vmatpush1.bf16.xpose.msra.mxu0 0
      %955 = vmatprep.mubr.bf16.mxu0 0
      %956 = vmatmul.mubr.bf16.gmra.mrb[0].mxu0 %v918
      %v957 = vpop.f32.mrb[0].mxu0
      %v958 = vadd.f32 0.0, %v957
      %v959 = vpop.f32.mrb[0].mxu0
      %v960 = vpop.f32.mrb[0].mxu0
      %v961 = vpop.f32.mrb[0].mxu0
      %962 = vdwg.mxu0
      %v963 = vsel %vm776, 1, 0
      %vm964 = vcmp.eq.s32.totalorder %v963, 1
      %v965 = vsel %vm964, %v909, -1e+30
      %v966 = vsel %vm964, %v958, -1e+30
      %vm967 = vcmask 64512
      %v968 = vsel %vm967, %v965, -inf
      %969 = vmax.xlane.f32.xlu0 %v968
      %v970 = vpop.xlane.xlu0 %969
      %v971 = vsel %vm967, %v966, -inf
      %972 = vmax.xlane.f32.xlu0 %v971
      %v973 = vpop.xlane.xlu0 %972
      %v974 = vsub.f32 %v965, %v970
      %v975 = vsub.f32 %v966, %v973
      %v976 = vmul.f32 %v974, 1.442695
      %v977 = vpow.pop %v976
      %v978 = vmul.f32 %v975, 1.442695
      %v979 = vpow.pop %v978
      %v980 = vsel %vm967, %v977, 0.0
      %981 = vadd.xlane.f32.xlu0 %v980
      %v982 = vpop.xlane.xlu0 %981
      %v983 = vsel %vm967, %v979, 0.0
      %984 = vadd.xlane.f32.xlu0 %v983
      %v985 = vpop.xlane.xlu0 %984
      %v986 = vrcp.pop %v982
      %v987 = vrcp.pop %v985
      %v988 = vmul.f32 %v977, %v986
      %v989 = vmul.f32 %v979, %v987
      %v990 = vpack.c.bf16 %v988, %v988
      %v991 = vpack.c.bf16 %v989, %v989
      %992 = vrot.lane.b32.xlu0 %v862, 64
      %v993 = vpop.permute.xlu0 %992
      %v995 = vsel %vm967, %v990, 0
      %vm997 = vcmask 1043456
      %v999 = vsel %vm997, %v993, 0
      %1001 = vmatprep.subr.bf16.mxu0 0
      %1002 = vmatpush1.bf16.msra.mxu0 %v999
      %1003 = vmatprep.subr.bf16.mxu0 0
      %1004 = vmatpush1.bf16.msra.mxu0 0
      %1005 = vmatprep.subr.bf16.mxu0 0
      %1006 = vmatpush1.bf16.msra.mxu0 0
      %1007 = vmatprep.subr.bf16.mxu0 0
      %1008 = vmatpush1.bf16.msra.mxu0 0
      %1009 = vmatprep.subr.bf16.mxu0 0
      %1010 = vmatpush1.bf16.msra.mxu0 0
      %1011 = vmatprep.subr.bf16.mxu0 0
      %1012 = vmatpush1.bf16.msra.mxu0 0
      %1013 = vmatprep.subr.bf16.mxu0 0
      %1014 = vmatpush1.bf16.msra.mxu0 0
      %1015 = vmatprep.subr.bf16.mxu0 0
      %1016 = vmatpush1.bf16.msra.mxu0 0
      %1017 = vmatprep.subr.bf16.mxu0 0
      %1018 = vmatpush1.bf16.msra.mxu0 0
      %1019 = vmatprep.subr.bf16.mxu0 0
      %1020 = vmatpush1.bf16.msra.mxu0 0
      %1021 = vmatprep.subr.bf16.mxu0 0
      %1022 = vmatpush1.bf16.msra.mxu0 0
      %1023 = vmatprep.subr.bf16.mxu0 0
      %1024 = vmatpush1.bf16.msra.mxu0 0
      %1025 = vmatprep.subr.bf16.mxu0 0
      %1026 = vmatpush1.bf16.msra.mxu0 0
      %1027 = vmatprep.subr.bf16.mxu0 0
      %1028 = vmatpush1.bf16.msra.mxu0 0
      %1029 = vmatprep.subr.bf16.mxu0 0
      %1030 = vmatpush1.bf16.msra.mxu0 0
      %1031 = vmatprep.subr.bf16.mxu0 0
      %1032 = vmatpush1.bf16.msra.mxu0 0
      %1033 = vmatprep.mubr.bf16.mxu0 0
      %1034 = vmatmul.mubr.bf16.gmra.mrb[0].mxu0 %v995
      %v1035 = vpop.f32.mrb[0].mxu0
      %v1036 = vadd.f32 0.0, %v1035
      %v1037 = vpop.f32.mrb[0].mxu0
      %v1038 = vpop.f32.mrb[0].mxu0
      %v1039 = vpop.f32.mrb[0].mxu0
      %1040 = vdwg.mxu0
      %1041 = vrot.lane.b32.xlu0 %v863, 64
      %v1042 = vpop.permute.xlu0 %1041
      %v1044 = vsel %vm967, %v991, 0
      %v1047 = vsel %vm997, %v1042, 0
      %1049 = vmatprep.subr.bf16.mxu0 0
      %1050 = vmatpush1.bf16.msra.mxu0 %v1047
      %1051 = vmatprep.subr.bf16.mxu0 0
      %1052 = vmatpush1.bf16.msra.mxu0 0
      %1053 = vmatprep.subr.bf16.mxu0 0
      %1054 = vmatpush1.bf16.msra.mxu0 0
      %1055 = vmatprep.subr.bf16.mxu0 0
      %1056 = vmatpush1.bf16.msra.mxu0 0
      %1057 = vmatprep.subr.bf16.mxu0 0
      %1058 = vmatpush1.bf16.msra.mxu0 0
      %1059 = vmatprep.subr.bf16.mxu0 0
      %1060 = vmatpush1.bf16.msra.mxu0 0
      %1061 = vmatprep.subr.bf16.mxu0 0
      %1062 = vmatpush1.bf16.msra.mxu0 0
      %1063 = vmatprep.subr.bf16.mxu0 0
      %1064 = vmatpush1.bf16.msra.mxu0 0
      %1065 = vmatprep.subr.bf16.mxu0 0
      %1066 = vmatpush1.bf16.msra.mxu0 0
      %1067 = vmatprep.subr.bf16.mxu0 0
      %1068 = vmatpush1.bf16.msra.mxu0 0
      %1069 = vmatprep.subr.bf16.mxu0 0
      %1070 = vmatpush1.bf16.msra.mxu0 0
      %1071 = vmatprep.subr.bf16.mxu0 0
      %1072 = vmatpush1.bf16.msra.mxu0 0
      %1073 = vmatprep.subr.bf16.mxu0 0
      %1074 = vmatpush1.bf16.msra.mxu0 0
      %1075 = vmatprep.subr.bf16.mxu0 0
      %1076 = vmatpush1.bf16.msra.mxu0 0
      %1077 = vmatprep.subr.bf16.mxu0 0
      %1078 = vmatpush1.bf16.msra.mxu0 0
      %1079 = vmatprep.subr.bf16.mxu0 0
      %1080 = vmatpush1.bf16.msra.mxu0 0
      %1081 = vmatprep.mubr.bf16.mxu0 0
      %1082 = vmatmul.mubr.bf16.gmra.mrb[0].mxu0 %v1044
      %v1083 = vpop.f32.mrb[0].mxu0
      %v1084 = vadd.f32 0.0, %v1083
      %v1085 = vpop.f32.mrb[0].mxu0
      %v1086 = vpop.f32.mrb[0].mxu0
      %v1087 = vpop.f32.mrb[0].mxu0
      %1088 = vdwg.mxu0
      %1090 = vrot.lane.b32.xlu0 %v1084, 16
      %v1091 = vpop.permute.xlu0 %1090
      %v1093 = vsel %vm867, %v1036, %v1091
      %v1094 = vpack.c.bf16 %v1093, %v1093
      %v1095 = vld [vmem:[%s701] sm:$0xf]
      %v1096 = vld [vmem:[%s701 + $0x4] sm:$0xf]
      %v1097 = vld [vmem:[%s701 + $0x8] sm:$0xf]
      %v1098 = vld [vmem:[%s701 + $0xc] sm:$0xf]
      %v1103 = vunpack.c.l.b16 %v1095
      %v1104 = vunpack.c.l.b16 %v1096
      %v1105 = vunpack.c.l.b16 %v1097
      %v1106 = vunpack.c.l.b16 %v1098
      %v1107 = vpack.c.b16 %v1104, %v1103
      %v1108 = vpack.c.b16 %v1106, %v1105
      %v1112 = vsel %vm779, %v1094, 0
      %1114 = vmatprep.subr.bf16.mxu0 0
      %1115 = vmatpush1.bf16.msra.mxu0 %v1107
      %1116 = vmatprep.subr.bf16.mxu0 0
      %1117 = vmatpush1.bf16.msra.mxu0 %v1108
      %1118 = vmatprep.subr.bf16.mxu0 0
      %1119 = vmatpush1.bf16.msra.mxu0 0
      %1120 = vmatprep.subr.bf16.mxu0 0
      %1121 = vmatpush1.bf16.msra.mxu0 0
      %1122 = vmatprep.subr.bf16.mxu0 0
      %1123 = vmatpush1.bf16.msra.mxu0 0
      %1124 = vmatprep.subr.bf16.mxu0 0
      %1125 = vmatpush1.bf16.msra.mxu0 0
      %1126 = vmatprep.subr.bf16.mxu0 0
      %1127 = vmatpush1.bf16.msra.mxu0 0
      %1128 = vmatprep.subr.bf16.mxu0 0
      %1129 = vmatpush1.bf16.msra.mxu0 0
      %1130 = vmatprep.subr.bf16.mxu0 0
      %1131 = vmatpush1.bf16.msra.mxu0 0
      %1132 = vmatprep.subr.bf16.mxu0 0
      %1133 = vmatpush1.bf16.msra.mxu0 0
      %1134 = vmatprep.subr.bf16.mxu0 0
      %1135 = vmatpush1.bf16.msra.mxu0 0
      %1136 = vmatprep.subr.bf16.mxu0 0
      %1137 = vmatpush1.bf16.msra.mxu0 0
      %1138 = vmatprep.subr.bf16.mxu0 0
      %1139 = vmatpush1.bf16.msra.mxu0 0
      %1140 = vmatprep.subr.bf16.mxu0 0
      %1141 = vmatpush1.bf16.msra.mxu0 0
      %1142 = vmatprep.subr.bf16.mxu0 0
      %1143 = vmatpush1.bf16.msra.mxu0 0
      %1144 = vmatprep.subr.bf16.mxu0 0
      %1145 = vmatpush1.bf16.msra.mxu0 0
      %1146 = vmatprep.mubr.bf16.mxu0 0
      %1147 = vmatmul.mubr.bf16.gmra.mrb[0].mxu0 %v1112
      %v1148 = vpop.f32.mrb[0].mxu0
      %v1149 = vadd.f32 0.0, %v1148
      %v1150 = vpop.f32.mrb[0].mxu0
      %v1151 = vpop.f32.mrb[0].mxu0
      %v1152 = vpop.f32.mrb[0].mxu0
      %1153 = vdwg.mxu0
      %v1154 = vadd.f32 %v771, %v1149
      %vm1155 = vcmp.gt.f32.partialorder %v849, 0.0
      %vm1156 = vcmp.gt.f32.partialorder %v856, 0.0
      %v1157 = vmul.f32 %v849, 1.442695
      %v1158 = vpow.pop %v1157
      %v1159 = vmul.f32 %v856, 1.442695
      %v1160 = vpow.pop %v1159
      %v1161 = vsub.f32 %v1158, 1.0
      %v1162 = vsub.f32 %v1160, 1.0
      %v1163 = vsel %vm1155, %v849, %v1161
      %v1164 = vsel %vm1156, %v856, %v1162
      %v1165 = vadd.f32 %v1163, 1.0
      %v1166 = vadd.f32 %v1164, 1.0
      %1168 = vrot.lane.b32.xlu0 %v1165, 96
      %v1169 = vpop.permute.xlu0 %1168
      %1171 = vxpose.xlu0.b32.start [1/16] %v1169, 128
      %1172 = vxpose.xlu0.b32.cont [2/16] 0.0, 128
      %1173 = vxpose.xlu0.b32.cont [3/16] 0.0, 128
      %1174 = vxpose.xlu0.b32.cont [4/16] 0.0, 128
      %1175 = vxpose.xlu0.b32.cont [5/16] 0.0, 128
      %1176 = vxpose.xlu0.b32.cont [6/16] 0.0, 128
      %1177 = vxpose.xlu0.b32.cont [7/16] 0.0, 128
      %1178 = vxpose.xlu0.b32.cont [8/16] 0.0, 128
      %1179 = vxpose.xlu0.b32.cont [9/16] 0.0, 128
      %1180 = vxpose.xlu0.b32.cont [10/16] 0.0, 128
      %1181 = vxpose.xlu0.b32.cont [11/16] 0.0, 128
      %1182 = vxpose.xlu0.b32.cont [12/16] 0.0, 128
      %1183 = vxpose.xlu0.b32.cont [13/16] 0.0, 128
      %1184 = vxpose.xlu0.b32.cont [14/16] 0.0, 128
      %1185 = vxpose.xlu0.b32.cont [15/16] 0.0, 128
      %1186 = vxpose.xlu0.b32.end [16/16] 0.0, 128
      %v1187 = vpop.trf.xlu0
      %v1188 = vpop.trf.xlu0
      %v1189 = vpop.trf.xlu0
      %v1190 = vpop.trf.xlu0
      %v1191 = vpop.trf.xlu0
      %v1192 = vpop.trf.xlu0
      %v1193 = vpop.trf.xlu0
      %v1194 = vpop.trf.xlu0
      %v1195 = vpop.trf.xlu0
      %v1196 = vpop.trf.xlu0
      %v1197 = vpop.trf.xlu0
      %v1198 = vpop.trf.xlu0
      %v1199 = vpop.trf.xlu0
      %v1200 = vpop.trf.xlu0
      %v1201 = vpop.trf.xlu0
      %v1202 = vpop.trf.xlu0
      %1203 = vrot.lane.b32.xlu0 %v849, 64
      %v1204 = vpop.permute.xlu0 %1203
      %v1207 = vsel %vm967, %v1187, 0
      %v1210 = vsel %vm967, %v1188, 0
      %1212 = vmatprep.subr.mxu0 0.0
      %1213 = vmatpush1.msra.mxu0 %v1204
      %1214 = vmatprep.subr.mxu0 0.0
      %1215 = vmatpush1.msra.mxu0 0.0
      %1216 = vmatprep.subr.mxu0 0.0
      %1217 = vmatpush1.msra.mxu0 0.0
      %1218 = vmatprep.subr.mxu0 0.0
      %1219 = vmatpush1.msra.mxu0 0.0
      %1220 = vmatprep.subr.mxu0 0.0
      %1221 = vmatpush1.msra.mxu0 0.0
      %1222 = vmatprep.subr.mxu0 0.0
      %1223 = vmatpush1.msra.mxu0 0.0
      %1224 = vmatprep.subr.mxu0 0.0
      %1225 = vmatpush1.msra.mxu0 0.0
      %1226 = vmatprep.subr.mxu0 0.0
      %1227 = vmatpush1.msra.mxu0 0.0
      %1228 = vmatprep.subr.mxu0 0.0
      %1229 = vmatpush1.msra.mxu0 0.0
      %1230 = vmatprep.subr.mxu0 0.0
      %1231 = vmatpush1.msra.mxu0 0.0
      %1232 = vmatprep.subr.mxu0 0.0
      %1233 = vmatpush1.msra.mxu0 0.0
      %1234 = vmatprep.subr.mxu0 0.0
      %1235 = vmatpush1.msra.mxu0 0.0
      %1236 = vmatprep.subr.mxu0 0.0
      %1237 = vmatpush1.msra.mxu0 0.0
      %1238 = vmatprep.subr.mxu0 0.0
      %1239 = vmatpush1.msra.mxu0 0.0
      %1240 = vmatprep.subr.mxu0 0.0
      %1241 = vmatpush1.msra.mxu0 0.0
      %1242 = vmatprep.subr.mxu0 0.0
      %1243 = vmatpush1.msra.mxu0 0.0
      %1244 = vmatprep.subr.mxu0 0.0
      %1245 = vmatpush1.msra.mxu0 0.0
      %1246 = vmatprep.subr.mxu0 0.0
      %1247 = vmatpush1.msra.mxu0 0.0
      %1248 = vmatprep.subr.mxu0 0.0
      %1249 = vmatpush1.msra.mxu0 0.0
      %1250 = vmatprep.subr.mxu0 0.0
      %1251 = vmatpush1.msra.mxu0 0.0
      %1252 = vmatprep.subr.mxu0 0.0
      %1253 = vmatpush1.msra.mxu0 0.0
      %1254 = vmatprep.subr.mxu0 0.0
      %1255 = vmatpush1.msra.mxu0 0.0
      %1256 = vmatprep.subr.mxu0 0.0
      %1257 = vmatpush1.msra.mxu0 0.0
      %1258 = vmatprep.subr.mxu0 0.0
      %1259 = vmatpush1.msra.mxu0 0.0
      %1260 = vmatprep.subr.mxu0 0.0
      %1261 = vmatpush1.msra.mxu0 0.0
      %1262 = vmatprep.subr.mxu0 0.0
      %1263 = vmatpush1.msra.mxu0 0.0
      %1264 = vmatprep.subr.mxu0 0.0
      %1265 = vmatpush1.msra.mxu0 0.0
      %1266 = vmatprep.subr.mxu0 0.0
      %1267 = vmatpush1.msra.mxu0 0.0
      %1268 = vmatprep.subr.mxu0 0.0
      %1269 = vmatpush1.msra.mxu0 0.0
      %1270 = vmatprep.subr.mxu0 0.0
      %1271 = vmatpush1.msra.mxu0 0.0
      %1272 = vmatprep.subr.mxu0 0.0
      %1273 = vmatpush1.msra.mxu0 0.0
      %1274 = vmatprep.subr.mxu0 0.0
      %1275 = vmatpush1.msra.mxu0 0.0
      %1276 = vmatprep.mubr.f32.mxu0 0.0
      %1277 = vmatmul.mubr.f32.gmra.mrb[0].mxu0 %v1207
      %v1278 = vpop.f32.mrb[0].mxu0
      %v1279 = vadd.f32 0.0, %v1278
      %v1280 = vpop.f32.mrb[0].mxu0
      %1281 = vmatprep.mubr.f32.mxu0 0.0
      %1282 = vmatmul.mubr.f32.gmra.mrb[0].mxu0 %v1210
      %v1283 = vpop.f32.mrb[0].mxu0
      %v1284 = vadd.f32 0.0, %v1283
      %v1285 = vpop.f32.mrb[0].mxu0
      %1286 = vdwg.mxu0
      %1288 = vrot.lane.b32.xlu0 %v1166, 96
      %v1289 = vpop.permute.xlu0 %1288
      %1291 = vxpose.xlu0.b32.start [1/16] %v1289, 128
      %1292 = vxpose.xlu0.b32.cont [2/16] 0.0, 128
      %1293 = vxpose.xlu0.b32.cont [3/16] 0.0, 128
      %1294 = vxpose.xlu0.b32.cont [4/16] 0.0, 128
      %1295 = vxpose.xlu0.b32.cont [5/16] 0.0, 128
      %1296 = vxpose.xlu0.b32.cont [6/16] 0.0, 128
      %1297 = vxpose.xlu0.b32.cont [7/16] 0.0, 128
      %1298 = vxpose.xlu0.b32.cont [8/16] 0.0, 128
      %1299 = vxpose.xlu0.b32.cont [9/16] 0.0, 128
      %1300 = vxpose.xlu0.b32.cont [10/16] 0.0, 128
      %1301 = vxpose.xlu0.b32.cont [11/16] 0.0, 128
      %1302 = vxpose.xlu0.b32.cont [12/16] 0.0, 128
      %1303 = vxpose.xlu0.b32.cont [13/16] 0.0, 128
      %1304 = vxpose.xlu0.b32.cont [14/16] 0.0, 128
      %1305 = vxpose.xlu0.b32.cont [15/16] 0.0, 128
      %1306 = vxpose.xlu0.b32.end [16/16] 0.0, 128
      %v1307 = vpop.trf.xlu0
      %v1308 = vpop.trf.xlu0
      %v1309 = vpop.trf.xlu0
      %v1310 = vpop.trf.xlu0
      %v1311 = vpop.trf.xlu0
      %v1312 = vpop.trf.xlu0
      %v1313 = vpop.trf.xlu0
      %v1314 = vpop.trf.xlu0
      %v1315 = vpop.trf.xlu0
      %v1316 = vpop.trf.xlu0
      %v1317 = vpop.trf.xlu0
      %v1318 = vpop.trf.xlu0
      %v1319 = vpop.trf.xlu0
      %v1320 = vpop.trf.xlu0
      %v1321 = vpop.trf.xlu0
      %v1322 = vpop.trf.xlu0
      %1323 = vrot.lane.b32.xlu0 %v856, 64
      %v1324 = vpop.permute.xlu0 %1323
      %v1327 = vsel %vm967, %v1307, 0
      %v1330 = vsel %vm967, %v1308, 0
      %1332 = vmatprep.subr.mxu0 0.0
      %1333 = vmatpush1.msra.mxu0 %v1324
      %1334 = vmatprep.subr.mxu0 0.0
      %1335 = vmatpush1.msra.mxu0 0.0
      %1336 = vmatprep.subr.mxu0 0.0
      %1337 = vmatpush1.msra.mxu0 0.0
      %1338 = vmatprep.subr.mxu0 0.0
      %1339 = vmatpush1.msra.mxu0 0.0
      %1340 = vmatprep.subr.mxu0 0.0
      %1341 = vmatpush1.msra.mxu0 0.0
      %1342 = vmatprep.subr.mxu0 0.0
      %1343 = vmatpush1.msra.mxu0 0.0
      %1344 = vmatprep.subr.mxu0 0.0
      %1345 = vmatpush1.msra.mxu0 0.0
      %1346 = vmatprep.subr.mxu0 0.0
      %1347 = vmatpush1.msra.mxu0 0.0
      %1348 = vmatprep.subr.mxu0 0.0
      %1349 = vmatpush1.msra.mxu0 0.0
      %1350 = vmatprep.subr.mxu0 0.0
      %1351 = vmatpush1.msra.mxu0 0.0
      %1352 = vmatprep.subr.mxu0 0.0
      %1353 = vmatpush1.msra.mxu0 0.0
      %1354 = vmatprep.subr.mxu0 0.0
      %1355 = vmatpush1.msra.mxu0 0.0
      %1356 = vmatprep.subr.mxu0 0.0
      %1357 = vmatpush1.msra.mxu0 0.0
      %1358 = vmatprep.subr.mxu0 0.0
      %1359 = vmatpush1.msra.mxu0 0.0
      %1360 = vmatprep.subr.mxu0 0.0
      %1361 = vmatpush1.msra.mxu0 0.0
      %1362 = vmatprep.subr.mxu0 0.0
      %1363 = vmatpush1.msra.mxu0 0.0
      %1364 = vmatprep.subr.mxu0 0.0
      %1365 = vmatpush1.msra.mxu0 0.0
      %1366 = vmatprep.subr.mxu0 0.0
      %1367 = vmatpush1.msra.mxu0 0.0
      %1368 = vmatprep.subr.mxu0 0.0
      %1369 = vmatpush1.msra.mxu0 0.0
      %1370 = vmatprep.subr.mxu0 0.0
      %1371 = vmatpush1.msra.mxu0 0.0
      %1372 = vmatprep.subr.mxu0 0.0
      %1373 = vmatpush1.msra.mxu0 0.0
      %1374 = vmatprep.subr.mxu0 0.0
      %1375 = vmatpush1.msra.mxu0 0.0
      %1376 = vmatprep.subr.mxu0 0.0
      %1377 = vmatpush1.msra.mxu0 0.0
      %1378 = vmatprep.subr.mxu0 0.0
      %1379 = vmatpush1.msra.mxu0 0.0
      %1380 = vmatprep.subr.mxu0 0.0
      %1381 = vmatpush1.msra.mxu0 0.0
      %1382 = vmatprep.subr.mxu0 0.0
      %1383 = vmatpush1.msra.mxu0 0.0
      %1384 = vmatprep.subr.mxu0 0.0
      %1385 = vmatpush1.msra.mxu0 0.0
      %1386 = vmatprep.subr.mxu0 0.0
      %1387 = vmatpush1.msra.mxu0 0.0
      %1388 = vmatprep.subr.mxu0 0.0
      %1389 = vmatpush1.msra.mxu0 0.0
      %1390 = vmatprep.subr.mxu0 0.0
      %1391 = vmatpush1.msra.mxu0 0.0
      %1392 = vmatprep.subr.mxu0 0.0
      %1393 = vmatpush1.msra.mxu0 0.0
      %1394 = vmatprep.subr.mxu0 0.0
      %1395 = vmatpush1.msra.mxu0 0.0
      %1396 = vmatprep.mubr.f32.mxu0 0.0
      %1397 = vmatmul.mubr.f32.gmra.mrb[0].mxu0 %v1327
      %v1398 = vpop.f32.mrb[0].mxu0
      %v1399 = vadd.f32 0.0, %v1398
      %v1400 = vpop.f32.mrb[0].mxu0
      %1401 = vmatprep.mubr.f32.mxu0 0.0
      %1402 = vmatmul.mubr.f32.gmra.mrb[0].mxu0 %v1330
      %v1403 = vpop.f32.mrb[0].mxu0
      %v1404 = vadd.f32 0.0, %v1403
      %v1405 = vpop.f32.mrb[0].mxu0
      %1406 = vdwg.mxu0
      %v1407 = vld [vmem:[%s733] sm:$0xff]
      %v1408 = vld [vmem:[%s733 + $0x8] sm:$0xff]
      %v1409 = vld [vmem:[%s733 + $0x10] sm:$0xff]
      %v1410 = vld [vmem:[%s733 + $0x18] sm:$0xff]
      %v1411 = vadd.f32 %v1407, %v1279
      %v1412 = vadd.f32 %v1408, %v1284
      %v1413 = vadd.f32 %v1409, %v1399
      %v1414 = vadd.f32 %v1410, %v1404
      %1415 = vst.msk [vmem:[%s754] sm:$0xff] %vm867, %v1411
      %1416 = vst.msk [vmem:[%s754 + $0x8] sm:$0xff] %vm867, %v1412
      %1417 = vst.msk [vmem:[%s754 + $0x10] sm:$0xff] %vm867, %v1413
      %1418 = vst.msk [vmem:[%s754 + $0x18] sm:$0xff] %vm867, %v1414
      %v1419 = vld [vmem:[%s741] sm:$0x3]
      %vm1420 = vcmask 392448
      %v1421 = vsel %vm1420, %v1165, 0.0
      %v1422 = vrot.slane %v1421, 4
      %v1423 = vadd.f32 %v1421, %v1422
      %v1424 = vrot.slane %v1423, 2
      %v1425 = vadd.f32 %v1423, %v1424
      %v1426 = vrot.slane %v1425, 1
      %v1427 = vadd.f32 %v1425, %v1426
      %v1428 = vsel %vm1420, %v1166, 0.0
      %v1429 = vrot.slane %v1428, 4
      %v1430 = vadd.f32 %v1428, %v1429
      %v1431 = vrot.slane %v1430, 2
      %v1432 = vadd.f32 %v1430, %v1431
      %v1433 = vrot.slane %v1432, 1
      %v1434 = vadd.f32 %v1432, %v1433
      %vm1437 = vcmask 1041409
      %v1438 = vsel %vm1437, %v1434, %v1427
      %1439 = vrot.lane.b32.xlu0 %v1438, 96
      %v1440 = vpop.permute.xlu0 %1439
      %v1442 = vadd.f32 %v1419, %v1440
      %vm1443 = vcmask 123904
      %1444 = vst.msk [vmem:[%s762] sm:$0x3] %vm1443, %v1442
      %v1445 = vld [vmem:[%s708] sm:$0x1]
      %v1446 = vmul.f32 %v1154, %v1154
      %v1447 = vsel %vm779, %v1446, 0.0
      %1448 = vadd.xlane.f32.xlu0 %v1447
      %v1449 = vpop.xlane.xlu0 %1448
      %v1450 = vmax.f32 %v1449, 1e-24
      %v1451 = vrsqrt.pop %v1450
      %v1452 = vmul.f32 %v1154, %v1451
      %v1453 = vmul.f32 %v1452, 5.656854
      %v1455 = vlaneseq
      %v1456 = vshrl.u32 %v1455, 7
      %v1457 = vsub.s32 0, %v1456
      %v1458 = vrot.slane %v1445, %v1457
      %v1460 = vmul.f32 %v1453, %v1458
      %v1461 = vpack.c.bf16 %v1460, %v1460
      %v1462 = vld [vmem:[%s713] sm:$0xf]
      %v1463 = vld [vmem:[%s713 + $0x4] sm:$0xf]
      %v1464 = vld [vmem:[%s713 + $0x8] sm:$0xf]
      %v1465 = vld [vmem:[%s713 + $0xc] sm:$0xf]
      %v1466 = vld [vmem:[%s716] sm:$0x1]
      %v1468 = vlaneseq
      %v1469 = vshrl.u32 %v1468, 7
      %v1470 = vsub.s32 0, %v1469
      %v1471 = vrot.slane %v1466, %v1470
      %v1477 = vunpack.c.l.b16 %v1462
      %v1478 = vunpack.c.l.b16 %v1463
      %v1479 = vunpack.c.l.b16 %v1464
      %v1480 = vunpack.c.l.b16 %v1465
      %v1481 = vpack.c.b16 %v1478, %v1477
      %v1482 = vpack.c.b16 %v1480, %v1479
      %v1486 = vsel %vm779, %v1461, 0
      %1488 = vmatprep.subr.bf16.mxu0 0
      %1489 = vmatpush1.bf16.msra.mxu0 %v1481
      %1490 = vmatprep.subr.bf16.mxu0 0
      %1491 = vmatpush1.bf16.msra.mxu0 %v1482
      %1492 = vmatprep.subr.bf16.mxu0 0
      %1493 = vmatpush1.bf16.msra.mxu0 0
      %1494 = vmatprep.subr.bf16.mxu0 0
      %1495 = vmatpush1.bf16.msra.mxu0 0
      %1496 = vmatprep.subr.bf16.mxu0 0
      %1497 = vmatpush1.bf16.msra.mxu0 0
      %1498 = vmatprep.subr.bf16.mxu0 0
      %1499 = vmatpush1.bf16.msra.mxu0 0
      %1500 = vmatprep.subr.bf16.mxu0 0
      %1501 = vmatpush1.bf16.msra.mxu0 0
      %1502 = vmatprep.subr.bf16.mxu0 0
      %1503 = vmatpush1.bf16.msra.mxu0 0
      %1504 = vmatprep.subr.bf16.mxu0 0
      %1505 = vmatpush1.bf16.msra.mxu0 0
      %1506 = vmatprep.subr.bf16.mxu0 0
      %1507 = vmatpush1.bf16.msra.mxu0 0
      %1508 = vmatprep.subr.bf16.mxu0 0
      %1509 = vmatpush1.bf16.msra.mxu0 0
      %1510 = vmatprep.subr.bf16.mxu0 0
      %1511 = vmatpush1.bf16.msra.mxu0 0
      %1512 = vmatprep.subr.bf16.mxu0 0
      %1513 = vmatpush1.bf16.msra.mxu0 0
      %1514 = vmatprep.subr.bf16.mxu0 0
      %1515 = vmatpush1.bf16.msra.mxu0 0
      %1516 = vmatprep.subr.bf16.mxu0 0
      %1517 = vmatpush1.bf16.msra.mxu0 0
      %1518 = vmatprep.subr.bf16.mxu0 0
      %1519 = vmatpush1.bf16.msra.mxu0 0
      %1520 = vmatprep.mubr.bf16.mxu0 0
      %1521 = vmatmul.mubr.bf16.gmra.mrb[0].mxu0 %v1486
      %v1522 = vpop.f32.mrb[0].mxu0
      %v1523 = vadd.f32 %v1471, %v1522
      %v1524 = vpop.f32.mrb[0].mxu0
      %v1525 = vpop.f32.mrb[0].mxu0
      %v1526 = vpop.f32.mrb[0].mxu0
      %1527 = vdwg.mxu0
      %v1528 = vmul.f32 %v1523, %v1523
      %v1529 = vmul.f32 %v1523, %v1528
      %v1530 = vmul.f32 %v1529, 0.044715
      %v1531 = vadd.f32 %v1523, %v1530
      %v1532 = vmul.f32 %v1531, 0.7978846
      %v1533 = vtanh.pop %v1532
      %v1534 = vadd.f32 %v1533, 1.0
      %v1535 = vmul.f32 %v1534, 0.5
      %v1536 = vmul.f32 %v1523, %v1535
      %v1537 = vpack.c.bf16 %v1536, %v1536
      %v1538 = vld [vmem:[%s721] sm:$0xf]
      %v1539 = vld [vmem:[%s721 + $0x4] sm:$0xf]
      %v1540 = vld [vmem:[%s721 + $0x8] sm:$0xf]
      %v1541 = vld [vmem:[%s721 + $0xc] sm:$0xf]
      %v1542 = vld [vmem:[%s721 + $0x10] sm:$0xf]
      %v1543 = vld [vmem:[%s721 + $0x14] sm:$0xf]
      %v1544 = vld [vmem:[%s721 + $0x18] sm:$0xf]
      %v1545 = vld [vmem:[%s721 + $0x1c] sm:$0xf]
      %v1546 = vld [vmem:[%s721 + $0x20] sm:$0xf]
      %v1547 = vld [vmem:[%s721 + $0x24] sm:$0xf]
      %v1548 = vld [vmem:[%s721 + $0x28] sm:$0xf]
      %v1549 = vld [vmem:[%s721 + $0x2c] sm:$0xf]
      %v1550 = vld [vmem:[%s721 + $0x30] sm:$0xf]
      %v1551 = vld [vmem:[%s721 + $0x34] sm:$0xf]
      %v1552 = vld [vmem:[%s721 + $0x38] sm:$0xf]
      %v1553 = vld [vmem:[%s721 + $0x3c] sm:$0xf]
      %v1554 = vld [vmem:[%s724] sm:$0x1]
      %v1556 = vlaneseq
      %v1557 = vshrl.u32 %v1556, 7
      %v1558 = vsub.s32 0, %v1557
      %v1559 = vrot.slane %v1554, %v1558
      %v1577 = vunpack.c.l.b16 %v1538
      %v1578 = vunpack.c.l.b16 %v1539
      %v1579 = vunpack.c.l.b16 %v1540
      %v1580 = vunpack.c.l.b16 %v1541
      %v1581 = vunpack.c.l.b16 %v1542
      %v1582 = vunpack.c.l.b16 %v1543
      %v1583 = vunpack.c.l.b16 %v1544
      %v1584 = vunpack.c.l.b16 %v1545
      %v1585 = vunpack.c.l.b16 %v1546
      %v1586 = vunpack.c.l.b16 %v1547
      %v1587 = vunpack.c.l.b16 %v1548
      %v1588 = vunpack.c.l.b16 %v1549
      %v1589 = vunpack.c.l.b16 %v1550
      %v1590 = vunpack.c.l.b16 %v1551
      %v1591 = vunpack.c.l.b16 %v1552
      %v1592 = vunpack.c.l.b16 %v1553
      %v1593 = vpack.c.b16 %v1578, %v1577
      %v1594 = vpack.c.b16 %v1580, %v1579
      %v1595 = vpack.c.b16 %v1582, %v1581
      %v1596 = vpack.c.b16 %v1584, %v1583
      %v1597 = vpack.c.b16 %v1586, %v1585
      %v1598 = vpack.c.b16 %v1588, %v1587
      %v1599 = vpack.c.b16 %v1590, %v1589
      %v1600 = vpack.c.b16 %v1592, %v1591
      %1609 = vmatprep.subr.bf16.mxu0 0
      %1610 = vmatpush1.bf16.msra.mxu0 %v1593
      %1611 = vmatprep.subr.bf16.mxu0 0
      %1612 = vmatpush1.bf16.msra.mxu0 %v1594
      %1613 = vmatprep.subr.bf16.mxu0 0
      %1614 = vmatpush1.bf16.msra.mxu0 %v1595
      %1615 = vmatprep.subr.bf16.mxu0 0
      %1616 = vmatpush1.bf16.msra.mxu0 %v1596
      %1617 = vmatprep.subr.bf16.mxu0 0
      %1618 = vmatpush1.bf16.msra.mxu0 %v1597
      %1619 = vmatprep.subr.bf16.mxu0 0
      %1620 = vmatpush1.bf16.msra.mxu0 %v1598
      %1621 = vmatprep.subr.bf16.mxu0 0
      %1622 = vmatpush1.bf16.msra.mxu0 %v1599
      %1623 = vmatprep.subr.bf16.mxu0 0
      %1624 = vmatpush1.bf16.msra.mxu0 %v1600
      %1625 = vmatprep.subr.bf16.mxu0 0
      %1626 = vmatpush1.bf16.msra.mxu0 0
      %1627 = vmatprep.subr.bf16.mxu0 0
      %1628 = vmatpush1.bf16.msra.mxu0 0
      %1629 = vmatprep.subr.bf16.mxu0 0
      %1630 = vmatpush1.bf16.msra.mxu0 0
      %1631 = vmatprep.subr.bf16.mxu0 0
      %1632 = vmatpush1.bf16.msra.mxu0 0
      %1633 = vmatprep.subr.bf16.mxu0 0
      %1634 = vmatpush1.bf16.msra.mxu0 0
      %1635 = vmatprep.subr.bf16.mxu0 0
      %1636 = vmatpush1.bf16.msra.mxu0 0
      %1637 = vmatprep.subr.bf16.mxu0 0
      %1638 = vmatpush1.bf16.msra.mxu0 0
      %1639 = vmatprep.subr.bf16.mxu0 0
      %1640 = vmatpush1.bf16.msra.mxu0 0
      %1641 = vmatprep.mubr.bf16.mxu0 0
      %1642 = vmatmul.mubr.bf16.gmra.mrb[0].mxu0 %v1537
      %v1643 = vpop.f32.mrb[0].mxu0
      %v1644 = vadd.f32 %v1559, %v1643
      %v1645 = vpop.f32.mrb[0].mxu0
      %v1646 = vpop.f32.mrb[0].mxu0
      %v1647 = vpop.f32.mrb[0].mxu0
      %1648 = vdwg.mxu0
      %v1649 = vadd.f32 %v1154, %v1644
      %1650 = vst.msk [vmem:[#allocation2] sm:$0xff] %vm779, %v1649
      %p1651 = scmp.eq.s32.totalorder %s32, 1
      // Predicated region
      $region77: #{infini_wrapper_forward.4} parent=71 // pred_check
        %p1652 = pneg %p1651
      $region78: #{infini_wrapper_forward.4} parent=71 // pred_check_branch
        %1654 = sbr.rel (%p1652) target = $region80
      $region79: #{infini_wrapper_forward.4} parent=71 // pred_region
        %v1655 = vld [vmem:[%s10] sm:$0x1]
        %v1656 = vmul.f32 %v1649, %v1649
        %v1657 = vsel %vm779, %v1656, 0.0
        %1658 = vadd.xlane.f32.xlu0 %v1657
        %v1659 = vpop.xlane.xlu0 %1658
        %v1660 = vmax.f32 %v1659, 1e-24
        %v1661 = vrsqrt.pop %v1660
        %v1662 = vmul.f32 %v1649, %v1661
        %v1663 = vmul.f32 %v1662, 5.656854
        %v1665 = vlaneseq
        %v1666 = vshrl.u32 %v1665, 7
        %v1667 = vsub.s32 0, %v1666
        %v1668 = vrot.slane %v1655, %v1667
        %v1670 = vmul.f32 %v1663, %v1668
        %v1671 = vpack.c.bf16 %v1670, %v1670
        %vm1672 = vcmask 257024
        %1673 = vst.msk [vmem:[%s745] sm:$0xf] %vm1672, %v1671
      $region80: #{infini_wrapper_forward.4} parent=71 // pred_fallthru
        _
      %p1674 = scmp.lt.s32.totalorder %s31, 1
      %s1675 = scalar_select %p1674, %s31, 1
      %s1676 = smul.addr %s1675, 4
      %s1677 = scalar_lea.vmem %s13, %s1676
      %p1678 = scmp.lt.s32.totalorder %s32, 1
      %s1679 = scalar_select %p1678, %s32, 1
      %p1680 = scmp.lt.s32.totalorder %s31, 1
      %s1681 = scalar_select %p1680, %s31, 1
      %s1682 = smul.addr %s1681, 4
      %s1683 = smul.addr %s1679, 8
      %s1684 = sadd.s32 %s1682, %s1683
      %s1685 = smul.addr %s1684, 8
      %s1686 = scalar_lea.vmem %s14, %s1685
      %p1687 = scmp.lt.s32.totalorder %s32, 1
      %s1688 = scalar_select %p1687, %s32, 1
      %p1689 = scmp.lt.s32.totalorder %s31, 1
      %s1690 = scalar_select %p1689, %s31, 1
      %s1691 = smul.addr %s1688, 2
      %s1692 = sadd.s32 %s1690, %s1691
      %s1693 = smul.addr %s1692, 2
      %s1694 = scalar_lea.vmem %s15, %s1693
      // Predicated region
      $region81: #{infini_wrapper_forward.4} parent=71 // pred_check
        %p1695 = pneg %p394
      $region82: #{infini_wrapper_forward.4} parent=71 // pred_check_branch
        %1697 = sbr.rel (%p1695) target = $region84
      $region83: #{infini_wrapper_forward.4} parent=71 // pred_region
        _
      $region84: #{infini_wrapper_forward.4} parent=71 // pred_fallthru
        _
      // Predicated region
      $region85: #{infini_wrapper_forward.4} parent=71 // pred_check
        %p1698 = pneg %p422
      $region86: #{infini_wrapper_forward.4} parent=71 // pred_check_branch
        %1700 = sbr.rel (%p1698) target = $region88
      $region87: #{infini_wrapper_forward.4} parent=71 // pred_region
        _
      $region88: #{infini_wrapper_forward.4} parent=71 // pred_fallthru
        _
      // Predicated region
      $region89: #{infini_wrapper_forward.4} parent=71 // pred_check
        %p1701 = pneg %p450
      $region90: #{infini_wrapper_forward.4} parent=71 // pred_check_branch
        %1703 = sbr.rel (%p1701) target = $region92
      $region91: #{infini_wrapper_forward.4} parent=71 // pred_region
        _
      $region92: #{infini_wrapper_forward.4} parent=71 // pred_fallthru
        _
    $region72: #{infini_wrapper_forward.4} parent=5 // pred_fallthru
      _
    %p1704 = scmp.le.s32.totalorder 2, %s22
    // Predicated region
    $region93: #{infini_wrapper_forward.4} parent=5 // pred_check
      %p1705 = pneg %p1704
    $region94: #{infini_wrapper_forward.4} parent=5 // pred_check_branch
      %1707 = sbr.rel (%p1705) target = $region96
    $region95: #{infini_wrapper_forward.4} parent=5 // pred_region
      %s1708 = ssub.s32 %s22, 2
      // Predicated region
      $region97: #{infini_wrapper_forward.4} parent=95 // pred_check
        %p1709 = pneg %p400
      $region98: #{infini_wrapper_forward.4} parent=95 // pred_check_branch
        %1711 = sbr.rel (%p1709) target = $region100
      $region99: #{infini_wrapper_forward.4} parent=95 // pred_region
        %p1712 = scmp.lt.s32.totalorder %s33, 1
        %s1713 = scalar_select %p1712, %s33, 1
        %s1714 = smul.addr %s1713, 4
        %s1715 = scalar_lea.vmem %s13, %s1714
      $region100: #{infini_wrapper_forward.4} parent=95 // pred_fallthru
        _
      // Predicated region
      $region101: #{infini_wrapper_forward.4} parent=95 // pred_check
        %p1716 = pneg %p428
      $region102: #{infini_wrapper_forward.4} parent=95 // pred_check_branch
        %1718 = sbr.rel (%p1716) target = $region104
      $region103: #{infini_wrapper_forward.4} parent=95 // pred_region
        %p1719 = scmp.lt.s32.totalorder %s34, 1
        %s1720 = scalar_select %p1719, %s34, 1
        %p1721 = scmp.lt.s32.totalorder %s33, 1
        %s1722 = scalar_select %p1721, %s33, 1
        %s1723 = smul.addr %s1722, 4
        %s1724 = smul.addr %s1720, 8
        %s1725 = sadd.s32 %s1723, %s1724
        %s1726 = smul.addr %s1725, 8
        %s1727 = scalar_lea.vmem %s14, %s1726
      $region104: #{infini_wrapper_forward.4} parent=95 // pred_fallthru
        _
      // Predicated region
      $region105: #{infini_wrapper_forward.4} parent=95 // pred_check
        %p1728 = pneg %p456
      $region106: #{infini_wrapper_forward.4} parent=95 // pred_check_branch
        %1730 = sbr.rel (%p1728) target = $region108
      $region107: #{infini_wrapper_forward.4} parent=95 // pred_region
        %p1731 = scmp.lt.s32.totalorder %s34, 1
        %s1732 = scalar_select %p1731, %s34, 1
        %p1733 = scmp.lt.s32.totalorder %s33, 1
        %s1734 = scalar_select %p1733, %s33, 1
        %s1735 = smul.addr %s1732, 2
        %s1736 = sadd.s32 %s1734, %s1735
        %s1737 = smul.addr %s1736, 2
        %s1738 = scalar_lea.vmem %s15, %s1737
      $region108: #{infini_wrapper_forward.4} parent=95 // pred_fallthru
        _
    $region96: #{infini_wrapper_forward.4} parent=5 // pred_fallthru
      _
  $region6: #{infini_wrapper_forward.4} parent=0 // loop_footer
    %s26 = sadd.s32 1, %s22
  $region7: #{infini_wrapper_forward.4} parent=0 // loop_footer_branch
    %21 = sbr.rel target = $region3
  $region8: #{infini_wrapper_forward.4} parent=0 // loop_exit
    _

// kernel: infini_wrapper_forward.6
$region0: #{infini_wrapper_forward.6}
  #allocation0 [shape = 'u32[]', space=smem, size = 0x4, offset = 0x4, fixed_abs, tag = 'smem constant byte address 0x4 - core index']
  #allocation1 [shape = 'u32[144,128]{1,0:T(1,128)}', space=vmem, size = 0x12000, scoped, tag = 'internal scratch']
  #allocation2 [shape = 'f32[8,32]{1,0:T(8,128)}', space=vmem, size = 0x1000, scoped, tag = 'scratch operand']
  %s0 = inlined_call_operand.vmem [shape: f32[2,8,32], index: 0, kind: input, shape index: {}]
  %s1 = inlined_call_operand.vmem [shape: f32[2,1,32], index: 1, kind: input, shape index: {}]
  %s2 = inlined_call_operand.vmem [shape: bf16[2,32,96], index: 2, kind: input, shape index: {}]
  %s3 = inlined_call_operand.vmem [shape: bf16[2,32,32], index: 3, kind: input, shape index: {}]
  %s4 = inlined_call_operand.vmem [shape: f32[2,2,1,1], index: 4, kind: input, shape index: {}]
  %s5 = inlined_call_operand.vmem [shape: f32[2,1,32], index: 5, kind: input, shape index: {}]
  %s6 = inlined_call_operand.vmem [shape: bf16[2,32,128], index: 6, kind: input, shape index: {}]
  %s7 = inlined_call_operand.vmem [shape: f32[2,1,128], index: 7, kind: input, shape index: {}]
  %s8 = inlined_call_operand.vmem [shape: bf16[2,128,32], index: 8, kind: input, shape index: {}]
  %s9 = inlined_call_operand.vmem [shape: f32[2,1,32], index: 9, kind: input, shape index: {}]
  %s10 = inlined_call_operand.vmem [shape: f32[1,1,32], index: 10, kind: input, shape index: {}]
  %s11 = inlined_call_operand.vmem [shape: f32[2,2,32,16], index: 11, kind: input, shape index: {}]
  %s12 = inlined_call_operand.vmem [shape: f32[2,2,2,16], index: 12, kind: input, shape index: {}]
  %s13 = inlined_call_operand.vmem [shape: bf16[2,8,32], index: 13, kind: output, shape index: {0}]
  %s14 = inlined_call_operand.hbm [shape: f32[2,2,32,16], index: 14, kind: output, shape index: {1}]
  %s15 = inlined_call_operand.hbm [shape: f32[2,2,2,16], index: 15, kind: output, shape index: {2}]
  %16 = xla_tuple %s13, %s14, %s15
  %s17 = sld [smem:[#allocation0]]
  $region109: #{infini_wrapper_forward.6} parent=0
    _
  %s19 = ssub.s32 1, %s17
  %s20 = scalar_select 0, %s19, %s17
  $region1: #{infini_wrapper_forward.6} parent=0
    #allocation3 [shape = 'u8[32768]{0}', space=vmem, size = 0x8000, scoped, tag = 'output window, operand 1']
    #allocation4 [shape = 's32[2]{0}', space=sflag, size = 0x8, scoped, tag = 'scoped memory for infini_wrapper_forward.6']
    #allocation5 [shape = 'u8[2048]{0}', space=vmem, size = 0x800, scoped, tag = 'output window, operand 2']
    #allocation6 [shape = 's32[2]{0}', space=sflag, size = 0x8, scoped, tag = 'scoped memory for infini_wrapper_forward.6']
    %21 = vsyncpa [#allocation4], 0
    %s22 = scalar_lea.sflag [#allocation4], 1
    %23 = vsyncpa %s22, 0
    %24 = vsyncpa [#allocation6], 0
    %s25 = scalar_lea.sflag [#allocation6], 1
    %26 = vsyncpa %s25, 0
    loop: start=0, step=1, limit=6
    $region2: #{infini_wrapper_forward.6} parent=1 // loop_pre_header
      _
    $region3: #{infini_wrapper_forward.6} parent=1 // loop_header
      %s28 = sphi 0, %s32
      %p29 = scmp.ge.s32.totalorder %s28, 6
      %s35 = sphi 0, %s47
      %s36 = sphi 0, %s43
      %s37 = sphi 0, %s35
      %s38 = sphi 0, %s36
      %s39 = sphi 0, %s37
      %s40 = sphi 0, %s38
      %s50 = sphi 0, %s52
      %s53 = sphi 0, %s50
      %s54 = sphi 0, %s53
      %s70 = sphi 0, %s54
      %s76 = sphi 0, %s78
      %s79 = sphi 0, %s76
      %s80 = sphi 0, %s79
      %s96 = sphi 0, %s80
      %s102 = sphi 0, %s104
      %s105 = sphi 0, %s102
      %s106 = sphi 0, %s105
      %s122 = sphi 0, %s106
      %s128 = sphi 0, %s130
      %s131 = sphi 0, %s128
      %s132 = sphi 0, %s131
      %s148 = sphi 0, %s132
      %s154 = sphi 0, %s156
      %s157 = sphi 0, %s154
      %s158 = sphi 0, %s157
      %s174 = sphi 0, %s158
      %s180 = sphi 0, %s182
      %s183 = sphi 0, %s180
      %s184 = sphi 0, %s183
      %s200 = sphi 0, %s184
      %s206 = sphi 0, %s208
      %s209 = sphi 0, %s206
      %s210 = sphi 0, %s209
      %s226 = sphi 0, %s210
      %s232 = sphi 0, %s234
      %s235 = sphi 0, %s232
      %s236 = sphi 0, %s235
      %s252 = sphi 0, %s236
      %s258 = sphi 0, %s260
      %s261 = sphi 0, %s258
      %s262 = sphi 0, %s261
      %s278 = sphi 0, %s262
      %s284 = sphi 0, %s286
      %s287 = sphi 0, %s284
      %s288 = sphi 0, %s287
      %s304 = sphi 0, %s288
      %s308 = sphi 0, %s308
      %s310 = sphi 0, %s308
      %s311 = sphi 0, %s310
      %s325 = sphi 0, %s311
      %s333 = sphi 0, %s335
      %s336 = sphi 0, %s333
      %s337 = sphi 0, %s336
      %s353 = sphi 0, %s337
      %s361 = sphi 0, %s363
      %s364 = sphi 0, %s361
      %s365 = sphi 0, %s364
      %s381 = sphi 0, %s365
      %s387 = sphi 0, %s389
      %s390 = sphi 0, %s387
      %s391 = sphi 0, %s390
      %s407 = sphi 0, %s391
      %s415 = sphi 0, %s417
      %s418 = sphi 0, %s415
      %s419 = sphi 0, %s418
      %s435 = sphi 0, %s419
      %s443 = sphi 0, %s445
      %s446 = sphi 0, %s443
      %s447 = sphi 0, %s446
      %s463 = sphi 0, %s447
    $region4: #{infini_wrapper_forward.6} parent=1 // loop_header_branch
      %31 = sbr.rel (%p29) target = $region8
    $region5: #{infini_wrapper_forward.6} parent=1 // loop_body
      %s33 = ssub.s32 %s28, 1
      %s34 = ssub.s32 %s28, 2
      %s41 = sadd.s32 1, %s36
      %p42 = scmp.ge.s32.totalorder %s41, 2
      %s43 = scalar_select %p42, 0, %s41
      %s44 = sadd.s32 1, %s35
      %s45 = scalar_select %p42, %s44, %s35
      %p46 = scmp.ge.s32.totalorder %s45, 2
      %s47 = scalar_select %p46, 0, %s45
      %s48 = ssub.s32 %s35, %s47
      %p49 = scmp.eq.s32.totalorder %s48, 0
      %s51 = sadd.s32 %s50, 1
      %s52 = scalar_select %p49, %s50, %s51
      %p55 = pneg %p49
      %p56 = scmp.eq.s32.totalorder %s28, 3
      %p57 = por %p55, %p56
      %p58 = scmp.ne.s32.totalorder %s50, %s53
      %p59 = scmp.eq.s32.totalorder %s28, 0
      %p60 = por %p58, %p59
      %p61 = scmp.ne.s32.totalorder %s50, %s53
      %p62 = scmp.eq.s32.totalorder %s33, 3
      %p63 = por %p61, %p62
      %p64 = scmp.ne.s32.totalorder %s53, %s54
      %p65 = scmp.eq.s32.totalorder %s33, 0
      %p66 = por %p64, %p65
      %p67 = scmp.ne.s32.totalorder %s53, %s54
      %p68 = scmp.eq.s32.totalorder %s34, 3
      %p69 = por %p67, %p68
      %p71 = scmp.ne.s32.totalorder %s54, %s70
      %p72 = scmp.eq.s32.totalorder %s34, 0
      %p73 = por %p71, %p72
      %s74 = ssub.s32 %s36, %s43
      %p75 = scmp.eq.s32.totalorder %s74, 0
      %s77 = sadd.s32 %s76, 1
      %s78 = scalar_select %p75, %s76, %s77
      %p81 = pneg %p75
      %p82 = scmp.eq.s32.totalorder %s28, 3
      %p83 = por %p81, %p82
      %p84 = scmp.ne.s32.totalorder %s76, %s79
      %p85 = scmp.eq.s32.totalorder %s28, 0
      %p86 = por %p84, %p85
      %p87 = scmp.ne.s32.totalorder %s76, %s79
      %p88 = scmp.eq.s32.totalorder %s33, 3
      %p89 = por %p87, %p88
      %p90 = scmp.ne.s32.totalorder %s79, %s80
      %p91 = scmp.eq.s32.totalorder %s33, 0
      %p92 = por %p90, %p91
      %p93 = scmp.ne.s32.totalorder %s79, %s80
      %p94 = scmp.eq.s32.totalorder %s34, 3
      %p95 = por %p93, %p94
      %p97 = scmp.ne.s32.totalorder %s80, %s96
      %p98 = scmp.eq.s32.totalorder %s34, 0
      %p99 = por %p97, %p98
      %s100 = ssub.s32 %s36, %s43
      %p101 = scmp.eq.s32.totalorder %s100, 0
      %s103 = sadd.s32 %s102, 1
      %s104 = scalar_select %p101, %s102, %s103
      %p107 = pneg %p101
      %p108 = scmp.eq.s32.totalorder %s28, 3
      %p109 = por %p107, %p108
      %p110 = scmp.ne.s32.totalorder %s102, %s105
      %p111 = scmp.eq.s32.totalorder %s28, 0
      %p112 = por %p110, %p111
      %p113 = scmp.ne.s32.totalorder %s102, %s105
      %p114 = scmp.eq.s32.totalorder %s33, 3
      %p115 = por %p113, %p114
      %p116 = scmp.ne.s32.totalorder %s105, %s106
      %p117 = scmp.eq.s32.totalorder %s33, 0
      %p118 = por %p116, %p117
      %p119 = scmp.ne.s32.totalorder %s105, %s106
      %p120 = scmp.eq.s32.totalorder %s34, 3
      %p121 = por %p119, %p120
      %p123 = scmp.ne.s32.totalorder %s106, %s122
      %p124 = scmp.eq.s32.totalorder %s34, 0
      %p125 = por %p123, %p124
      %s126 = ssub.s32 %s36, %s43
      %p127 = scmp.eq.s32.totalorder %s126, 0
      %s129 = sadd.s32 %s128, 1
      %s130 = scalar_select %p127, %s128, %s129
      %p133 = pneg %p127
      %p134 = scmp.eq.s32.totalorder %s28, 3
      %p135 = por %p133, %p134
      %p136 = scmp.ne.s32.totalorder %s128, %s131
      %p137 = scmp.eq.s32.totalorder %s28, 0
      %p138 = por %p136, %p137
      %p139 = scmp.ne.s32.totalorder %s128, %s131
      %p140 = scmp.eq.s32.totalorder %s33, 3
      %p141 = por %p139, %p140
      %p142 = scmp.ne.s32.totalorder %s131, %s132
      %p143 = scmp.eq.s32.totalorder %s33, 0
      %p144 = por %p142, %p143
      %p145 = scmp.ne.s32.totalorder %s131, %s132
      %p146 = scmp.eq.s32.totalorder %s34, 3
      %p147 = por %p145, %p146
      %p149 = scmp.ne.s32.totalorder %s132, %s148
      %p150 = scmp.eq.s32.totalorder %s34, 0
      %p151 = por %p149, %p150
      %s152 = ssub.s32 %s36, %s43
      %p153 = scmp.eq.s32.totalorder %s152, 0
      %s155 = sadd.s32 %s154, 1
      %s156 = scalar_select %p153, %s154, %s155
      %p159 = pneg %p153
      %p160 = scmp.eq.s32.totalorder %s28, 3
      %p161 = por %p159, %p160
      %p162 = scmp.ne.s32.totalorder %s154, %s157
      %p163 = scmp.eq.s32.totalorder %s28, 0
      %p164 = por %p162, %p163
      %p165 = scmp.ne.s32.totalorder %s154, %s157
      %p166 = scmp.eq.s32.totalorder %s33, 3
      %p167 = por %p165, %p166
      %p168 = scmp.ne.s32.totalorder %s157, %s158
      %p169 = scmp.eq.s32.totalorder %s33, 0
      %p170 = por %p168, %p169
      %p171 = scmp.ne.s32.totalorder %s157, %s158
      %p172 = scmp.eq.s32.totalorder %s34, 3
      %p173 = por %p171, %p172
      %p175 = scmp.ne.s32.totalorder %s158, %s174
      %p176 = scmp.eq.s32.totalorder %s34, 0
      %p177 = por %p175, %p176
      %s178 = ssub.s32 %s36, %s43
      %p179 = scmp.eq.s32.totalorder %s178, 0
      %s181 = sadd.s32 %s180, 1
      %s182 = scalar_select %p179, %s180, %s181
      %p185 = pneg %p179
      %p186 = scmp.eq.s32.totalorder %s28, 3
      %p187 = por %p185, %p186
      %p188 = scmp.ne.s32.totalorder %s180, %s183
      %p189 = scmp.eq.s32.totalorder %s28, 0
      %p190 = por %p188, %p189
      %p191 = scmp.ne.s32.totalorder %s180, %s183
      %p192 = scmp.eq.s32.totalorder %s33, 3
      %p193 = por %p191, %p192
      %p194 = scmp.ne.s32.totalorder %s183, %s184
      %p195 = scmp.eq.s32.totalorder %s33, 0
      %p196 = por %p194, %p195
      %p197 = scmp.ne.s32.totalorder %s183, %s184
      %p198 = scmp.eq.s32.totalorder %s34, 3
      %p199 = por %p197, %p198
      %p201 = scmp.ne.s32.totalorder %s184, %s200
      %p202 = scmp.eq.s32.totalorder %s34, 0
      %p203 = por %p201, %p202
      %s204 = ssub.s32 %s36, %s43
      %p205 = scmp.eq.s32.totalorder %s204, 0
      %s207 = sadd.s32 %s206, 1
      %s208 = scalar_select %p205, %s206, %s207
      %p211 = pneg %p205
      %p212 = scmp.eq.s32.totalorder %s28, 3
      %p213 = por %p211, %p212
      %p214 = scmp.ne.s32.totalorder %s206, %s209
      %p215 = scmp.eq.s32.totalorder %s28, 0
      %p216 = por %p214, %p215
      %p217 = scmp.ne.s32.totalorder %s206, %s209
      %p218 = scmp.eq.s32.totalorder %s33, 3
      %p219 = por %p217, %p218
      %p220 = scmp.ne.s32.totalorder %s209, %s210
      %p221 = scmp.eq.s32.totalorder %s33, 0
      %p222 = por %p220, %p221
      %p223 = scmp.ne.s32.totalorder %s209, %s210
      %p224 = scmp.eq.s32.totalorder %s34, 3
      %p225 = por %p223, %p224
      %p227 = scmp.ne.s32.totalorder %s210, %s226
      %p228 = scmp.eq.s32.totalorder %s34, 0
      %p229 = por %p227, %p228
      %s230 = ssub.s32 %s36, %s43
      %p231 = scmp.eq.s32.totalorder %s230, 0
      %s233 = sadd.s32 %s232, 1
      %s234 = scalar_select %p231, %s232, %s233
      %p237 = pneg %p231
      %p238 = scmp.eq.s32.totalorder %s28, 3
      %p239 = por %p237, %p238
      %p240 = scmp.ne.s32.totalorder %s232, %s235
      %p241 = scmp.eq.s32.totalorder %s28, 0
      %p242 = por %p240, %p241
      %p243 = scmp.ne.s32.totalorder %s232, %s235
      %p244 = scmp.eq.s32.totalorder %s33, 3
      %p245 = por %p243, %p244
      %p246 = scmp.ne.s32.totalorder %s235, %s236
      %p247 = scmp.eq.s32.totalorder %s33, 0
      %p248 = por %p246, %p247
      %p249 = scmp.ne.s32.totalorder %s235, %s236
      %p250 = scmp.eq.s32.totalorder %s34, 3
      %p251 = por %p249, %p250
      %p253 = scmp.ne.s32.totalorder %s236, %s252
      %p254 = scmp.eq.s32.totalorder %s34, 0
      %p255 = por %p253, %p254
      %s256 = ssub.s32 %s36, %s43
      %p257 = scmp.eq.s32.totalorder %s256, 0
      %s259 = sadd.s32 %s258, 1
      %s260 = scalar_select %p257, %s258, %s259
      %p263 = pneg %p257
      %p264 = scmp.eq.s32.totalorder %s28, 3
      %p265 = por %p263, %p264
      %p266 = scmp.ne.s32.totalorder %s258, %s261
      %p267 = scmp.eq.s32.totalorder %s28, 0
      %p268 = por %p266, %p267
      %p269 = scmp.ne.s32.totalorder %s258, %s261
      %p270 = scmp.eq.s32.totalorder %s33, 3
      %p271 = por %p269, %p270
      %p272 = scmp.ne.s32.totalorder %s261, %s262
      %p273 = scmp.eq.s32.totalorder %s33, 0
      %p274 = por %p272, %p273
      %p275 = scmp.ne.s32.totalorder %s261, %s262
      %p276 = scmp.eq.s32.totalorder %s34, 3
      %p277 = por %p275, %p276
      %p279 = scmp.ne.s32.totalorder %s262, %s278
      %p280 = scmp.eq.s32.totalorder %s34, 0
      %p281 = por %p279, %p280
      %s282 = ssub.s32 %s36, %s43
      %p283 = scmp.eq.s32.totalorder %s282, 0
      %s285 = sadd.s32 %s284, 1
      %s286 = scalar_select %p283, %s284, %s285
      %p289 = pneg %p283
      %p290 = scmp.eq.s32.totalorder %s28, 3
      %p291 = por %p289, %p290
      %p292 = scmp.ne.s32.totalorder %s284, %s287
      %p293 = scmp.eq.s32.totalorder %s28, 0
      %p294 = por %p292, %p293
      %p295 = scmp.ne.s32.totalorder %s284, %s287
      %p296 = scmp.eq.s32.totalorder %s33, 3
      %p297 = por %p295, %p296
      %p298 = scmp.ne.s32.totalorder %s287, %s288
      %p299 = scmp.eq.s32.totalorder %s33, 0
      %p300 = por %p298, %p299
      %p301 = scmp.ne.s32.totalorder %s287, %s288
      %p302 = scmp.eq.s32.totalorder %s34, 3
      %p303 = por %p301, %p302
      %p305 = scmp.ne.s32.totalorder %s288, %s304
      %p306 = scmp.eq.s32.totalorder %s34, 0
      %p307 = por %p305, %p306
      %s309 = sadd.s32 %s308, 1
      %p312 = scmp.eq.s32.totalorder %s28, 3
      %p313 = scmp.ne.s32.totalorder %s308, %s310
      %p314 = scmp.eq.s32.totalorder %s28, 0
      %p315 = por %p313, %p314
      %p316 = scmp.ne.s32.totalorder %s308, %s310
      %p317 = scmp.eq.s32.totalorder %s33, 3
      %p318 = por %p316, %p317
      %p319 = scmp.ne.s32.totalorder %s310, %s311
      %p320 = scmp.eq.s32.totalorder %s33, 0
      %p321 = por %p319, %p320
      %p322 = scmp.ne.s32.totalorder %s310, %s311
      %p323 = scmp.eq.s32.totalorder %s34, 3
      %p324 = por %p322, %p323
      %p326 = scmp.ne.s32.totalorder %s311, %s325
      %p327 = scmp.eq.s32.totalorder %s34, 0
      %p328 = por %p326, %p327
      %s329 = ssub.s32 %s36, %s43
      %s330 = ssub.s32 %s35, %s47
      %s331 = sor.u32 %s329, %s330
      %p332 = scmp.eq.s32.totalorder %s331, 0
      %s334 = sadd.s32 %s333, 1
      %s335 = scalar_select %p332, %s333, %s334
      %p338 = pneg %p332
      %p339 = scmp.eq.s32.totalorder %s28, 3
      %p340 = por %p338, %p339
      %p341 = scmp.ne.s32.totalorder %s333, %s336
      %p342 = scmp.eq.s32.totalorder %s28, 0
      %p343 = por %p341, %p342
      %p344 = scmp.ne.s32.totalorder %s333, %s336
      %p345 = scmp.eq.s32.totalorder %s33, 3
      %p346 = por %p344, %p345
      %p347 = scmp.ne.s32.totalorder %s336, %s337
      %p348 = scmp.eq.s32.totalorder %s33, 0
      %p349 = por %p347, %p348
      %p350 = scmp.ne.s32.totalorder %s336, %s337
      %p351 = scmp.eq.s32.totalorder %s34, 3
      %p352 = por %p350, %p351
      %p354 = scmp.ne.s32.totalorder %s337, %s353
      %p355 = scmp.eq.s32.totalorder %s34, 0
      %p356 = por %p354, %p355
      %s357 = ssub.s32 %s36, %s43
      %s358 = ssub.s32 %s35, %s47
      %s359 = sor.u32 %s357, %s358
      %p360 = scmp.eq.s32.totalorder %s359, 0
      %s362 = sadd.s32 %s361, 1
      %s363 = scalar_select %p360, %s361, %s362
      %p366 = pneg %p360
      %p367 = scmp.eq.s32.totalorder %s28, 3
      %p368 = por %p366, %p367
      %p369 = scmp.ne.s32.totalorder %s361, %s364
      %p370 = scmp.eq.s32.totalorder %s28, 0
      %p371 = por %p369, %p370
      %p372 = scmp.ne.s32.totalorder %s361, %s364
      %p373 = scmp.eq.s32.totalorder %s33, 3
      %p374 = por %p372, %p373
      %p375 = scmp.ne.s32.totalorder %s364, %s365
      %p376 = scmp.eq.s32.totalorder %s33, 0
      %p377 = por %p375, %p376
      %p378 = scmp.ne.s32.totalorder %s364, %s365
      %p379 = scmp.eq.s32.totalorder %s34, 3
      %p380 = por %p378, %p379
      %p382 = scmp.ne.s32.totalorder %s365, %s381
      %p383 = scmp.eq.s32.totalorder %s34, 0
      %p384 = por %p382, %p383
      %s385 = ssub.s32 %s35, %s47
      %p386 = scmp.eq.s32.totalorder %s385, 0
      %s388 = sadd.s32 %s387, 1
      %s389 = scalar_select %p386, %s387, %s388
      %p392 = pneg %p386
      %p393 = scmp.eq.s32.totalorder %s28, 3
      %p394 = por %p392, %p393
      %p395 = scmp.ne.s32.totalorder %s387, %s390
      %p396 = scmp.eq.s32.totalorder %s28, 0
      %p397 = por %p395, %p396
      %p398 = scmp.ne.s32.totalorder %s387, %s390
      %p399 = scmp.eq.s32.totalorder %s33, 3
      %p400 = por %p398, %p399
      %p401 = scmp.ne.s32.totalorder %s390, %s391
      %p402 = scmp.eq.s32.totalorder %s33, 0
      %p403 = por %p401, %p402
      %p404 = scmp.ne.s32.totalorder %s390, %s391
      %p405 = scmp.eq.s32.totalorder %s34, 3
      %p406 = por %p404, %p405
      %p408 = scmp.ne.s32.totalorder %s391, %s407
      %p409 = scmp.eq.s32.totalorder %s34, 0
      %p410 = por %p408, %p409
      %s411 = ssub.s32 %s36, %s43
      %s412 = ssub.s32 %s35, %s47
      %s413 = sor.u32 %s411, %s412
      %p414 = scmp.eq.s32.totalorder %s413, 0
      %s416 = sadd.s32 %s415, 1
      %s417 = scalar_select %p414, %s415, %s416
      %p420 = pneg %p414
      %p421 = scmp.eq.s32.totalorder %s28, 3
      %p422 = por %p420, %p421
      %p423 = scmp.ne.s32.totalorder %s415, %s418
      %p424 = scmp.eq.s32.totalorder %s28, 0
      %p425 = por %p423, %p424
      %p426 = scmp.ne.s32.totalorder %s415, %s418
      %p427 = scmp.eq.s32.totalorder %s33, 3
      %p428 = por %p426, %p427
      %p429 = scmp.ne.s32.totalorder %s418, %s419
      %p430 = scmp.eq.s32.totalorder %s33, 0
      %p431 = por %p429, %p430
      %p432 = scmp.ne.s32.totalorder %s418, %s419
      %p433 = scmp.eq.s32.totalorder %s34, 3
      %p434 = por %p432, %p433
      %p436 = scmp.ne.s32.totalorder %s419, %s435
      %p437 = scmp.eq.s32.totalorder %s34, 0
      %p438 = por %p436, %p437
      %s439 = ssub.s32 %s36, %s43
      %s440 = ssub.s32 %s35, %s47
      %s441 = sor.u32 %s439, %s440
      %p442 = scmp.eq.s32.totalorder %s441, 0
      %s444 = sadd.s32 %s443, 1
      %s445 = scalar_select %p442, %s443, %s444
      %p448 = pneg %p442
      %p449 = scmp.eq.s32.totalorder %s28, 3
      %p450 = por %p448, %p449
      %p451 = scmp.ne.s32.totalorder %s443, %s446
      %p452 = scmp.eq.s32.totalorder %s28, 0
      %p453 = por %p451, %p452
      %p454 = scmp.ne.s32.totalorder %s443, %s446
      %p455 = scmp.eq.s32.totalorder %s33, 3
      %p456 = por %p454, %p455
      %p457 = scmp.ne.s32.totalorder %s446, %s447
      %p458 = scmp.eq.s32.totalorder %s33, 0
      %p459 = por %p457, %p458
      %p460 = scmp.ne.s32.totalorder %s446, %s447
      %p461 = scmp.eq.s32.totalorder %s34, 3
      %p462 = por %p460, %p461
      %p464 = scmp.ne.s32.totalorder %s447, %s463
      %p465 = scmp.eq.s32.totalorder %s34, 0
      %p466 = por %p464, %p465
      %p467 = scmp.le.s32.totalorder 1, %s28
      %p468 = scmp.lt.s32.totalorder %s28, 5
      %p469 = pnand %p467, %p468
      %p470 = pneg %p469
      // Predicated region
      $region9: #{infini_wrapper_forward.6} parent=5 // pred_check
        _
      $region10: #{infini_wrapper_forward.6} parent=5 // pred_check_branch
        %472 = sbr.rel (%p469) target = $region12
      $region11: #{infini_wrapper_forward.6} parent=5 // pred_region
        %s473 = ssub.s32 %s28, 1
        // Predicated region
        $region13: #{infini_wrapper_forward.6} parent=11 // pred_check
          %p474 = pneg %p321
        $region14: #{infini_wrapper_forward.6} parent=11 // pred_check_branch
          %476 = sbr.rel (%p474) target = $region16
        $region15: #{infini_wrapper_forward.6} parent=11 // pred_region
          _
        $region16: #{infini_wrapper_forward.6} parent=11 // pred_fallthru
          _
      $region12: #{infini_wrapper_forward.6} parent=5 // pred_fallthru
        _
      %p477 = scmp.lt.s32.totalorder %s28, 4
      // Predicated region
      $region17: #{infini_wrapper_forward.6} parent=5 // pred_check
        %p478 = pneg %p477
      $region18: #{infini_wrapper_forward.6} parent=5 // pred_check_branch
        %480 = sbr.rel (%p478) target = $region20
      $region19: #{infini_wrapper_forward.6} parent=5 // pred_region
        // Predicated region
        $region21: #{infini_wrapper_forward.6} parent=19 // pred_check
          %p481 = pneg %p60
        $region22: #{infini_wrapper_forward.6} parent=19 // pred_check_branch
          %483 = sbr.rel (%p481) target = $region24
        $region23: #{infini_wrapper_forward.6} parent=19 // pred_region
          %p484 = scmp.lt.s32.totalorder %s35, 1
          %s485 = scalar_select %p484, %s35, 1
          %s486 = smul.addr %s485, 8
          %s487 = scalar_lea.vmem %s0, %s486
        $region24: #{infini_wrapper_forward.6} parent=19 // pred_fallthru
          _
        // Predicated region
        $region25: #{infini_wrapper_forward.6} parent=19 // pred_check
          %p488 = pneg %p86
        $region26: #{infini_wrapper_forward.6} parent=19 // pred_check_branch
          %490 = sbr.rel (%p488) target = $region28
        $region27: #{infini_wrapper_forward.6} parent=19 // pred_region
          %p491 = scmp.lt.s32.totalorder %s36, 1
          %s492 = scalar_select %p491, %s36, 1
          %s493 = scalar_lea.vmem %s1, %s492
        $region28: #{infini_wrapper_forward.6} parent=19 // pred_fallthru
          _
        // Predicated region
        $region29: #{infini_wrapper_forward.6} parent=19 // pred_check
          %p494 = pneg %p112
        $region30: #{infini_wrapper_forward.6} parent=19 // pred_check_branch
          %496 = sbr.rel (%p494) target = $region32
        $region31: #{infini_wrapper_forward.6} parent=19 // pred_region
          %p497 = scmp.lt.s32.totalorder %s36, 1
          %s498 = scalar_select %p497, %s36, 1
          %s499 = smul.addr %s498, 4
          %s500 = smul.addr %s499, 4
          %s501 = scalar_lea.vmem %s2, %s500
        $region32: #{infini_wrapper_forward.6} parent=19 // pred_fallthru
          _
        // Predicated region
        $region33: #{infini_wrapper_forward.6} parent=19 // pred_check
          %p502 = pneg %p138
        $region34: #{infini_wrapper_forward.6} parent=19 // pred_check_branch
          %504 = sbr.rel (%p502) target = $region36
        $region35: #{infini_wrapper_forward.6} parent=19 // pred_region
          %p505 = scmp.lt.s32.totalorder %s36, 1
          %s506 = scalar_select %p505, %s36, 1
          %s507 = smul.addr %s506, 4
          %s508 = smul.addr %s507, 4
          %s509 = scalar_lea.vmem %s3, %s508
        $region36: #{infini_wrapper_forward.6} parent=19 // pred_fallthru
          _
        // Predicated region
        $region37: #{infini_wrapper_forward.6} parent=19 // pred_check
          %p510 = pneg %p164
        $region38: #{infini_wrapper_forward.6} parent=19 // pred_check_branch
          %512 = sbr.rel (%p510) target = $region40
        $region39: #{infini_wrapper_forward.6} parent=19 // pred_region
          %p513 = scmp.lt.s32.totalorder %s36, 1
          %s514 = scalar_select %p513, %s36, 1
          %s515 = smul.addr %s514, 2
          %s516 = scalar_lea.vmem %s4, %s515
        $region40: #{infini_wrapper_forward.6} parent=19 // pred_fallthru
          _
        // Predicated region
        $region41: #{infini_wrapper_forward.6} parent=19 // pred_check
          %p517 = pneg %p190
        $region42: #{infini_wrapper_forward.6} parent=19 // pred_check_branch
          %519 = sbr.rel (%p517) target = $region44
        $region43: #{infini_wrapper_forward.6} parent=19 // pred_region
          %p520 = scmp.lt.s32.totalorder %s36, 1
          %s521 = scalar_select %p520, %s36, 1
          %s522 = scalar_lea.vmem %s5, %s521
        $region44: #{infini_wrapper_forward.6} parent=19 // pred_fallthru
          _
        // Predicated region
        $region45: #{infini_wrapper_forward.6} parent=19 // pred_check
          %p523 = pneg %p216
        $region46: #{infini_wrapper_forward.6} parent=19 // pred_check_branch
          %525 = sbr.rel (%p523) target = $region48
        $region47: #{infini_wrapper_forward.6} parent=19 // pred_region
          %p526 = scmp.lt.s32.totalorder %s36, 1
          %s527 = scalar_select %p526, %s36, 1
          %s528 = smul.addr %s527, 4
          %s529 = smul.addr %s528, 4
          %s530 = scalar_lea.vmem %s6, %s529
        $region48: #{infini_wrapper_forward.6} parent=19 // pred_fallthru
          _
        // Predicated region
        $region49: #{infini_wrapper_forward.6} parent=19 // pred_check
          %p531 = pneg %p242
        $region50: #{infini_wrapper_forward.6} parent=19 // pred_check_branch
          %533 = sbr.rel (%p531) target = $region52
        $region51: #{infini_wrapper_forward.6} parent=19 // pred_region
          %p534 = scmp.lt.s32.totalorder %s36, 1
          %s535 = scalar_select %p534, %s36, 1
          %s536 = scalar_lea.vmem %s7, %s535
        $region52: #{infini_wrapper_forward.6} parent=19 // pred_fallthru
          _
        // Predicated region
        $region53: #{infini_wrapper_forward.6} parent=19 // pred_check
          %p537 = pneg %p268
        $region54: #{infini_wrapper_forward.6} parent=19 // pred_check_branch
          %539 = sbr.rel (%p537) target = $region56
        $region55: #{infini_wrapper_forward.6} parent=19 // pred_region
          %p540 = scmp.lt.s32.totalorder %s36, 1
          %s541 = scalar_select %p540, %s36, 1
          %s542 = smul.addr %s541, 16
          %s543 = smul.addr %s542, 4
          %s544 = scalar_lea.vmem %s8, %s543
        $region56: #{infini_wrapper_forward.6} parent=19 // pred_fallthru
          _
        // Predicated region
        $region57: #{infini_wrapper_forward.6} parent=19 // pred_check
          %p545 = pneg %p294
        $region58: #{infini_wrapper_forward.6} parent=19 // pred_check_branch
          %547 = sbr.rel (%p545) target = $region60
        $region59: #{infini_wrapper_forward.6} parent=19 // pred_region
          %p548 = scmp.lt.s32.totalorder %s36, 1
          %s549 = scalar_select %p548, %s36, 1
          %s550 = scalar_lea.vmem %s9, %s549
        $region60: #{infini_wrapper_forward.6} parent=19 // pred_fallthru
          _
        // Predicated region
        $region61: #{infini_wrapper_forward.6} parent=19 // pred_check
          %p551 = pneg %p343
        $region62: #{infini_wrapper_forward.6} parent=19 // pred_check_branch
          %553 = sbr.rel (%p551) target = $region64
        $region63: #{infini_wrapper_forward.6} parent=19 // pred_region
          %p554 = scmp.lt.s32.totalorder %s36, 1
          %s555 = scalar_select %p554, %s36, 1
          %p556 = scmp.lt.s32.totalorder %s35, 1
          %s557 = scalar_select %p556, %s35, 1
          %s558 = smul.addr %s557, 4
          %s559 = smul.addr %s555, 8
          %s560 = sadd.s32 %s558, %s559
          %s561 = smul.addr %s560, 8
          %s562 = scalar_lea.vmem %s11, %s561
        $region64: #{infini_wrapper_forward.6} parent=19 // pred_fallthru
          _
        // Predicated region
        $region65: #{infini_wrapper_forward.6} parent=19 // pred_check
          %p563 = pneg %p371
        $region66: #{infini_wrapper_forward.6} parent=19 // pred_check_branch
          %565 = sbr.rel (%p563) target = $region68
        $region67: #{infini_wrapper_forward.6} parent=19 // pred_region
          %p566 = scmp.lt.s32.totalorder %s36, 1
          %s567 = scalar_select %p566, %s36, 1
          %p568 = scmp.lt.s32.totalorder %s35, 1
          %s569 = scalar_select %p568, %s35, 1
          %s570 = smul.addr %s567, 2
          %s571 = sadd.s32 %s569, %s570
          %s572 = smul.addr %s571, 2
          %s573 = scalar_lea.vmem %s12, %s572
        $region68: #{infini_wrapper_forward.6} parent=19 // pred_fallthru
          _
      $region20: #{infini_wrapper_forward.6} parent=5 // pred_fallthru
        _
      %p574 = scmp.le.s32.totalorder 1, %s28
      %p575 = scmp.lt.s32.totalorder %s28, 5
      %p576 = pnand %p574, %p575
      %p577 = pneg %p576
      // Predicated region
      $region69: #{infini_wrapper_forward.6} parent=5 // pred_check
        _
      $region70: #{infini_wrapper_forward.6} parent=5 // pred_check_branch
        %579 = sbr.rel (%p576) target = $region72
      $region71: #{infini_wrapper_forward.6} parent=5 // pred_region
        %s580 = ssub.s32 %s28, 1
        %p581 = scmp.lt.s32.totalorder %s37, 1
        %s582 = scalar_select %p581, %s37, 1
        %s583 = smul.addr %s582, 8
        %s584 = scalar_lea.vmem %s0, %s583
        %p585 = pneg %p66
        %p586 = pneg %p63
        %p587 = scmp.lt.s32.totalorder %s38, 1
        %s588 = scalar_select %p587, %s38, 1
        %s589 = scalar_lea.vmem %s1, %s588
        %p590 = pneg %p92
        %p591 = pneg %p89
        %p592 = scmp.lt.s32.totalorder %s38, 1
        %s593 = scalar_select %p592, %s38, 1
        %s594 = smul.addr %s593, 4
        %s595 = smul.addr %s594, 4
        %s596 = scalar_lea.vmem %s2, %s595
        %p597 = pneg %p118
        %p598 = pneg %p115
        %p599 = scmp.lt.s32.totalorder %s38, 1
        %s600 = scalar_select %p599, %s38, 1
        %s601 = smul.addr %s600, 4
        %s602 = smul.addr %s601, 4
        %s603 = scalar_lea.vmem %s3, %s602
        %p604 = pneg %p144
        %p605 = pneg %p141
        %p606 = scmp.lt.s32.totalorder %s38, 1
        %s607 = scalar_select %p606, %s38, 1
        %s608 = smul.addr %s607, 2
        %s609 = scalar_lea.vmem %s4, %s608
        %p610 = pneg %p170
        %p611 = pneg %p167
        %p612 = scmp.lt.s32.totalorder %s38, 1
        %s613 = scalar_select %p612, %s38, 1
        %s614 = scalar_lea.vmem %s5, %s613
        %p615 = pneg %p196
        %p616 = pneg %p193
        %p617 = scmp.lt.s32.totalorder %s38, 1
        %s618 = scalar_select %p617, %s38, 1
        %s619 = smul.addr %s618, 4
        %s620 = smul.addr %s619, 4
        %s621 = scalar_lea.vmem %s6, %s620
        %p622 = pneg %p222
        %p623 = pneg %p219
        %p624 = scmp.lt.s32.totalorder %s38, 1
        %s625 = scalar_select %p624, %s38, 1
        %s626 = scalar_lea.vmem %s7, %s625
        %p627 = pneg %p248
        %p628 = pneg %p245
        %p629 = scmp.lt.s32.totalorder %s38, 1
        %s630 = scalar_select %p629, %s38, 1
        %s631 = smul.addr %s630, 16
        %s632 = smul.addr %s631, 4
        %s633 = scalar_lea.vmem %s8, %s632
        %p634 = pneg %p274
        %p635 = pneg %p271
        %p636 = scmp.lt.s32.totalorder %s38, 1
        %s637 = scalar_select %p636, %s38, 1
        %s638 = scalar_lea.vmem %s9, %s637
        %p639 = pneg %p300
        %p640 = pneg %p297
        %p641 = pneg %p321
        %p642 = pneg %p318
        %p643 = scmp.lt.s32.totalorder %s38, 1
        %s644 = scalar_select %p643, %s38, 1
        %p645 = scmp.lt.s32.totalorder %s37, 1
        %s646 = scalar_select %p645, %s37, 1
        %s647 = smul.addr %s646, 4
        %s648 = smul.addr %s644, 8
        %s649 = sadd.s32 %s647, %s648
        %s650 = smul.addr %s649, 8
        %s651 = scalar_lea.vmem %s11, %s650
        %p652 = pneg %p349
        %p653 = pneg %p346
        %p654 = scmp.lt.s32.totalorder %s38, 1
        %s655 = scalar_select %p654, %s38, 1
        %p656 = scmp.lt.s32.totalorder %s37, 1
        %s657 = scalar_select %p656, %s37, 1
        %s658 = smul.addr %s655, 2
        %s659 = sadd.s32 %s657, %s658
        %s660 = smul.addr %s659, 2
        %s661 = scalar_lea.vmem %s12, %s660
        %p662 = pneg %p377
        %p663 = pneg %p374
        %p664 = pneg %p403
        %p665 = pneg %p400
        %p666 = scmp.lt.s32.totalorder %s37, 1
        %s667 = scalar_select %p666, %s37, 1
        %s668 = smul.addr %s667, 4
        %s669 = scalar_lea.vmem %s13, %s668
        %p670 = pneg %p431
        %p671 = pneg %p428
        %s672 = sand.u32 %s418, 1
        %s673 = scalar_lea.sflag [#allocation4], %s672
        %s674 = sand.u32 %s418, 1
        %s675 = smul.addr %s674, 32
        %s676 = scalar_lea.vmem [#allocation3], %s675
        %p677 = pneg %p459
        %p678 = pneg %p456
        %s679 = sand.u32 %s446, 1
        %s680 = scalar_lea.sflag [#allocation6], %s679
        %s681 = sand.u32 %s446, 1
        %s682 = smul.addr %s681, 2
        %s683 = scalar_lea.vmem [#allocation5], %s682
        %p684 = scmp.lt.s32.totalorder %s37, 1
        %s685 = scalar_select %p684, %s37, 1
        %s686 = smul.addr %s685, 8
        %s687 = scalar_lea.vmem %s0, %s686
        %p688 = scmp.lt.s32.totalorder %s38, 1
        %s689 = scalar_select %p688, %s38, 1
        %s690 = scalar_lea.vmem %s1, %s689
        %p691 = scmp.lt.s32.totalorder %s38, 1
        %s692 = scalar_select %p691, %s38, 1
        %s693 = smul.addr %s692, 4
        %s694 = smul.addr %s693, 4
        %s695 = scalar_lea.vmem %s2, %s694
        %p696 = scmp.lt.s32.totalorder %s38, 1
        %s697 = scalar_select %p696, %s38, 1
        %s698 = smul.addr %s697, 4
        %s699 = smul.addr %s698, 4
        %s700 = scalar_lea.vmem %s3, %s699
        %p701 = scmp.lt.s32.totalorder %s38, 1
        %s702 = scalar_select %p701, %s38, 1
        %s703 = smul.addr %s702, 2
        %s704 = scalar_lea.vmem %s4, %s703
        %p705 = scmp.lt.s32.totalorder %s38, 1
        %s706 = scalar_select %p705, %s38, 1
        %s707 = scalar_lea.vmem %s5, %s706
        %p708 = scmp.lt.s32.totalorder %s38, 1
        %s709 = scalar_select %p708, %s38, 1
        %s710 = smul.addr %s709, 4
        %s711 = smul.addr %s710, 4
        %s712 = scalar_lea.vmem %s6, %s711
        %p713 = scmp.lt.s32.totalorder %s38, 1
        %s714 = scalar_select %p713, %s38, 1
        %s715 = scalar_lea.vmem %s7, %s714
        %p716 = scmp.lt.s32.totalorder %s38, 1
        %s717 = scalar_select %p716, %s38, 1
        %s718 = smul.addr %s717, 16
        %s719 = smul.addr %s718, 4
        %s720 = scalar_lea.vmem %s8, %s719
        %p721 = scmp.lt.s32.totalorder %s38, 1
        %s722 = scalar_select %p721, %s38, 1
        %s723 = scalar_lea.vmem %s9, %s722
        %p724 = scmp.lt.s32.totalorder %s38, 1
        %s725 = scalar_select %p724, %s38, 1
        %p726 = scmp.lt.s32.totalorder %s37, 1
        %s727 = scalar_select %p726, %s37, 1
        %s728 = smul.addr %s727, 4
        %s729 = smul.addr %s725, 8
        %s730 = sadd.s32 %s728, %s729
        %s731 = smul.addr %s730, 8
        %s732 = scalar_lea.vmem %s11, %s731
        %p733 = scmp.lt.s32.totalorder %s38, 1
        %s734 = scalar_select %p733, %s38, 1
        %p735 = scmp.lt.s32.totalorder %s37, 1
        %s736 = scalar_select %p735, %s37, 1
        %s737 = smul.addr %s734, 2
        %s738 = sadd.s32 %s736, %s737
        %s739 = smul.addr %s738, 2
        %s740 = scalar_lea.vmem %s12, %s739
        %p741 = scmp.lt.s32.totalorder %s37, 1
        %s742 = scalar_select %p741, %s37, 1
        %s743 = smul.addr %s742, 4
        %s744 = scalar_lea.vmem %s13, %s743
        %p746 = scmp.eq.s32.totalorder %s38, 0
        // Predicated region
        $region73: #{infini_wrapper_forward.6} parent=71 // pred_check
          %p747 = pneg %p746
        $region74: #{infini_wrapper_forward.6} parent=71 // pred_check_branch
          %749 = sbr.rel (%p747) target = $region76
        $region75: #{infini_wrapper_forward.6} parent=71 // pred_region
          %v750 = vld [vmem:[%s687] sm:$0xff]
          %vm751 = vcmask 261120
          %752 = vst.msk [vmem:[#allocation2] sm:$0xff] %vm751, %v750
        $region76: #{infini_wrapper_forward.6} parent=71 // pred_fallthru
          _
        %v753 = vld [vmem:[#allocation2] sm:$0xff]
        %v754 = vlaneseq
        %v755 = vshrl.u32 %v754, 7
        %v756 = vlaneseq
        %v757 = vand.u32 %v756, 127
        %vm758 = vcmp.le.s32.totalorder %v757, %v755
        %v759 = vld [vmem:[%s690] sm:$0x1]
        %v760 = vmul.f32 %v753, %v753
        %vm761 = vcmask 261120
        %v762 = vsel %vm761, %v760, 0.0
        %763 = vadd.xlane.f32.xlu0 %v762
        %v764 = vpop.xlane.xlu0 %763
        %v765 = vmax.f32 %v764, 1e-24
        %v766 = vrsqrt.pop %v765
        %v767 = vmul.f32 %v753, %v766
        %v768 = vmul.f32 %v767, 5.656854
        %v770 = vlaneseq
        %v771 = vshrl.u32 %v770, 7
        %v772 = vsub.s32 0, %v771
        %v773 = vrot.slane %v759, %v772
        %v775 = vmul.f32 %v768, %v773
        %v776 = vpack.c.bf16 %v775, %v775
        %v777 = vld [vmem:[%s695] sm:$0xf]
        %v778 = vld [vmem:[%s695 + $0x4] sm:$0xf]
        %v779 = vld [vmem:[%s695 + $0x8] sm:$0xf]
        %v780 = vld [vmem:[%s695 + $0xc] sm:$0xf]
        %v785 = vunpack.c.l.b16 %v777
        %v786 = vunpack.c.l.b16 %v778
        %v787 = vunpack.c.l.b16 %v779
        %v788 = vunpack.c.l.b16 %v780
        %v789 = vpack.c.b16 %v786, %v785
        %v790 = vpack.c.b16 %v788, %v787
        %v794 = vsel %vm761, %v776, 0
        %796 = vmatprep.subr.bf16.mxu0 0
        %797 = vmatpush1.bf16.msra.mxu0 %v789
        %798 = vmatprep.subr.bf16.mxu0 0
        %799 = vmatpush1.bf16.msra.mxu0 %v790
        %800 = vmatprep.subr.bf16.mxu0 0
        %801 = vmatpush1.bf16.msra.mxu0 0
        %802 = vmatprep.subr.bf16.mxu0 0
        %803 = vmatpush1.bf16.msra.mxu0 0
        %804 = vmatprep.subr.bf16.mxu0 0
        %805 = vmatpush1.bf16.msra.mxu0 0
        %806 = vmatprep.subr.bf16.mxu0 0
        %807 = vmatpush1.bf16.msra.mxu0 0
        %808 = vmatprep.subr.bf16.mxu0 0
        %809 = vmatpush1.bf16.msra.mxu0 0
        %810 = vmatprep.subr.bf16.mxu0 0
        %811 = vmatpush1.bf16.msra.mxu0 0
        %812 = vmatprep.subr.bf16.mxu0 0
        %813 = vmatpush1.bf16.msra.mxu0 0
        %814 = vmatprep.subr.bf16.mxu0 0
        %815 = vmatpush1.bf16.msra.mxu0 0
        %816 = vmatprep.subr.bf16.mxu0 0
        %817 = vmatpush1.bf16.msra.mxu0 0
        %818 = vmatprep.subr.bf16.mxu0 0
        %819 = vmatpush1.bf16.msra.mxu0 0
        %820 = vmatprep.subr.bf16.mxu0 0
        %821 = vmatpush1.bf16.msra.mxu0 0
        %822 = vmatprep.subr.bf16.mxu0 0
        %823 = vmatpush1.bf16.msra.mxu0 0
        %824 = vmatprep.subr.bf16.mxu0 0
        %825 = vmatpush1.bf16.msra.mxu0 0
        %826 = vmatprep.subr.bf16.mxu0 0
        %827 = vmatpush1.bf16.msra.mxu0 0
        %828 = vmatprep.mubr.bf16.mxu0 0
        %829 = vmatmul.mubr.bf16.gmra.mrb[0].mxu0 %v794
        %v830 = vpop.f32.mrb[0].mxu0
        %v831 = vadd.f32 0.0, %v830
        %v832 = vpop.f32.mrb[0].mxu0
        %v833 = vpop.f32.mrb[0].mxu0
        %v834 = vpop.f32.mrb[0].mxu0
        %835 = vdwg.mxu0
        %837 = vrot.lane.b32.xlu0 %v831, 112
        %v838 = vpop.permute.xlu0 %837
        %v840 = vmul.f32 %v831, 0.25
        %v841 = vmul.f32 %v838, 0.25
        %v842 = vpack.c.bf16 %v840, %v840
        %v843 = vpack.c.bf16 %v841, %v841
        %v844 = vpack.c.bf16 %v831, %v831
        %v845 = vpack.c.bf16 %v838, %v838
        %847 = vrot.lane.b32.xlu0 %v844, 96
        %v848 = vpop.permute.xlu0 %847
        %vm849 = vcmask 130048
        %v851 = vsel %vm849, %v842, 0
        %v854 = vsel %vm849, %v848, 0
        %856 = vmatprep.subr.bf16.mxu0 0
        %857 = vmatpush1.bf16.xpose.msra.mxu0 %v854
        %858 = vmatprep.subr.bf16.mxu0 0
        %859 = vmatpush1.bf16.xpose.msra.mxu0 0
        %860 = vmatprep.subr.bf16.mxu0 0
        %861 = vmatpush1.bf16.xpose.msra.mxu0 0
        %862 = vmatprep.subr.bf16.mxu0 0
        %863 = vmatpush1.bf16.xpose.msra.mxu0 0
        %864 = vmatprep.subr.bf16.mxu0 0
        %865 = vmatpush1.bf16.xpose.msra.mxu0 0
        %866 = vmatprep.subr.bf16.mxu0 0
        %867 = vmatpush1.bf16.xpose.msra.mxu0 0
        %868 = vmatprep.subr.bf16.mxu0 0
        %869 = vmatpush1.bf16.xpose.msra.mxu0 0
        %870 = vmatprep.subr.bf16.mxu0 0
        %871 = vmatpush1.bf16.xpose.msra.mxu0 0
        %872 = vmatprep.subr.bf16.mxu0 0
        %873 = vmatpush1.bf16.xpose.msra.mxu0 0
        %874 = vmatprep.subr.bf16.mxu0 0
        %875 = vmatpush1.bf16.xpose.msra.mxu0 0
        %876 = vmatprep.subr.bf16.mxu0 0
        %877 = vmatpush1.bf16.xpose.msra.mxu0 0
        %878 = vmatprep.subr.bf16.mxu0 0
        %879 = vmatpush1.bf16.xpose.msra.mxu0 0
        %880 = vmatprep.subr.bf16.mxu0 0
        %881 = vmatpush1.bf16.xpose.msra.mxu0 0
        %882 = vmatprep.subr.bf16.mxu0 0
        %883 = vmatpush1.bf16.xpose.msra.mxu0 0
        %884 = vmatprep.subr.bf16.mxu0 0
        %885 = vmatpush1.bf16.xpose.msra.mxu0 0
        %886 = vmatprep.subr.bf16.mxu0 0
        %887 = vmatpush1.bf16.xpose.msra.mxu0 0
        %888 = vmatprep.mubr.bf16.mxu0 0
        %889 = vmatmul.mubr.bf16.gmra.mrb[0].mxu0 %v851
        %v890 = vpop.f32.mrb[0].mxu0
        %v891 = vadd.f32 0.0, %v890
        %v892 = vpop.f32.mrb[0].mxu0
        %v893 = vpop.f32.mrb[0].mxu0
        %v894 = vpop.f32.mrb[0].mxu0
        %895 = vdwg.mxu0
        %897 = vrot.lane.b32.xlu0 %v845, 96
        %v898 = vpop.permute.xlu0 %897
        %v900 = vsel %vm849, %v843, 0
        %v903 = vsel %vm849, %v898, 0
        %905 = vmatprep.subr.bf16.mxu0 0
        %906 = vmatpush1.bf16.xpose.msra.mxu0 %v903
        %907 = vmatprep.subr.bf16.mxu0 0
        %908 = vmatpush1.bf16.xpose.msra.mxu0 0
        %909 = vmatprep.subr.bf16.mxu0 0
        %910 = vmatpush1.bf16.xpose.msra.mxu0 0
        %911 = vmatprep.subr.bf16.mxu0 0
        %912 = vmatpush1.bf16.xpose.msra.mxu0 0
        %913 = vmatprep.subr.bf16.mxu0 0
        %914 = vmatpush1.bf16.xpose.msra.mxu0 0
        %915 = vmatprep.subr.bf16.mxu0 0
        %916 = vmatpush1.bf16.xpose.msra.mxu0 0
        %917 = vmatprep.subr.bf16.mxu0 0
        %918 = vmatpush1.bf16.xpose.msra.mxu0 0
        %919 = vmatprep.subr.bf16.mxu0 0
        %920 = vmatpush1.bf16.xpose.msra.mxu0 0
        %921 = vmatprep.subr.bf16.mxu0 0
        %922 = vmatpush1.bf16.xpose.msra.mxu0 0
        %923 = vmatprep.subr.bf16.mxu0 0
        %924 = vmatpush1.bf16.xpose.msra.mxu0 0
        %925 = vmatprep.subr.bf16.mxu0 0
        %926 = vmatpush1.bf16.xpose.msra.mxu0 0
        %927 = vmatprep.subr.bf16.mxu0 0
        %928 = vmatpush1.bf16.xpose.msra.mxu0 0
        %929 = vmatprep.subr.bf16.mxu0 0
        %930 = vmatpush1.bf16.xpose.msra.mxu0 0
        %931 = vmatprep.subr.bf16.mxu0 0
        %932 = vmatpush1.bf16.xpose.msra.mxu0 0
        %933 = vmatprep.subr.bf16.mxu0 0
        %934 = vmatpush1.bf16.xpose.msra.mxu0 0
        %935 = vmatprep.subr.bf16.mxu0 0
        %936 = vmatpush1.bf16.xpose.msra.mxu0 0
        %937 = vmatprep.mubr.bf16.mxu0 0
        %938 = vmatmul.mubr.bf16.gmra.mrb[0].mxu0 %v900
        %v939 = vpop.f32.mrb[0].mxu0
        %v940 = vadd.f32 0.0, %v939
        %v941 = vpop.f32.mrb[0].mxu0
        %v942 = vpop.f32.mrb[0].mxu0
        %v943 = vpop.f32.mrb[0].mxu0
        %944 = vdwg.mxu0
        %v945 = vsel %vm758, 1, 0
        %vm946 = vcmp.eq.s32.totalorder %v945, 1
        %v947 = vsel %vm946, %v891, -1e+30
        %v948 = vsel %vm946, %v940, -1e+30
        %vm949 = vcmask 64512
        %v950 = vsel %vm949, %v947, -inf
        %951 = vmax.xlane.f32.xlu0 %v950
        %v952 = vpop.xlane.xlu0 %951
        %v953 = vsel %vm949, %v948, -inf
        %954 = vmax.xlane.f32.xlu0 %v953
        %v955 = vpop.xlane.xlu0 %954
        %v956 = vsub.f32 %v947, %v952
        %v957 = vsub.f32 %v948, %v955
        %v958 = vmul.f32 %v956, 1.442695
        %v959 = vpow.pop %v958
        %v960 = vmul.f32 %v957, 1.442695
        %v961 = vpow.pop %v960
        %v962 = vsel %vm949, %v959, 0.0
        %963 = vadd.xlane.f32.xlu0 %v962
        %v964 = vpop.xlane.xlu0 %963
        %v965 = vsel %vm949, %v961, 0.0
        %966 = vadd.xlane.f32.xlu0 %v965
        %v967 = vpop.xlane.xlu0 %966
        %v968 = vrcp.pop %v964
        %v969 = vrcp.pop %v967
        %v970 = vmul.f32 %v959, %v968
        %v971 = vmul.f32 %v961, %v969
        %v972 = vpack.c.bf16 %v970, %v970
        %v973 = vpack.c.bf16 %v971, %v971
        %974 = vrot.lane.b32.xlu0 %v844, 64
        %v975 = vpop.permute.xlu0 %974
        %v977 = vsel %vm949, %v972, 0
        %vm979 = vcmask 1043456
        %v981 = vsel %vm979, %v975, 0
        %983 = vmatprep.subr.bf16.mxu0 0
        %984 = vmatpush1.bf16.msra.mxu0 %v981
        %985 = vmatprep.subr.bf16.mxu0 0
        %986 = vmatpush1.bf16.msra.mxu0 0
        %987 = vmatprep.subr.bf16.mxu0 0
        %988 = vmatpush1.bf16.msra.mxu0 0
        %989 = vmatprep.subr.bf16.mxu0 0
        %990 = vmatpush1.bf16.msra.mxu0 0
        %991 = vmatprep.subr.bf16.mxu0 0
        %992 = vmatpush1.bf16.msra.mxu0 0
        %993 = vmatprep.subr.bf16.mxu0 0
        %994 = vmatpush1.bf16.msra.mxu0 0
        %995 = vmatprep.subr.bf16.mxu0 0
        %996 = vmatpush1.bf16.msra.mxu0 0
        %997 = vmatprep.subr.bf16.mxu0 0
        %998 = vmatpush1.bf16.msra.mxu0 0
        %999 = vmatprep.subr.bf16.mxu0 0
        %1000 = vmatpush1.bf16.msra.mxu0 0
        %1001 = vmatprep.subr.bf16.mxu0 0
        %1002 = vmatpush1.bf16.msra.mxu0 0
        %1003 = vmatprep.subr.bf16.mxu0 0
        %1004 = vmatpush1.bf16.msra.mxu0 0
        %1005 = vmatprep.subr.bf16.mxu0 0
        %1006 = vmatpush1.bf16.msra.mxu0 0
        %1007 = vmatprep.subr.bf16.mxu0 0
        %1008 = vmatpush1.bf16.msra.mxu0 0
        %1009 = vmatprep.subr.bf16.mxu0 0
        %1010 = vmatpush1.bf16.msra.mxu0 0
        %1011 = vmatprep.subr.bf16.mxu0 0
        %1012 = vmatpush1.bf16.msra.mxu0 0
        %1013 = vmatprep.subr.bf16.mxu0 0
        %1014 = vmatpush1.bf16.msra.mxu0 0
        %1015 = vmatprep.mubr.bf16.mxu0 0
        %1016 = vmatmul.mubr.bf16.gmra.mrb[0].mxu0 %v977
        %v1017 = vpop.f32.mrb[0].mxu0
        %v1018 = vadd.f32 0.0, %v1017
        %v1019 = vpop.f32.mrb[0].mxu0
        %v1020 = vpop.f32.mrb[0].mxu0
        %v1021 = vpop.f32.mrb[0].mxu0
        %1022 = vdwg.mxu0
        %1023 = vrot.lane.b32.xlu0 %v845, 64
        %v1024 = vpop.permute.xlu0 %1023
        %v1026 = vsel %vm949, %v973, 0
        %v1029 = vsel %vm979, %v1024, 0
        %1031 = vmatprep.subr.bf16.mxu0 0
        %1032 = vmatpush1.bf16.msra.mxu0 %v1029
        %1033 = vmatprep.subr.bf16.mxu0 0
        %1034 = vmatpush1.bf16.msra.mxu0 0
        %1035 = vmatprep.subr.bf16.mxu0 0
        %1036 = vmatpush1.bf16.msra.mxu0 0
        %1037 = vmatprep.subr.bf16.mxu0 0
        %1038 = vmatpush1.bf16.msra.mxu0 0
        %1039 = vmatprep.subr.bf16.mxu0 0
        %1040 = vmatpush1.bf16.msra.mxu0 0
        %1041 = vmatprep.subr.bf16.mxu0 0
        %1042 = vmatpush1.bf16.msra.mxu0 0
        %1043 = vmatprep.subr.bf16.mxu0 0
        %1044 = vmatpush1.bf16.msra.mxu0 0
        %1045 = vmatprep.subr.bf16.mxu0 0
        %1046 = vmatpush1.bf16.msra.mxu0 0
        %1047 = vmatprep.subr.bf16.mxu0 0
        %1048 = vmatpush1.bf16.msra.mxu0 0
        %1049 = vmatprep.subr.bf16.mxu0 0
        %1050 = vmatpush1.bf16.msra.mxu0 0
        %1051 = vmatprep.subr.bf16.mxu0 0
        %1052 = vmatpush1.bf16.msra.mxu0 0
        %1053 = vmatprep.subr.bf16.mxu0 0
        %1054 = vmatpush1.bf16.msra.mxu0 0
        %1055 = vmatprep.subr.bf16.mxu0 0
        %1056 = vmatpush1.bf16.msra.mxu0 0
        %1057 = vmatprep.subr.bf16.mxu0 0
        %1058 = vmatpush1.bf16.msra.mxu0 0
        %1059 = vmatprep.subr.bf16.mxu0 0
        %1060 = vmatpush1.bf16.msra.mxu0 0
        %1061 = vmatprep.subr.bf16.mxu0 0
        %1062 = vmatpush1.bf16.msra.mxu0 0
        %1063 = vmatprep.mubr.bf16.mxu0 0
        %1064 = vmatmul.mubr.bf16.gmra.mrb[0].mxu0 %v1026
        %v1065 = vpop.f32.mrb[0].mxu0
        %v1066 = vadd.f32 0.0, %v1065
        %v1067 = vpop.f32.mrb[0].mxu0
        %v1068 = vpop.f32.mrb[0].mxu0
        %v1069 = vpop.f32.mrb[0].mxu0
        %1070 = vdwg.mxu0
        %v1071 = vld [vmem:[%s704] sm:$0x1]
        %v1072 = vld [vmem:[%s704 + $0x1] sm:$0x1]
        %v1073 = vxor.u32 %v1071, 2147483648
        %v1074 = vxor.u32 %v1072, 2147483648
        %v1075 = vmul.f32 %v1073, 1.442695
        %v1076 = vpow.pop %v1075
        %v1077 = vmul.f32 %v1074, 1.442695
        %v1078 = vpow.pop %v1077
        %v1079 = vadd.f32 %v1076, 1.0
        %v1080 = vadd.f32 %v1078, 1.0
        %v1081 = vrcp.pop %v1079
        %v1082 = vmul.f32 1.0, %v1081
        %v1083 = vrcp.pop %v1080
        %v1084 = vmul.f32 1.0, %v1083
        %vm1085 = vcmp.gt.f32.partialorder %v831, 0.0
        %vm1086 = vcmp.gt.f32.partialorder %v838, 0.0
        %v1087 = vmul.f32 %v831, 1.442695
        %v1088 = vpow.pop %v1087
        %v1089 = vmul.f32 %v838, 1.442695
        %v1090 = vpow.pop %v1089
        %v1091 = vsub.f32 %v1088, 1.0
        %v1092 = vsub.f32 %v1090, 1.0
        %v1093 = vsel %vm1085, %v831, %v1091
        %v1094 = vsel %vm1086, %v838, %v1092
        %v1095 = vadd.f32 %v1093, 1.0
        %v1096 = vadd.f32 %v1094, 1.0
        %v1097 = vld [vmem:[%s732] sm:$0xff]
        %v1098 = vld [vmem:[%s732 + $0x8] sm:$0xff]
        %v1099 = vld [vmem:[%s732 + $0x10] sm:$0xff]
        %v1100 = vld [vmem:[%s732 + $0x18] sm:$0xff]
        %v1101 = vld [vmem:[%s740] sm:$0x3]
        %v1103 = vsel %vm849, %v1095, 0
        %1105 = vmatprep.subr.mxu0 0.0
        %1106 = vmatpush1.msra.mxu0 %v1097
        %1107 = vmatprep.subr.mxu0 0.0
        %1108 = vmatpush1.msra.mxu0 %v1098
        %1109 = vmatprep.subr.mxu0 0.0
        %1110 = vmatpush1.msra.mxu0 0.0
        %1111 = vmatprep.subr.mxu0 0.0
        %1112 = vmatpush1.msra.mxu0 0.0
        %1113 = vmatprep.subr.mxu0 0.0
        %1114 = vmatpush1.msra.mxu0 0.0
        %1115 = vmatprep.subr.mxu0 0.0
        %1116 = vmatpush1.msra.mxu0 0.0
        %1117 = vmatprep.subr.mxu0 0.0
        %1118 = vmatpush1.msra.mxu0 0.0
        %1119 = vmatprep.subr.mxu0 0.0
        %1120 = vmatpush1.msra.mxu0 0.0
        %1121 = vmatprep.subr.mxu0 0.0
        %1122 = vmatpush1.msra.mxu0 0.0
        %1123 = vmatprep.subr.mxu0 0.0
        %1124 = vmatpush1.msra.mxu0 0.0
        %1125 = vmatprep.subr.mxu0 0.0
        %1126 = vmatpush1.msra.mxu0 0.0
        %1127 = vmatprep.subr.mxu0 0.0
        %1128 = vmatpush1.msra.mxu0 0.0
        %1129 = vmatprep.subr.mxu0 0.0
        %1130 = vmatpush1.msra.mxu0 0.0
        %1131 = vmatprep.subr.mxu0 0.0
        %1132 = vmatpush1.msra.mxu0 0.0
        %1133 = vmatprep.subr.mxu0 0.0
        %1134 = vmatpush1.msra.mxu0 0.0
        %1135 = vmatprep.subr.mxu0 0.0
        %1136 = vmatpush1.msra.mxu0 0.0
        %1137 = vmatprep.subr.mxu0 0.0
        %1138 = vmatpush1.msra.mxu0 0.0
        %1139 = vmatprep.subr.mxu0 0.0
        %1140 = vmatpush1.msra.mxu0 0.0
        %1141 = vmatprep.subr.mxu0 0.0
        %1142 = vmatpush1.msra.mxu0 0.0
        %1143 = vmatprep.subr.mxu0 0.0
        %1144 = vmatpush1.msra.mxu0 0.0
        %1145 = vmatprep.subr.mxu0 0.0
        %1146 = vmatpush1.msra.mxu0 0.0
        %1147 = vmatprep.subr.mxu0 0.0
        %1148 = vmatpush1.msra.mxu0 0.0
        %1149 = vmatprep.subr.mxu0 0.0
        %1150 = vmatpush1.msra.mxu0 0.0
        %1151 = vmatprep.subr.mxu0 0.0
        %1152 = vmatpush1.msra.mxu0 0.0
        %1153 = vmatprep.subr.mxu0 0.0
        %1154 = vmatpush1.msra.mxu0 0.0
        %1155 = vmatprep.subr.mxu0 0.0
        %1156 = vmatpush1.msra.mxu0 0.0
        %1157 = vmatprep.subr.mxu0 0.0
        %1158 = vmatpush1.msra.mxu0 0.0
        %1159 = vmatprep.subr.mxu0 0.0
        %1160 = vmatpush1.msra.mxu0 0.0
        %1161 = vmatprep.subr.mxu0 0.0
        %1162 = vmatpush1.msra.mxu0 0.0
        %1163 = vmatprep.subr.mxu0 0.0
        %1164 = vmatpush1.msra.mxu0 0.0
        %1165 = vmatprep.subr.mxu0 0.0
        %1166 = vmatpush1.msra.mxu0 0.0
        %1167 = vmatprep.subr.mxu0 0.0
        %1168 = vmatpush1.msra.mxu0 0.0
        %1169 = vmatprep.mubr.f32.mxu0 0.0
        %1170 = vmatmul.mubr.f32.gmra.mrb[0].mxu0 %v1103
        %v1171 = vpop.f32.mrb[0].mxu0
        %v1172 = vadd.f32 0.0, %v1171
        %v1173 = vpop.f32.mrb[0].mxu0
        %1174 = vdwg.mxu0
        %v1176 = vsel %vm849, %v1096, 0
        %1178 = vmatprep.subr.mxu0 0.0
        %1179 = vmatpush1.msra.mxu0 %v1099
        %1180 = vmatprep.subr.mxu0 0.0
        %1181 = vmatpush1.msra.mxu0 %v1100
        %1182 = vmatprep.subr.mxu0 0.0
        %1183 = vmatpush1.msra.mxu0 0.0
        %1184 = vmatprep.subr.mxu0 0.0
        %1185 = vmatpush1.msra.mxu0 0.0
        %1186 = vmatprep.subr.mxu0 0.0
        %1187 = vmatpush1.msra.mxu0 0.0
        %1188 = vmatprep.subr.mxu0 0.0
        %1189 = vmatpush1.msra.mxu0 0.0
        %1190 = vmatprep.subr.mxu0 0.0
        %1191 = vmatpush1.msra.mxu0 0.0
        %1192 = vmatprep.subr.mxu0 0.0
        %1193 = vmatpush1.msra.mxu0 0.0
        %1194 = vmatprep.subr.mxu0 0.0
        %1195 = vmatpush1.msra.mxu0 0.0
        %1196 = vmatprep.subr.mxu0 0.0
        %1197 = vmatpush1.msra.mxu0 0.0
        %1198 = vmatprep.subr.mxu0 0.0
        %1199 = vmatpush1.msra.mxu0 0.0
        %1200 = vmatprep.subr.mxu0 0.0
        %1201 = vmatpush1.msra.mxu0 0.0
        %1202 = vmatprep.subr.mxu0 0.0
        %1203 = vmatpush1.msra.mxu0 0.0
        %1204 = vmatprep.subr.mxu0 0.0
        %1205 = vmatpush1.msra.mxu0 0.0
        %1206 = vmatprep.subr.mxu0 0.0
        %1207 = vmatpush1.msra.mxu0 0.0
        %1208 = vmatprep.subr.mxu0 0.0
        %1209 = vmatpush1.msra.mxu0 0.0
        %1210 = vmatprep.subr.mxu0 0.0
        %1211 = vmatpush1.msra.mxu0 0.0
        %1212 = vmatprep.subr.mxu0 0.0
        %1213 = vmatpush1.msra.mxu0 0.0
        %1214 = vmatprep.subr.mxu0 0.0
        %1215 = vmatpush1.msra.mxu0 0.0
        %1216 = vmatprep.subr.mxu0 0.0
        %1217 = vmatpush1.msra.mxu0 0.0
        %1218 = vmatprep.subr.mxu0 0.0
        %1219 = vmatpush1.msra.mxu0 0.0
        %1220 = vmatprep.subr.mxu0 0.0
        %1221 = vmatpush1.msra.mxu0 0.0
        %1222 = vmatprep.subr.mxu0 0.0
        %1223 = vmatpush1.msra.mxu0 0.0
        %1224 = vmatprep.subr.mxu0 0.0
        %1225 = vmatpush1.msra.mxu0 0.0
        %1226 = vmatprep.subr.mxu0 0.0
        %1227 = vmatpush1.msra.mxu0 0.0
        %1228 = vmatprep.subr.mxu0 0.0
        %1229 = vmatpush1.msra.mxu0 0.0
        %1230 = vmatprep.subr.mxu0 0.0
        %1231 = vmatpush1.msra.mxu0 0.0
        %1232 = vmatprep.subr.mxu0 0.0
        %1233 = vmatpush1.msra.mxu0 0.0
        %1234 = vmatprep.subr.mxu0 0.0
        %1235 = vmatpush1.msra.mxu0 0.0
        %1236 = vmatprep.subr.mxu0 0.0
        %1237 = vmatpush1.msra.mxu0 0.0
        %1238 = vmatprep.subr.mxu0 0.0
        %1239 = vmatpush1.msra.mxu0 0.0
        %1240 = vmatprep.subr.mxu0 0.0
        %1241 = vmatpush1.msra.mxu0 0.0
        %1242 = vmatprep.mubr.f32.mxu0 0.0
        %1243 = vmatmul.mubr.f32.gmra.mrb[0].mxu0 %v1176
        %v1244 = vpop.f32.mrb[0].mxu0
        %v1245 = vadd.f32 0.0, %v1244
        %v1246 = vpop.f32.mrb[0].mxu0
        %1247 = vdwg.mxu0
        %v1250 = vunpack.c.l.s4 1966171168
        %v1251 = vunpack.c.0.s8 %v1250
        %v1252 = vlaneseq
        %v1253 = vshrl.u32 %v1252, 7
        %v1254 = vsub.s32 %v1251, %v1253
        %v1255 = vrot.slane %v1101, %v1254
        %v1256 = vcombine.high %v1255, %v1255
        %v1258 = vunpack.c.l.s4 1966171168
        %v1259 = vunpack.c.0.s8 %v1258
        %v1260 = vlaneseq
        %v1261 = vshrl.u32 %v1260, 7
        %v1262 = vsub.s32 %v1259, %v1261
        %v1263 = vrot.slane %v1255, %v1262
        %v1265 = vunpack.c.l.s4 1966171168
        %v1266 = vunpack.c.0.s8 %v1265
        %v1267 = vlaneseq
        %v1268 = vshrl.u32 %v1267, 7
        %v1269 = vsub.s32 %v1266, %v1268
        %v1270 = vrot.slane %v1256, %v1269
        %v1271 = vlaneseq
        %v1272 = vshrl.u32 %v1271, 7
        %v1273 = vsub.s32 0, %v1272
        %v1274 = vrot.slane %v1263, %v1273
        %v1275 = vlaneseq
        %v1276 = vshrl.u32 %v1275, 7
        %v1277 = vsub.s32 0, %v1276
        %v1278 = vrot.slane %v1270, %v1277
        %v1281 = vmul.f32 %v1095, %v1274
        %v1282 = vmul.f32 %v1096, %v1278
        %v1283 = vsel %vm849, %v1281, 0.0
        %1284 = vadd.xlane.f32.xlu0 %v1283
        %v1285 = vpop.xlane.xlu0 %1284
        %v1286 = vsel %vm849, %v1282, 0.0
        %1287 = vadd.xlane.f32.xlu0 %v1286
        %v1288 = vpop.xlane.xlu0 %1287
        %v1289 = vmax.f32 %v1285, 1e-10
        %v1290 = vmax.f32 %v1288, 1e-10
        %v1291 = vrcp.pop %v1289
        %v1292 = vrcp.pop %v1290
        %v1293 = vmul.f32 %v1172, %v1291
        %v1294 = vmul.f32 %v1245, %v1292
        %v1297 = vlaneseq
        %v1298 = vshrl.u32 %v1297, 7
        %v1299 = vsub.s32 0, %v1298
        %v1300 = vrot.slane %v1082, %v1299
        %v1301 = vlaneseq
        %v1302 = vshrl.u32 %v1301, 7
        %v1303 = vsub.s32 0, %v1302
        %v1304 = vrot.slane %v1084, %v1303
        %1305 = vset.pattern.permute.xlu0 0
        %1306 = vperm.xlu0 %1305, %v1300
        %v1307 = vpop.permute.xlu0 %1306
        %1309 = vset.pattern.permute.xlu0 0
        %1310 = vperm.xlu0 %1309, %v1304
        %v1311 = vpop.permute.xlu0 %1310
        %v1313 = vmul.f32 %v1018, %v1307
        %v1314 = vmul.f32 %v1066, %v1311
        %v1315 = vsub.f32 1.0, %v1082
        %v1316 = vsub.f32 1.0, %v1084
        %v1319 = vlaneseq
        %v1320 = vshrl.u32 %v1319, 7
        %v1321 = vsub.s32 0, %v1320
        %v1322 = vrot.slane %v1315, %v1321
        %v1323 = vlaneseq
        %v1324 = vshrl.u32 %v1323, 7
        %v1325 = vsub.s32 0, %v1324
        %v1326 = vrot.slane %v1316, %v1325
        %1327 = vset.pattern.permute.xlu0 0
        %1328 = vperm.xlu0 %1327, %v1322
        %v1329 = vpop.permute.xlu0 %1328
        %1331 = vset.pattern.permute.xlu0 0
        %1332 = vperm.xlu0 %1331, %v1326
        %v1333 = vpop.permute.xlu0 %1332
        %v1335 = vmul.f32 %v1293, %v1329
        %v1336 = vmul.f32 %v1294, %v1333
        %v1337 = vadd.f32 %v1313, %v1335
        %v1338 = vadd.f32 %v1314, %v1336
        %1340 = vrot.lane.b32.xlu0 %v1338, 16
        %v1341 = vpop.permute.xlu0 %1340
        %v1343 = vsel %vm849, %v1337, %v1341
        %v1344 = vpack.c.bf16 %v1343, %v1343
        %v1345 = vld [vmem:[%s700] sm:$0xf]
        %v1346 = vld [vmem:[%s700 + $0x4] sm:$0xf]
        %v1347 = vld [vmem:[%s700 + $0x8] sm:$0xf]
        %v1348 = vld [vmem:[%s700 + $0xc] sm:$0xf]
        %v1353 = vunpack.c.l.b16 %v1345
        %v1354 = vunpack.c.l.b16 %v1346
        %v1355 = vunpack.c.l.b16 %v1347
        %v1356 = vunpack.c.l.b16 %v1348
        %v1357 = vpack.c.b16 %v1354, %v1353
        %v1358 = vpack.c.b16 %v1356, %v1355
        %v1362 = vsel %vm761, %v1344, 0
        %1364 = vmatprep.subr.bf16.mxu0 0
        %1365 = vmatpush1.bf16.msra.mxu0 %v1357
        %1366 = vmatprep.subr.bf16.mxu0 0
        %1367 = vmatpush1.bf16.msra.mxu0 %v1358
        %1368 = vmatprep.subr.bf16.mxu0 0
        %1369 = vmatpush1.bf16.msra.mxu0 0
        %1370 = vmatprep.subr.bf16.mxu0 0
        %1371 = vmatpush1.bf16.msra.mxu0 0
        %1372 = vmatprep.subr.bf16.mxu0 0
        %1373 = vmatpush1.bf16.msra.mxu0 0
        %1374 = vmatprep.subr.bf16.mxu0 0
        %1375 = vmatpush1.bf16.msra.mxu0 0
        %1376 = vmatprep.subr.bf16.mxu0 0
        %1377 = vmatpush1.bf16.msra.mxu0 0
        %1378 = vmatprep.subr.bf16.mxu0 0
        %1379 = vmatpush1.bf16.msra.mxu0 0
        %1380 = vmatprep.subr.bf16.mxu0 0
        %1381 = vmatpush1.bf16.msra.mxu0 0
        %1382 = vmatprep.subr.bf16.mxu0 0
        %1383 = vmatpush1.bf16.msra.mxu0 0
        %1384 = vmatprep.subr.bf16.mxu0 0
        %1385 = vmatpush1.bf16.msra.mxu0 0
        %1386 = vmatprep.subr.bf16.mxu0 0
        %1387 = vmatpush1.bf16.msra.mxu0 0
        %1388 = vmatprep.subr.bf16.mxu0 0
        %1389 = vmatpush1.bf16.msra.mxu0 0
        %1390 = vmatprep.subr.bf16.mxu0 0
        %1391 = vmatpush1.bf16.msra.mxu0 0
        %1392 = vmatprep.subr.bf16.mxu0 0
        %1393 = vmatpush1.bf16.msra.mxu0 0
        %1394 = vmatprep.subr.bf16.mxu0 0
        %1395 = vmatpush1.bf16.msra.mxu0 0
        %1396 = vmatprep.mubr.bf16.mxu0 0
        %1397 = vmatmul.mubr.bf16.gmra.mrb[0].mxu0 %v1362
        %v1398 = vpop.f32.mrb[0].mxu0
        %v1399 = vadd.f32 0.0, %v1398
        %v1400 = vpop.f32.mrb[0].mxu0
        %v1401 = vpop.f32.mrb[0].mxu0
        %v1402 = vpop.f32.mrb[0].mxu0
        %1403 = vdwg.mxu0
        %v1404 = vadd.f32 %v753, %v1399
        %1405 = vrot.lane.b32.xlu0 %v1095, 96
        %v1406 = vpop.permute.xlu0 %1405
        %1408 = vxpose.xlu0.b32.start [1/16] %v1406, 128
        %1409 = vxpose.xlu0.b32.cont [2/16] 0.0, 128
        %1410 = vxpose.xlu0.b32.cont [3/16] 0.0, 128
        %1411 = vxpose.xlu0.b32.cont [4/16] 0.0, 128
        %1412 = vxpose.xlu0.b32.cont [5/16] 0.0, 128
        %1413 = vxpose.xlu0.b32.cont [6/16] 0.0, 128
        %1414 = vxpose.xlu0.b32.cont [7/16] 0.0, 128
        %1415 = vxpose.xlu0.b32.cont [8/16] 0.0, 128
        %1416 = vxpose.xlu0.b32.cont [9/16] 0.0, 128
        %1417 = vxpose.xlu0.b32.cont [10/16] 0.0, 128
        %1418 = vxpose.xlu0.b32.cont [11/16] 0.0, 128
        %1419 = vxpose.xlu0.b32.cont [12/16] 0.0, 128
        %1420 = vxpose.xlu0.b32.cont [13/16] 0.0, 128
        %1421 = vxpose.xlu0.b32.cont [14/16] 0.0, 128
        %1422 = vxpose.xlu0.b32.cont [15/16] 0.0, 128
        %1423 = vxpose.xlu0.b32.end [16/16] 0.0, 128
        %v1424 = vpop.trf.xlu0
        %v1425 = vpop.trf.xlu0
        %v1426 = vpop.trf.xlu0
        %v1427 = vpop.trf.xlu0
        %v1428 = vpop.trf.xlu0
        %v1429 = vpop.trf.xlu0
        %v1430 = vpop.trf.xlu0
        %v1431 = vpop.trf.xlu0
        %v1432 = vpop.trf.xlu0
        %v1433 = vpop.trf.xlu0
        %v1434 = vpop.trf.xlu0
        %v1435 = vpop.trf.xlu0
        %v1436 = vpop.trf.xlu0
        %v1437 = vpop.trf.xlu0
        %v1438 = vpop.trf.xlu0
        %v1439 = vpop.trf.xlu0
        %1440 = vrot.lane.b32.xlu0 %v831, 64
        %v1441 = vpop.permute.xlu0 %1440
        %v1444 = vsel %vm949, %v1424, 0
        %v1447 = vsel %vm949, %v1425, 0
        %1449 = vmatprep.subr.mxu0 0.0
        %1450 = vmatpush1.msra.mxu0 %v1441
        %1451 = vmatprep.subr.mxu0 0.0
        %1452 = vmatpush1.msra.mxu0 0.0
        %1453 = vmatprep.subr.mxu0 0.0
        %1454 = vmatpush1.msra.mxu0 0.0
        %1455 = vmatprep.subr.mxu0 0.0
        %1456 = vmatpush1.msra.mxu0 0.0
        %1457 = vmatprep.subr.mxu0 0.0
        %1458 = vmatpush1.msra.mxu0 0.0
        %1459 = vmatprep.subr.mxu0 0.0
        %1460 = vmatpush1.msra.mxu0 0.0
        %1461 = vmatprep.subr.mxu0 0.0
        %1462 = vmatpush1.msra.mxu0 0.0
        %1463 = vmatprep.subr.mxu0 0.0
        %1464 = vmatpush1.msra.mxu0 0.0
        %1465 = vmatprep.subr.mxu0 0.0
        %1466 = vmatpush1.msra.mxu0 0.0
        %1467 = vmatprep.subr.mxu0 0.0
        %1468 = vmatpush1.msra.mxu0 0.0
        %1469 = vmatprep.subr.mxu0 0.0
        %1470 = vmatpush1.msra.mxu0 0.0
        %1471 = vmatprep.subr.mxu0 0.0
        %1472 = vmatpush1.msra.mxu0 0.0
        %1473 = vmatprep.subr.mxu0 0.0
        %1474 = vmatpush1.msra.mxu0 0.0
        %1475 = vmatprep.subr.mxu0 0.0
        %1476 = vmatpush1.msra.mxu0 0.0
        %1477 = vmatprep.subr.mxu0 0.0
        %1478 = vmatpush1.msra.mxu0 0.0
        %1479 = vmatprep.subr.mxu0 0.0
        %1480 = vmatpush1.msra.mxu0 0.0
        %1481 = vmatprep.subr.mxu0 0.0
        %1482 = vmatpush1.msra.mxu0 0.0
        %1483 = vmatprep.subr.mxu0 0.0
        %1484 = vmatpush1.msra.mxu0 0.0
        %1485 = vmatprep.subr.mxu0 0.0
        %1486 = vmatpush1.msra.mxu0 0.0
        %1487 = vmatprep.subr.mxu0 0.0
        %1488 = vmatpush1.msra.mxu0 0.0
        %1489 = vmatprep.subr.mxu0 0.0
        %1490 = vmatpush1.msra.mxu0 0.0
        %1491 = vmatprep.subr.mxu0 0.0
        %1492 = vmatpush1.msra.mxu0 0.0
        %1493 = vmatprep.subr.mxu0 0.0
        %1494 = vmatpush1.msra.mxu0 0.0
        %1495 = vmatprep.subr.mxu0 0.0
        %1496 = vmatpush1.msra.mxu0 0.0
        %1497 = vmatprep.subr.mxu0 0.0
        %1498 = vmatpush1.msra.mxu0 0.0
        %1499 = vmatprep.subr.mxu0 0.0
        %1500 = vmatpush1.msra.mxu0 0.0
        %1501 = vmatprep.subr.mxu0 0.0
        %1502 = vmatpush1.msra.mxu0 0.0
        %1503 = vmatprep.subr.mxu0 0.0
        %1504 = vmatpush1.msra.mxu0 0.0
        %1505 = vmatprep.subr.mxu0 0.0
        %1506 = vmatpush1.msra.mxu0 0.0
        %1507 = vmatprep.subr.mxu0 0.0
        %1508 = vmatpush1.msra.mxu0 0.0
        %1509 = vmatprep.subr.mxu0 0.0
        %1510 = vmatpush1.msra.mxu0 0.0
        %1511 = vmatprep.subr.mxu0 0.0
        %1512 = vmatpush1.msra.mxu0 0.0
        %1513 = vmatprep.mubr.f32.mxu0 0.0
        %1514 = vmatmul.mubr.f32.gmra.mrb[0].mxu0 %v1444
        %v1515 = vpop.f32.mrb[0].mxu0
        %v1516 = vadd.f32 0.0, %v1515
        %v1517 = vpop.f32.mrb[0].mxu0
        %1518 = vmatprep.mubr.f32.mxu0 0.0
        %1519 = vmatmul.mubr.f32.gmra.mrb[0].mxu0 %v1447
        %v1520 = vpop.f32.mrb[0].mxu0
        %v1521 = vadd.f32 0.0, %v1520
        %v1522 = vpop.f32.mrb[0].mxu0
        %1523 = vdwg.mxu0
        %1524 = vrot.lane.b32.xlu0 %v1096, 96
        %v1525 = vpop.permute.xlu0 %1524
        %1527 = vxpose.xlu0.b32.start [1/16] %v1525, 128
        %1528 = vxpose.xlu0.b32.cont [2/16] 0.0, 128
        %1529 = vxpose.xlu0.b32.cont [3/16] 0.0, 128
        %1530 = vxpose.xlu0.b32.cont [4/16] 0.0, 128
        %1531 = vxpose.xlu0.b32.cont [5/16] 0.0, 128
        %1532 = vxpose.xlu0.b32.cont [6/16] 0.0, 128
        %1533 = vxpose.xlu0.b32.cont [7/16] 0.0, 128
        %1534 = vxpose.xlu0.b32.cont [8/16] 0.0, 128
        %1535 = vxpose.xlu0.b32.cont [9/16] 0.0, 128
        %1536 = vxpose.xlu0.b32.cont [10/16] 0.0, 128
        %1537 = vxpose.xlu0.b32.cont [11/16] 0.0, 128
        %1538 = vxpose.xlu0.b32.cont [12/16] 0.0, 128
        %1539 = vxpose.xlu0.b32.cont [13/16] 0.0, 128
        %1540 = vxpose.xlu0.b32.cont [14/16] 0.0, 128
        %1541 = vxpose.xlu0.b32.cont [15/16] 0.0, 128
        %1542 = vxpose.xlu0.b32.end [16/16] 0.0, 128
        %v1543 = vpop.trf.xlu0
        %v1544 = vpop.trf.xlu0
        %v1545 = vpop.trf.xlu0
        %v1546 = vpop.trf.xlu0
        %v1547 = vpop.trf.xlu0
        %v1548 = vpop.trf.xlu0
        %v1549 = vpop.trf.xlu0
        %v1550 = vpop.trf.xlu0
        %v1551 = vpop.trf.xlu0
        %v1552 = vpop.trf.xlu0
        %v1553 = vpop.trf.xlu0
        %v1554 = vpop.trf.xlu0
        %v1555 = vpop.trf.xlu0
        %v1556 = vpop.trf.xlu0
        %v1557 = vpop.trf.xlu0
        %v1558 = vpop.trf.xlu0
        %1559 = vrot.lane.b32.xlu0 %v838, 64
        %v1560 = vpop.permute.xlu0 %1559
        %v1563 = vsel %vm949, %v1543, 0
        %v1566 = vsel %vm949, %v1544, 0
        %1568 = vmatprep.subr.mxu0 0.0
        %1569 = vmatpush1.msra.mxu0 %v1560
        %1570 = vmatprep.subr.mxu0 0.0
        %1571 = vmatpush1.msra.mxu0 0.0
        %1572 = vmatprep.subr.mxu0 0.0
        %1573 = vmatpush1.msra.mxu0 0.0
        %1574 = vmatprep.subr.mxu0 0.0
        %1575 = vmatpush1.msra.mxu0 0.0
        %1576 = vmatprep.subr.mxu0 0.0
        %1577 = vmatpush1.msra.mxu0 0.0
        %1578 = vmatprep.subr.mxu0 0.0
        %1579 = vmatpush1.msra.mxu0 0.0
        %1580 = vmatprep.subr.mxu0 0.0
        %1581 = vmatpush1.msra.mxu0 0.0
        %1582 = vmatprep.subr.mxu0 0.0
        %1583 = vmatpush1.msra.mxu0 0.0
        %1584 = vmatprep.subr.mxu0 0.0
        %1585 = vmatpush1.msra.mxu0 0.0
        %1586 = vmatprep.subr.mxu0 0.0
        %1587 = vmatpush1.msra.mxu0 0.0
        %1588 = vmatprep.subr.mxu0 0.0
        %1589 = vmatpush1.msra.mxu0 0.0
        %1590 = vmatprep.subr.mxu0 0.0
        %1591 = vmatpush1.msra.mxu0 0.0
        %1592 = vmatprep.subr.mxu0 0.0
        %1593 = vmatpush1.msra.mxu0 0.0
        %1594 = vmatprep.subr.mxu0 0.0
        %1595 = vmatpush1.msra.mxu0 0.0
        %1596 = vmatprep.subr.mxu0 0.0
        %1597 = vmatpush1.msra.mxu0 0.0
        %1598 = vmatprep.subr.mxu0 0.0
        %1599 = vmatpush1.msra.mxu0 0.0
        %1600 = vmatprep.subr.mxu0 0.0
        %1601 = vmatpush1.msra.mxu0 0.0
        %1602 = vmatprep.subr.mxu0 0.0
        %1603 = vmatpush1.msra.mxu0 0.0
        %1604 = vmatprep.subr.mxu0 0.0
        %1605 = vmatpush1.msra.mxu0 0.0
        %1606 = vmatprep.subr.mxu0 0.0
        %1607 = vmatpush1.msra.mxu0 0.0
        %1608 = vmatprep.subr.mxu0 0.0
        %1609 = vmatpush1.msra.mxu0 0.0
        %1610 = vmatprep.subr.mxu0 0.0
        %1611 = vmatpush1.msra.mxu0 0.0
        %1612 = vmatprep.subr.mxu0 0.0
        %1613 = vmatpush1.msra.mxu0 0.0
        %1614 = vmatprep.subr.mxu0 0.0
        %1615 = vmatpush1.msra.mxu0 0.0
        %1616 = vmatprep.subr.mxu0 0.0
        %1617 = vmatpush1.msra.mxu0 0.0
        %1618 = vmatprep.subr.mxu0 0.0
        %1619 = vmatpush1.msra.mxu0 0.0
        %1620 = vmatprep.subr.mxu0 0.0
        %1621 = vmatpush1.msra.mxu0 0.0
        %1622 = vmatprep.subr.mxu0 0.0
        %1623 = vmatpush1.msra.mxu0 0.0
        %1624 = vmatprep.subr.mxu0 0.0
        %1625 = vmatpush1.msra.mxu0 0.0
        %1626 = vmatprep.subr.mxu0 0.0
        %1627 = vmatpush1.msra.mxu0 0.0
        %1628 = vmatprep.subr.mxu0 0.0
        %1629 = vmatpush1.msra.mxu0 0.0
        %1630 = vmatprep.subr.mxu0 0.0
        %1631 = vmatpush1.msra.mxu0 0.0
        %1632 = vmatprep.mubr.f32.mxu0 0.0
        %1633 = vmatmul.mubr.f32.gmra.mrb[0].mxu0 %v1563
        %v1634 = vpop.f32.mrb[0].mxu0
        %v1635 = vadd.f32 0.0, %v1634
        %v1636 = vpop.f32.mrb[0].mxu0
        %1637 = vmatprep.mubr.f32.mxu0 0.0
        %1638 = vmatmul.mubr.f32.gmra.mrb[0].mxu0 %v1566
        %v1639 = vpop.f32.mrb[0].mxu0
        %v1640 = vadd.f32 0.0, %v1639
        %v1641 = vpop.f32.mrb[0].mxu0
        %1642 = vdwg.mxu0
        %v1643 = vld [vmem:[%s732] sm:$0xff]
        %v1644 = vld [vmem:[%s732 + $0x8] sm:$0xff]
        %v1645 = vld [vmem:[%s732 + $0x10] sm:$0xff]
        %v1646 = vld [vmem:[%s732 + $0x18] sm:$0xff]
        %v1647 = vadd.f32 %v1643, %v1516
        %v1648 = vadd.f32 %v1644, %v1521
        %v1649 = vadd.f32 %v1645, %v1635
        %v1650 = vadd.f32 %v1646, %v1640
        %1651 = vst.msk [vmem:[%s676] sm:$0xff] %vm849, %v1647
        %1652 = vst.msk [vmem:[%s676 + $0x8] sm:$0xff] %vm849, %v1648
        %1653 = vst.msk [vmem:[%s676 + $0x10] sm:$0xff] %vm849, %v1649
        %1654 = vst.msk [vmem:[%s676 + $0x18] sm:$0xff] %vm849, %v1650
        %v1655 = vld [vmem:[%s740] sm:$0x3]
        %vm1656 = vcmask 392448
        %v1657 = vsel %vm1656, %v1095, 0.0
        %v1658 = vrot.slane %v1657, 4
        %v1659 = vadd.f32 %v1657, %v1658
        %v1660 = vrot.slane %v1659, 2
        %v1661 = vadd.f32 %v1659, %v1660
        %v1662 = vrot.slane %v1661, 1
        %v1663 = vadd.f32 %v1661, %v1662
        %v1664 = vsel %vm1656, %v1096, 0.0
        %v1665 = vrot.slane %v1664, 4
        %v1666 = vadd.f32 %v1664, %v1665
        %v1667 = vrot.slane %v1666, 2
        %v1668 = vadd.f32 %v1666, %v1667
        %v1669 = vrot.slane %v1668, 1
        %v1670 = vadd.f32 %v1668, %v1669
        %vm1673 = vcmask 1041409
        %v1674 = vsel %vm1673, %v1670, %v1663
        %1675 = vrot.lane.b32.xlu0 %v1674, 96
        %v1676 = vpop.permute.xlu0 %1675
        %v1678 = vadd.f32 %v1655, %v1676
        %vm1679 = vcmask 123904
        %1680 = vst.msk [vmem:[%s683] sm:$0x3] %vm1679, %v1678
        %v1681 = vld [vmem:[%s707] sm:$0x1]
        %v1682 = vmul.f32 %v1404, %v1404
        %v1683 = vsel %vm761, %v1682, 0.0
        %1684 = vadd.xlane.f32.xlu0 %v1683
        %v1685 = vpop.xlane.xlu0 %1684
        %v1686 = vmax.f32 %v1685, 1e-24
        %v1687 = vrsqrt.pop %v1686
        %v1688 = vmul.f32 %v1404, %v1687
        %v1689 = vmul.f32 %v1688, 5.656854
        %v1691 = vlaneseq
        %v1692 = vshrl.u32 %v1691, 7
        %v1693 = vsub.s32 0, %v1692
        %v1694 = vrot.slane %v1681, %v1693
        %v1696 = vmul.f32 %v1689, %v1694
        %v1697 = vpack.c.bf16 %v1696, %v1696
        %v1698 = vld [vmem:[%s712] sm:$0xf]
        %v1699 = vld [vmem:[%s712 + $0x4] sm:$0xf]
        %v1700 = vld [vmem:[%s712 + $0x8] sm:$0xf]
        %v1701 = vld [vmem:[%s712 + $0xc] sm:$0xf]
        %v1702 = vld [vmem:[%s715] sm:$0x1]
        %v1704 = vlaneseq
        %v1705 = vshrl.u32 %v1704, 7
        %v1706 = vsub.s32 0, %v1705
        %v1707 = vrot.slane %v1702, %v1706
        %v1713 = vunpack.c.l.b16 %v1698
        %v1714 = vunpack.c.l.b16 %v1699
        %v1715 = vunpack.c.l.b16 %v1700
        %v1716 = vunpack.c.l.b16 %v1701
        %v1717 = vpack.c.b16 %v1714, %v1713
        %v1718 = vpack.c.b16 %v1716, %v1715
        %v1722 = vsel %vm761, %v1697, 0
        %1724 = vmatprep.subr.bf16.mxu0 0
        %1725 = vmatpush1.bf16.msra.mxu0 %v1717
        %1726 = vmatprep.subr.bf16.mxu0 0
        %1727 = vmatpush1.bf16.msra.mxu0 %v1718
        %1728 = vmatprep.subr.bf16.mxu0 0
        %1729 = vmatpush1.bf16.msra.mxu0 0
        %1730 = vmatprep.subr.bf16.mxu0 0
        %1731 = vmatpush1.bf16.msra.mxu0 0
        %1732 = vmatprep.subr.bf16.mxu0 0
        %1733 = vmatpush1.bf16.msra.mxu0 0
        %1734 = vmatprep.subr.bf16.mxu0 0
        %1735 = vmatpush1.bf16.msra.mxu0 0
        %1736 = vmatprep.subr.bf16.mxu0 0
        %1737 = vmatpush1.bf16.msra.mxu0 0
        %1738 = vmatprep.subr.bf16.mxu0 0
        %1739 = vmatpush1.bf16.msra.mxu0 0
        %1740 = vmatprep.subr.bf16.mxu0 0
        %1741 = vmatpush1.bf16.msra.mxu0 0
        %1742 = vmatprep.subr.bf16.mxu0 0
        %1743 = vmatpush1.bf16.msra.mxu0 0
        %1744 = vmatprep.subr.bf16.mxu0 0
        %1745 = vmatpush1.bf16.msra.mxu0 0
        %1746 = vmatprep.subr.bf16.mxu0 0
        %1747 = vmatpush1.bf16.msra.mxu0 0
        %1748 = vmatprep.subr.bf16.mxu0 0
        %1749 = vmatpush1.bf16.msra.mxu0 0
        %1750 = vmatprep.subr.bf16.mxu0 0
        %1751 = vmatpush1.bf16.msra.mxu0 0
        %1752 = vmatprep.subr.bf16.mxu0 0
        %1753 = vmatpush1.bf16.msra.mxu0 0
        %1754 = vmatprep.subr.bf16.mxu0 0
        %1755 = vmatpush1.bf16.msra.mxu0 0
        %1756 = vmatprep.mubr.bf16.mxu0 0
        %1757 = vmatmul.mubr.bf16.gmra.mrb[0].mxu0 %v1722
        %v1758 = vpop.f32.mrb[0].mxu0
        %v1759 = vadd.f32 %v1707, %v1758
        %v1760 = vpop.f32.mrb[0].mxu0
        %v1761 = vpop.f32.mrb[0].mxu0
        %v1762 = vpop.f32.mrb[0].mxu0
        %1763 = vdwg.mxu0
        %v1764 = vmul.f32 %v1759, %v1759
        %v1765 = vmul.f32 %v1759, %v1764
        %v1766 = vmul.f32 %v1765, 0.044715
        %v1767 = vadd.f32 %v1759, %v1766
        %v1768 = vmul.f32 %v1767, 0.7978846
        %v1769 = vtanh.pop %v1768
        %v1770 = vadd.f32 %v1769, 1.0
        %v1771 = vmul.f32 %v1770, 0.5
        %v1772 = vmul.f32 %v1759, %v1771
        %v1773 = vpack.c.bf16 %v1772, %v1772
        %v1774 = vld [vmem:[%s720] sm:$0xf]
        %v1775 = vld [vmem:[%s720 + $0x4] sm:$0xf]
        %v1776 = vld [vmem:[%s720 + $0x8] sm:$0xf]
        %v1777 = vld [vmem:[%s720 + $0xc] sm:$0xf]
        %v1778 = vld [vmem:[%s720 + $0x10] sm:$0xf]
        %v1779 = vld [vmem:[%s720 + $0x14] sm:$0xf]
        %v1780 = vld [vmem:[%s720 + $0x18] sm:$0xf]
        %v1781 = vld [vmem:[%s720 + $0x1c] sm:$0xf]
        %v1782 = vld [vmem:[%s720 + $0x20] sm:$0xf]
        %v1783 = vld [vmem:[%s720 + $0x24] sm:$0xf]
        %v1784 = vld [vmem:[%s720 + $0x28] sm:$0xf]
        %v1785 = vld [vmem:[%s720 + $0x2c] sm:$0xf]
        %v1786 = vld [vmem:[%s720 + $0x30] sm:$0xf]
        %v1787 = vld [vmem:[%s720 + $0x34] sm:$0xf]
        %v1788 = vld [vmem:[%s720 + $0x38] sm:$0xf]
        %v1789 = vld [vmem:[%s720 + $0x3c] sm:$0xf]
        %v1790 = vld [vmem:[%s723] sm:$0x1]
        %v1792 = vlaneseq
        %v1793 = vshrl.u32 %v1792, 7
        %v1794 = vsub.s32 0, %v1793
        %v1795 = vrot.slane %v1790, %v1794
        %v1813 = vunpack.c.l.b16 %v1774
        %v1814 = vunpack.c.l.b16 %v1775
        %v1815 = vunpack.c.l.b16 %v1776
        %v1816 = vunpack.c.l.b16 %v1777
        %v1817 = vunpack.c.l.b16 %v1778
        %v1818 = vunpack.c.l.b16 %v1779
        %v1819 = vunpack.c.l.b16 %v1780
        %v1820 = vunpack.c.l.b16 %v1781
        %v1821 = vunpack.c.l.b16 %v1782
        %v1822 = vunpack.c.l.b16 %v1783
        %v1823 = vunpack.c.l.b16 %v1784
        %v1824 = vunpack.c.l.b16 %v1785
        %v1825 = vunpack.c.l.b16 %v1786
        %v1826 = vunpack.c.l.b16 %v1787
        %v1827 = vunpack.c.l.b16 %v1788
        %v1828 = vunpack.c.l.b16 %v1789
        %v1829 = vpack.c.b16 %v1814, %v1813
        %v1830 = vpack.c.b16 %v1816, %v1815
        %v1831 = vpack.c.b16 %v1818, %v1817
        %v1832 = vpack.c.b16 %v1820, %v1819
        %v1833 = vpack.c.b16 %v1822, %v1821
        %v1834 = vpack.c.b16 %v1824, %v1823
        %v1835 = vpack.c.b16 %v1826, %v1825
        %v1836 = vpack.c.b16 %v1828, %v1827
        %1845 = vmatprep.subr.bf16.mxu0 0
        %1846 = vmatpush1.bf16.msra.mxu0 %v1829
        %1847 = vmatprep.subr.bf16.mxu0 0
        %1848 = vmatpush1.bf16.msra.mxu0 %v1830
        %1849 = vmatprep.subr.bf16.mxu0 0
        %1850 = vmatpush1.bf16.msra.mxu0 %v1831
        %1851 = vmatprep.subr.bf16.mxu0 0
        %1852 = vmatpush1.bf16.msra.mxu0 %v1832
        %1853 = vmatprep.subr.bf16.mxu0 0
        %1854 = vmatpush1.bf16.msra.mxu0 %v1833
        %1855 = vmatprep.subr.bf16.mxu0 0
        %1856 = vmatpush1.bf16.msra.mxu0 %v1834
        %1857 = vmatprep.subr.bf16.mxu0 0
        %1858 = vmatpush1.bf16.msra.mxu0 %v1835
        %1859 = vmatprep.subr.bf16.mxu0 0
        %1860 = vmatpush1.bf16.msra.mxu0 %v1836
        %1861 = vmatprep.subr.bf16.mxu0 0
        %1862 = vmatpush1.bf16.msra.mxu0 0
        %1863 = vmatprep.subr.bf16.mxu0 0
        %1864 = vmatpush1.bf16.msra.mxu0 0
        %1865 = vmatprep.subr.bf16.mxu0 0
        %1866 = vmatpush1.bf16.msra.mxu0 0
        %1867 = vmatprep.subr.bf16.mxu0 0
        %1868 = vmatpush1.bf16.msra.mxu0 0
        %1869 = vmatprep.subr.bf16.mxu0 0
        %1870 = vmatpush1.bf16.msra.mxu0 0
        %1871 = vmatprep.subr.bf16.mxu0 0
        %1872 = vmatpush1.bf16.msra.mxu0 0
        %1873 = vmatprep.subr.bf16.mxu0 0
        %1874 = vmatpush1.bf16.msra.mxu0 0
        %1875 = vmatprep.subr.bf16.mxu0 0
        %1876 = vmatpush1.bf16.msra.mxu0 0
        %1877 = vmatprep.mubr.bf16.mxu0 0
        %1878 = vmatmul.mubr.bf16.gmra.mrb[0].mxu0 %v1773
        %v1879 = vpop.f32.mrb[0].mxu0
        %v1880 = vadd.f32 %v1795, %v1879
        %v1881 = vpop.f32.mrb[0].mxu0
        %v1882 = vpop.f32.mrb[0].mxu0
        %v1883 = vpop.f32.mrb[0].mxu0
        %1884 = vdwg.mxu0
        %v1885 = vadd.f32 %v1404, %v1880
        %1886 = vst.msk [vmem:[#allocation2] sm:$0xff] %vm761, %v1885
        %p1887 = scmp.eq.s32.totalorder %s38, 1
        // Predicated region
        $region77: #{infini_wrapper_forward.6} parent=71 // pred_check
          %p1888 = pneg %p1887
        $region78: #{infini_wrapper_forward.6} parent=71 // pred_check_branch
          %1890 = sbr.rel (%p1888) target = $region80
        $region79: #{infini_wrapper_forward.6} parent=71 // pred_region
          %v1891 = vld [vmem:[%s10] sm:$0x1]
          %v1892 = vmul.f32 %v1885, %v1885
          %v1893 = vsel %vm761, %v1892, 0.0
          %1894 = vadd.xlane.f32.xlu0 %v1893
          %v1895 = vpop.xlane.xlu0 %1894
          %v1896 = vmax.f32 %v1895, 1e-24
          %v1897 = vrsqrt.pop %v1896
          %v1898 = vmul.f32 %v1885, %v1897
          %v1899 = vmul.f32 %v1898, 5.656854
          %v1901 = vlaneseq
          %v1902 = vshrl.u32 %v1901, 7
          %v1903 = vsub.s32 0, %v1902
          %v1904 = vrot.slane %v1891, %v1903
          %v1906 = vmul.f32 %v1899, %v1904
          %v1907 = vpack.c.bf16 %v1906, %v1906
          %vm1908 = vcmask 257024
          %1909 = vst.msk [vmem:[%s744] sm:$0xf] %vm1908, %v1907
        $region80: #{infini_wrapper_forward.6} parent=71 // pred_fallthru
          _
        %p1910 = scmp.lt.s32.totalorder %s37, 1
        %s1911 = scalar_select %p1910, %s37, 1
        %s1912 = smul.addr %s1911, 4
        %s1913 = scalar_lea.vmem %s13, %s1912
        %s1914 = sand.u32 %s418, 1
        %s1915 = scalar_lea.sflag [#allocation4], %s1914
        %s1916 = sand.u32 %s418, 1
        %s1917 = smul.addr %s1916, 32
        %s1918 = scalar_lea.vmem [#allocation3], %s1917
        %s1919 = sand.u32 %s446, 1
        %s1920 = scalar_lea.sflag [#allocation6], %s1919
        %s1921 = sand.u32 %s446, 1
        %s1922 = smul.addr %s1921, 2
        %s1923 = scalar_lea.vmem [#allocation5], %s1922
        // Predicated region
        $region81: #{infini_wrapper_forward.6} parent=71 // pred_check
          %p1924 = pneg %p400
        $region82: #{infini_wrapper_forward.6} parent=71 // pred_check_branch
          %1926 = sbr.rel (%p1924) target = $region84
        $region83: #{infini_wrapper_forward.6} parent=71 // pred_region
          _
        $region84: #{infini_wrapper_forward.6} parent=71 // pred_fallthru
          _
        // Predicated region
        $region85: #{infini_wrapper_forward.6} parent=71 // pred_check
          %p1927 = pneg %p428
        $region86: #{infini_wrapper_forward.6} parent=71 // pred_check_branch
          %1929 = sbr.rel (%p1927) target = $region88
        $region87: #{infini_wrapper_forward.6} parent=71 // pred_region
          %s1931 = ssub.s32 512, 512
          %1932 = vsyncadd %s1915, %s1931
          %s1933 = smul.addr %s37, 4
          %s1934 = smul.addr %s38, 8
          %s1935 = sadd.s32 %s1933, %s1934
          %s1936 = smul.addr %s1935, 128
          %s1937 = scalar_lea.hbm %s14, %s1936
          %s1938 = sshll.u32 %s1918, 4
          %s1939 = int_to_ptr.vmem [resolvable:$true] %s1938
          %1944 = dma.vmem_to_hbm [thread:$0]  %s1939, 512, %s1937, %s1915, 128, 128, 8
        $region88: #{infini_wrapper_forward.6} parent=71 // pred_fallthru
          _
        // Predicated region
        $region89: #{infini_wrapper_forward.6} parent=71 // pred_check
          %p1945 = pneg %p456
        $region90: #{infini_wrapper_forward.6} parent=71 // pred_check_branch
          %1947 = sbr.rel (%p1945) target = $region92
        $region91: #{infini_wrapper_forward.6} parent=71 // pred_region
          %s1949 = ssub.s32 32, 32
          %1950 = vsyncadd %s1920, %s1949
          %s1951 = smul.addr %s38, 2
          %s1952 = sadd.s32 %s37, %s1951
          %s1953 = smul.addr %s1952, 32
          %s1954 = scalar_lea.hbm %s15, %s1953
          %s1956 = sshll.u32 %s1923, 4
          %s1957 = int_to_ptr.vmem [resolvable:$true] %s1956
          %1959 = dma.vmem_to_hbm [thread:$0]  %s1957, 32, %s1954, %s1920
        $region92: #{infini_wrapper_forward.6} parent=71 // pred_fallthru
          _
      $region72: #{infini_wrapper_forward.6} parent=5 // pred_fallthru
        _
      %p1960 = scmp.le.s32.totalorder 2, %s28
      // Predicated region
      $region93: #{infini_wrapper_forward.6} parent=5 // pred_check
        %p1961 = pneg %p1960
      $region94: #{infini_wrapper_forward.6} parent=5 // pred_check_branch
        %1963 = sbr.rel (%p1961) target = $region96
      $region95: #{infini_wrapper_forward.6} parent=5 // pred_region
        %s1964 = ssub.s32 %s28, 2
        // Predicated region
        $region97: #{infini_wrapper_forward.6} parent=95 // pred_check
          %p1965 = pneg %p406
        $region98: #{infini_wrapper_forward.6} parent=95 // pred_check_branch
          %1967 = sbr.rel (%p1965) target = $region100
        $region99: #{infini_wrapper_forward.6} parent=95 // pred_region
          %p1968 = scmp.lt.s32.totalorder %s39, 1
          %s1969 = scalar_select %p1968, %s39, 1
          %s1970 = smul.addr %s1969, 4
          %s1971 = scalar_lea.vmem %s13, %s1970
        $region100: #{infini_wrapper_forward.6} parent=95 // pred_fallthru
          _
        // Predicated region
        $region101: #{infini_wrapper_forward.6} parent=95 // pred_check
          %p1972 = pneg %p434
        $region102: #{infini_wrapper_forward.6} parent=95 // pred_check_branch
          %1974 = sbr.rel (%p1972) target = $region104
        $region103: #{infini_wrapper_forward.6} parent=95 // pred_region
          %s1975 = sand.u32 %s419, 1
          %s1976 = scalar_lea.sflag [#allocation4], %s1975
          %s1977 = sand.u32 %s419, 1
          %s1978 = smul.addr %s1977, 32
          %s1979 = scalar_lea.vmem [#allocation3], %s1978
          %1980 = dma.done %s1976, 512
        $region104: #{infini_wrapper_forward.6} parent=95 // pred_fallthru
          _
        // Predicated region
        $region105: #{infini_wrapper_forward.6} parent=95 // pred_check
          %p1981 = pneg %p462
        $region106: #{infini_wrapper_forward.6} parent=95 // pred_check_branch
          %1983 = sbr.rel (%p1981) target = $region108
        $region107: #{infini_wrapper_forward.6} parent=95 // pred_region
          %s1984 = sand.u32 %s447, 1
          %s1985 = scalar_lea.sflag [#allocation6], %s1984
          %s1986 = sand.u32 %s447, 1
          %s1987 = smul.addr %s1986, 2
          %s1988 = scalar_lea.vmem [#allocation5], %s1987
          %1989 = dma.done %s1985, 32
        $region108: #{infini_wrapper_forward.6} parent=95 // pred_fallthru
          _
      $region96: #{infini_wrapper_forward.6} parent=5 // pred_fallthru
        _
    $region6: #{infini_wrapper_forward.6} parent=1 // loop_footer
      %s32 = sadd.s32 1, %s28
    $region7: #{infini_wrapper_forward.6} parent=1 // loop_footer_branch
      %27 = sbr.rel target = $region3
    $region8: #{infini_wrapper_forward.6} parent=1 // loop_exit
      _
    %1990 = vsyncpa [#allocation4], 1
    %s1991 = scalar_lea.sflag [#allocation4], 1
    %1992 = vsyncpa %s1991, 1
    %1993 = vsyncpa [#allocation6], 1
    %s1994 = scalar_lea.sflag [#allocation6], 1
    %1995 = vsyncpa %s1994, 1

</llo_original>
